<compile_context>
chip_gen: v7x
topology: tpu7x:2x2x1
jax: 0.10.0
libtpu: 0.0.40
codegen_flags: <defaults>
</compile_context>

<pallas_src>
import functools
import math

import jax
import jax.numpy as jnp
from jax import lax
from jax.experimental import pallas as pl
from jax.experimental.pallas import tpu as pltpu


_TRANS_B = (((1,), (1,)), ((), ()))   # a @ b.T (contract last dims), flash-attn style


def _silu(v):
    # x * sigmoid(x); exp and approx reciprocal both run on the EUP slot.
    return v * pl.reciprocal(1.0 + jnp.exp(-v), approx=True)


# ----------------------------------------------------------------------------
# Pallas kernel: one batch element per grid step.
# ----------------------------------------------------------------------------
def mamba_kernel(
    x_ref,        # (1, L, Dm)
    w_in_x_ref,   # (Dm, Di)
    w_in_z_ref,   # (Dm, Di)
    conv_wT_ref,  # (K, Di)   depthwise conv weights, time-major
    conv_b_ref,   # (1, Di)
    w_x_dt_ref,   # (Di, R)
    w_x_BT_ref,   # (N, Di)   == w_x_B.T (passed pre-transposed by the wrapper)
    w_x_C_ref,    # (Di, N)
    w_dt_ref,     # (R, Di)
    b_dt_ref,     # (1, Di)
    A_T_ref,      # (N, Di)   == (-exp(A_log)).T
    D_ref,        # (1, Di)
    w_out_ref,    # (Di, Dm)
    w_lin_ref,    # (Dm, Dm)  final nn.Linear weight (in, out)
    b_lin_ref,    # (1, Dm)
    out_ref,      # (1, L, Dm)
    dlt_sc,       # scratch (L, Di): delta
    du_sc,        # scratch (L, Di): delta * u
    u_sc,         # scratch (L, Di): conv+SiLU output
    c_sc,         # scratch (L, N):  C
    y_sc,         # scratch (L, Di): scan output
    *, L, K, N, Di, T,
):
    f32 = jnp.float32
    x = x_ref[0]                                                    # (L, Dm)

    # in_proj (x-path and gate-path)
    xin = jnp.dot(x, w_in_x_ref[...], preferred_element_type=f32)   # (L, Di)
    z = jnp.dot(x, w_in_z_ref[...], preferred_element_type=f32)     # (L, Di)

    # Causal depthwise Conv1d along time: per-tap shifted copies built from
    # aligned slices; no (L+K-1) padded buffer is materialized.
    conv = conv_b_ref[...] + conv_wT_ref[K - 1:K, :] * xin
    for s in range(1, K):
        k = K - 1 - s
        shifted = jnp.concatenate(
            [jnp.zeros((s, Di), f32), xin[:L - s, :]], axis=0)
        conv = conv + conv_wT_ref[k:k + 1, :] * shifted
    u = _silu(conv)                                                 # (L, Di)

    # x_proj -> (dt, C); dt_proj + softplus.  B is produced per time-chunk
    # directly in transposed (N, T) layout inside the scan loop.
    dt_in = jnp.dot(u, w_x_dt_ref[...], preferred_element_type=f32)   # (L, R)
    Cm = jnp.dot(u, w_x_C_ref[...], preferred_element_type=f32)       # (L, N)
    dt_raw = jnp.dot(dt_in, w_dt_ref[...], preferred_element_type=f32) + b_dt_ref[...]
    delta = jnp.where(dt_raw > 20.0, dt_raw,
                      jnp.log1p(jnp.exp(jnp.minimum(dt_raw, 20.0))))  # softplus

    dlt_sc[...] = delta
    du_sc[...] = delta * u
    u_sc[...] = u
    c_sc[...] = Cm

    A_T = A_T_ref[...]            # (N, Di)
    w_x_BT = w_x_BT_ref[...]      # (N, Di)

    # Selective scan, vectorized over the state dim: h is a full (N, Di) tile.
    # Time is processed in chunks of T rows so all loads and the y store touch
    # >= 8 sublanes; the T inner steps are statically unrolled.
    def chunk_body(c, h):
        t0 = pl.multiple_of(c * T, T)
        dlt_c = dlt_sc[pl.ds(t0, T), :]            # (T, Di)
        du_c = du_sc[pl.ds(t0, T), :]              # (T, Di)
        u_c = u_sc[pl.ds(t0, T), :]                # (T, Di)
        c_c = c_sc[pl.ds(t0, T), :]                # (T, N)
        # B for this chunk already transposed to (N, T): one MXU matmul.
        bT_c = lax.dot_general(w_x_BT, u_c, _TRANS_B,
                               preferred_element_type=f32)          # (N, T)
        rows = []
        for t in range(T):
            dA_t = jnp.exp(dlt_c[t:t + 1, :] * A_T)                 # (N, Di) EUP
            dBu_t = du_c[t:t + 1, :] * bT_c[:, t:t + 1]             # (N, Di)
            h = dA_t * h + dBu_t
            rows.append(jnp.dot(c_c[t:t + 1, :], h,
                                preferred_element_type=f32))        # (1, Di) MXU
        y_sc[pl.ds(t0, T), :] = jnp.concatenate(rows, axis=0)       # 8-row store
        return h

    lax.fori_loop(0, L // T, chunk_body, jnp.zeros((N, Di), f32))

    # D skip, SiLU(z) gate, out_proj, then the final nn.Linear head.
    y = (y_sc[...] + u * D_ref[...]) * _silu(z)
    mo = jnp.dot(y, w_out_ref[...], preferred_element_type=f32)       # (L, Dm)
    out = jnp.dot(mo, w_lin_ref[...], preferred_element_type=f32) + b_lin_ref[...]
    out_ref[0] = out


# ----------------------------------------------------------------------------
# Wrapper
# ----------------------------------------------------------------------------
def self_supervised_mamba_forward(x, p, *, d_state, d_conv):
    B_, L, Dm = x.shape
    Di = p["w_in_x"].shape[1]
    N, K = d_state, d_conv
    T = min(8, L)
    assert L % T == 0, "sequence length must be a multiple of the scan chunk"

    args = [x, p["w_in_x"], p["w_in_z"], p["conv_wT"], p["conv_b"],
            p["w_x_dt"], jnp.transpose(p["w_x_B"]), p["w_x_C"], p["w_dt"],
            p["b_dt"], p["A_T"], p["D"], p["w_out"], p["w_lin"], p["b_lin"]]

    def full_spec(a):
        return pl.BlockSpec(a.shape, lambda b, nd=a.ndim: (0,) * nd)

    in_specs = [pl.BlockSpec((1, L, Dm), lambda b: (b, 0, 0))]
    in_specs += [full_spec(a) for a in args[1:]]
    out_specs = pl.BlockSpec((1, L, Dm), lambda b: (b, 0, 0))

    kernel = functools.partial(mamba_kernel, L=L, K=K, N=N, Di=Di, T=T)
    return pl.pallas_call(
        kernel,
        out_shape=jax.ShapeDtypeStruct((B_, L, Dm), jnp.float32),
        grid=(B_,),
        in_specs=in_specs,
        out_specs=out_specs,
        scratch_shapes=[
            pltpu.VMEM((L, Di), jnp.float32),   # delta
            pltpu.VMEM((L, Di), jnp.float32),   # delta * u
            pltpu.VMEM((L, Di), jnp.float32),   # u
            pltpu.VMEM((L, N), jnp.float32),    # C
            pltpu.VMEM((L, Di), jnp.float32),   # y (scan output)
        ],
        compiler_params=pltpu.CompilerParams(
            dimension_semantics=("parallel",),          # batches are independent
            vmem_limit_bytes=32 * 1024 * 1024,
        ),
    )(*args)


# ----------------------------------------------------------------------------
# Deterministic synthetic parameters (shapes follow Mamba(d_model, d_state,
# d_conv, expand) + nn.Linear(d_model, d_model)).
# ----------------------------------------------------------------------------
def init_params(key, d_model, d_state, d_conv, expand):
    d_inner = expand * d_model
    dt_rank = math.ceil(d_model / 16)
    ks = jax.random.split(key, 10)

    def rnd(k, shape, scale):
        return jax.random.normal(k, shape, jnp.float32) * scale

    p = {
        "w_in_x": rnd(ks[0], (d_model, d_inner), 0.1),
        "w_in_z": rnd(ks[1], (d_model, d_inner), 0.1),
        "conv_wT": rnd(ks[2], (d_conv, d_inner), 0.2),
        "conv_b": rnd(ks[3], (1, d_inner), 0.05),
        "w_x_dt": rnd(ks[4], (d_inner, dt_rank), 0.1),
        "w_x_B": rnd(ks[5], (d_inner, d_state), 0.1),
        "w_x_C": rnd(ks[6], (d_inner, d_state), 0.1),
        "w_dt": rnd(ks[7], (dt_rank, d_inner), 0.1),
        "b_dt": jnp.full((1, d_inner), 0.01, jnp.float32),
        "D": jnp.ones((1, d_inner), jnp.float32),
        "w_out": rnd(ks[8], (d_inner, d_model), 0.1),
        "w_lin": rnd(ks[9], (d_model, d_model), 0.1),
        "b_lin": jnp.full((1, d_model), 0.02, jnp.float32),
    }
    # S4D-real init: A = repeat(arange(1, N+1)), A_used = -exp(log A) = -A.
    A = jnp.tile(jnp.arange(1, d_state + 1, dtype=jnp.float32)[None, :], (d_inner, 1))
    p["A_T"] = (-A).T                                   # (N, Di)
    return p


# ----------------------------------------------------------------------------
# Pure-JAX reference (same math) for a correctness check.
# ----------------------------------------------------------------------------
def reference_forward(x, p, d_conv):
    B_, L, _ = x.shape
    K = d_conv
    xin = x @ p["w_in_x"]
    z = x @ p["w_in_z"]
    Di = xin.shape[-1]
    xin_p = jnp.concatenate([jnp.zeros((B_, K - 1, Di), x.dtype), xin], axis=1)
    conv = jnp.zeros_like(xin) + p["conv_b"]
    for k in range(K):
        conv = conv + p["conv_wT"][k] * xin_p[:, k:k + L, :]
    u = conv * jax.nn.sigmoid(conv)
    dt_in = u @ p["w_x_dt"]
    Bm = u @ p["w_x_B"]
    Cm = u @ p["w_x_C"]
    delta = jax.nn.softplus(dt_in @ p["w_dt"] + p["b_dt"])
    A = p["A_T"].T                                       # (Di, N)
    dA = jnp.exp(delta[..., None] * A)                   # (B, L, Di, N)
    dBu = delta[..., None] * Bm[:, :, None, :] * u[..., None]

    def step(h, inp):
        dA_t, dBu_t, C_t = inp
        h = dA_t * h + dBu_t
        return h, jnp.einsum("bdn,bn->bd", h, C_t)

    h0 = jnp.zeros((B_, Di, A.shape[-1]), x.dtype)
    _, ys = jax.lax.scan(step, h0, (jnp.swapaxes(dA, 0, 1),
                                    jnp.swapaxes(dBu, 0, 1),
                                    jnp.swapaxes(Cm, 0, 1)))
    y = jnp.swapaxes(ys, 0, 1) + u * p["D"]
    y = y * (z * jax.nn.sigmoid(z))
    return (y @ p["w_out"]) @ p["w_lin"] + p["b_lin"]


if __name__ == "__main__":
    # Small but lane-dense shapes (d_model multiple of 128, d_inner = 256).
    d_model, d_state, d_conv, expand = 128, 16, 4, 2
    batch, seq = 2, 16

    key = jax.random.PRNGKey(0)
    kx, kp = jax.random.split(key)
    x = jax.random.normal(kx, (batch, seq, d_model), jnp.float32)
    params = init_params(kp, d_model, d_state, d_conv, expand)

    out = self_supervised_mamba_forward(x, params, d_state=d_state, d_conv=d_conv)
    out = jax.block_until_ready(out)

    ref = reference_forward(x, params, d_conv)
    assert out.shape == (batch, seq, d_model)
    assert jnp.allclose(out, ref, rtol=1e-2, atol=1e-2), "kernel mismatch vs reference"

    print("KERNEL_OK")
</pallas_src>

<mosaic_0001>
module attributes {stable_mosaic.version = 11 : i64} {
  func.func @mamba_kernel(%arg0: i32, %arg1: memref<1x16x128xf32, #tpu.memory_space<vmem>>, %arg2: memref<128x256xf32, #tpu.memory_space<vmem>>, %arg3: memref<128x256xf32, #tpu.memory_space<vmem>>, %arg4: memref<4x256xf32, #tpu.memory_space<vmem>>, %arg5: memref<1x256xf32, #tpu.memory_space<vmem>>, %arg6: memref<256x8xf32, #tpu.memory_space<vmem>>, %arg7: memref<16x256xf32, #tpu.memory_space<vmem>>, %arg8: memref<256x16xf32, #tpu.memory_space<vmem>>, %arg9: memref<8x256xf32, #tpu.memory_space<vmem>>, %arg10: memref<1x256xf32, #tpu.memory_space<vmem>>, %arg11: memref<16x256xf32, #tpu.memory_space<vmem>>, %arg12: memref<1x256xf32, #tpu.memory_space<vmem>>, %arg13: memref<256x128xf32, #tpu.memory_space<vmem>>, %arg14: memref<128x128xf32, #tpu.memory_space<vmem>>, %arg15: memref<1x128xf32, #tpu.memory_space<vmem>>, %arg16: memref<1x16x128xf32, #tpu.memory_space<vmem>>, %arg17: memref<16x256xf32, #tpu.memory_space<vmem>>, %arg18: memref<16x256xf32, #tpu.memory_space<vmem>>, %arg19: memref<16x256xf32, #tpu.memory_space<vmem>>, %arg20: memref<16x16xf32, #tpu.memory_space<vmem>>, %arg21: memref<16x256xf32, #tpu.memory_space<vmem>>) attributes {dimension_semantics = [#tpu.dimension_semantics<parallel>], iteration_bounds = array<i64: 2>, scalar_prefetch = 0 : i64, scratch_operands = 5 : i64, tpu.core_type = #tpu.core_type<tc>, window_params = [{transform_indices = @transform_0, window_bounds = array<i64: 1, 16, 128>}, {pipeline_mode = #tpu.pipeline_mode<synchronous>, transform_indices = @transform_1, window_bounds = array<i64: 128, 256>}, {pipeline_mode = #tpu.pipeline_mode<synchronous>, transform_indices = @transform_2, window_bounds = array<i64: 128, 256>}, {pipeline_mode = #tpu.pipeline_mode<synchronous>, transform_indices = @transform_3, window_bounds = array<i64: 4, 256>}, {pipeline_mode = #tpu.pipeline_mode<synchronous>, transform_indices = @transform_4, window_bounds = array<i64: 1, 256>}, {pipeline_mode = #tpu.pipeline_mode<synchronous>, transform_indices = @transform_5, window_bounds = array<i64: 256, 8>}, {pipeline_mode = #tpu.pipeline_mode<synchronous>, transform_indices = @transform_6, window_bounds = array<i64: 16, 256>}, {pipeline_mode = #tpu.pipeline_mode<synchronous>, transform_indices = @transform_7, window_bounds = array<i64: 256, 16>}, {pipeline_mode = #tpu.pipeline_mode<synchronous>, transform_indices = @transform_8, window_bounds = array<i64: 8, 256>}, {pipeline_mode = #tpu.pipeline_mode<synchronous>, transform_indices = @transform_9, window_bounds = array<i64: 1, 256>}, {pipeline_mode = #tpu.pipeline_mode<synchronous>, transform_indices = @transform_10, window_bounds = array<i64: 16, 256>}, {pipeline_mode = #tpu.pipeline_mode<synchronous>, transform_indices = @transform_11, window_bounds = array<i64: 1, 256>}, {pipeline_mode = #tpu.pipeline_mode<synchronous>, transform_indices = @transform_12, window_bounds = array<i64: 256, 128>}, {pipeline_mode = #tpu.pipeline_mode<synchronous>, transform_indices = @transform_13, window_bounds = array<i64: 128, 128>}, {pipeline_mode = #tpu.pipeline_mode<synchronous>, transform_indices = @transform_14, window_bounds = array<i64: 1, 128>}, {transform_indices = @transform_15, window_bounds = array<i64: 1, 16, 128>}]} {
    %c0 = arith.constant 0 : index
    %c0_0 = arith.constant 0 : index
    %c0_1 = arith.constant 0 : index
    %0 = vector.load %arg1[%c0, %c0_0, %c0_1] : memref<1x16x128xf32, #tpu.memory_space<vmem>>, vector<1x16x128xf32>
    %1 = vector.shape_cast %0 : vector<1x16x128xf32> to vector<16x128xf32>
    %c0_2 = arith.constant 0 : index
    %c0_3 = arith.constant 0 : index
    %2 = vector.load %arg2[%c0_2, %c0_3] : memref<128x256xf32, #tpu.memory_space<vmem>>, vector<128x256xf32>
    %cst = arith.constant dense<0.000000e+00> : vector<16x256xf32>
    %3 = tpu.matmul %1, %2, %cst {dimension_numbers = #tpu.dot_dimension_numbers<[1], [0], [0], [1], [0, 0, 1, 1], [], []>} : vector<16x128xf32>, vector<128x256xf32>, vector<16x256xf32> -> vector<16x256xf32>
    %c0_4 = arith.constant 0 : index
    %c0_5 = arith.constant 0 : index
    %4 = vector.load %arg3[%c0_4, %c0_5] : memref<128x256xf32, #tpu.memory_space<vmem>>, vector<128x256xf32>
    %cst_6 = arith.constant dense<0.000000e+00> : vector<16x256xf32>
    %5 = tpu.matmul %1, %4, %cst_6 {dimension_numbers = #tpu.dot_dimension_numbers<[1], [0], [0], [1], [0, 0, 1, 1], [], []>} : vector<16x128xf32>, vector<128x256xf32>, vector<16x256xf32> -> vector<16x256xf32>
    %c0_7 = arith.constant 0 : index
    %c0_8 = arith.constant 0 : index
    %6 = vector.load %arg5[%c0_7, %c0_8] : memref<1x256xf32, #tpu.memory_space<vmem>>, vector<1x256xf32>
    %c3 = arith.constant 3 : index
    %c0_9 = arith.constant 0 : index
    %7 = vector.load %arg4[%c3, %c0_9] : memref<4x256xf32, #tpu.memory_space<vmem>>, vector<1x256xf32>
    %8 = vector.broadcast %7 : vector<1x256xf32> to vector<16x256xf32>
    %9 = arith.mulf %8, %3 : vector<16x256xf32>
    %10 = vector.broadcast %6 : vector<1x256xf32> to vector<16x256xf32>
    %11 = arith.addf %10, %9 : vector<16x256xf32>
    %cst_10 = arith.constant 0.000000e+00 : f32
    %12 = vector.broadcast %cst_10 : f32 to vector<1x256xf32>
    %13 = vector.extract_strided_slice %3 {offsets = [0, 0], sizes = [15, 256], strides = [1, 1]} : vector<16x256xf32> to vector<15x256xf32>
    %14 = tpu.concatenate %12, %13 in 0 : vector<1x256xf32>, vector<15x256xf32> -> vector<16x256xf32>
    %c2 = arith.constant 2 : index
    %c0_11 = arith.constant 0 : index
    %15 = vector.load %arg4[%c2, %c0_11] : memref<4x256xf32, #tpu.memory_space<vmem>>, vector<1x256xf32>
    %16 = vector.broadcast %15 : vector<1x256xf32> to vector<16x256xf32>
    %17 = arith.mulf %16, %14 : vector<16x256xf32>
    %18 = arith.addf %11, %17 : vector<16x256xf32>
    %cst_12 = arith.constant 0.000000e+00 : f32
    %19 = vector.broadcast %cst_12 : f32 to vector<2x256xf32>
    %20 = vector.extract_strided_slice %3 {offsets = [0, 0], sizes = [14, 256], strides = [1, 1]} : vector<16x256xf32> to vector<14x256xf32>
    %21 = tpu.concatenate %19, %20 in 0 : vector<2x256xf32>, vector<14x256xf32> -> vector<16x256xf32>
    %c1 = arith.constant 1 : index
    %c0_13 = arith.constant 0 : index
    %22 = vector.load %arg4[%c1, %c0_13] : memref<4x256xf32, #tpu.memory_space<vmem>>, vector<1x256xf32>
    %23 = vector.broadcast %22 : vector<1x256xf32> to vector<16x256xf32>
    %24 = arith.mulf %23, %21 : vector<16x256xf32>
    %25 = arith.addf %18, %24 : vector<16x256xf32>
    %cst_14 = arith.constant 0.000000e+00 : f32
    %26 = vector.broadcast %cst_14 : f32 to vector<3x256xf32>
    %27 = vector.extract_strided_slice %3 {offsets = [0, 0], sizes = [13, 256], strides = [1, 1]} : vector<16x256xf32> to vector<13x256xf32>
    %28 = tpu.concatenate %26, %27 in 0 : vector<3x256xf32>, vector<13x256xf32> -> vector<16x256xf32>
    %c0_15 = arith.constant 0 : index
    %c0_16 = arith.constant 0 : index
    %29 = vector.load %arg4[%c0_15, %c0_16] : memref<4x256xf32, #tpu.memory_space<vmem>>, vector<1x256xf32>
    %30 = vector.broadcast %29 : vector<1x256xf32> to vector<16x256xf32>
    %31 = arith.mulf %30, %28 : vector<16x256xf32>
    %32 = arith.addf %25, %31 : vector<16x256xf32>
    %cst_17 = arith.constant 0.000000e+00 : f32
    %33 = vector.broadcast %cst_17 : f32 to vector<16x256xf32>
    %34 = arith.subf %33, %32 : vector<16x256xf32>
    %35 = math.exp %34 : vector<16x256xf32>
    %cst_18 = arith.constant 1.000000e+00 : f32
    %36 = vector.broadcast %cst_18 : f32 to vector<16x256xf32>
    %37 = arith.addf %36, %35 : vector<16x256xf32>
    %38 = tpu.reciprocal %37 {approx = true} : vector<16x256xf32> -> vector<16x256xf32>
    %39 = arith.mulf %32, %38 : vector<16x256xf32>
    %c0_19 = arith.constant 0 : index
    %c0_20 = arith.constant 0 : index
    %40 = vector.load %arg6[%c0_19, %c0_20] : memref<256x8xf32, #tpu.memory_space<vmem>>, vector<256x8xf32>
    %cst_21 = arith.constant dense<0.000000e+00> : vector<16x8xf32>
    %41 = tpu.matmul %39, %40, %cst_21 {dimension_numbers = #tpu.dot_dimension_numbers<[1], [0], [0], [1], [0, 0, 1, 1], [], []>} : vector<16x256xf32>, vector<256x8xf32>, vector<16x8xf32> -> vector<16x8xf32>
    %c0_22 = arith.constant 0 : index
    %c0_23 = arith.constant 0 : index
    %42 = vector.load %arg8[%c0_22, %c0_23] : memref<256x16xf32, #tpu.memory_space<vmem>>, vector<256x16xf32>
    %cst_24 = arith.constant dense<0.000000e+00> : vector<16x16xf32>
    %43 = tpu.matmul %39, %42, %cst_24 {dimension_numbers = #tpu.dot_dimension_numbers<[1], [0], [0], [1], [0, 0, 1, 1], [], []>} : vector<16x256xf32>, vector<256x16xf32>, vector<16x16xf32> -> vector<16x16xf32>
    %c0_25 = arith.constant 0 : index
    %c0_26 = arith.constant 0 : index
    %44 = vector.load %arg9[%c0_25, %c0_26] : memref<8x256xf32, #tpu.memory_space<vmem>>, vector<8x256xf32>
    %cst_27 = arith.constant dense<0.000000e+00> : vector<16x256xf32>
    %45 = tpu.matmul %41, %44, %cst_27 {dimension_numbers = #tpu.dot_dimension_numbers<[1], [0], [0], [1], [0, 0, 1, 1], [], []>} : vector<16x8xf32>, vector<8x256xf32>, vector<16x256xf32> -> vector<16x256xf32>
    %c0_28 = arith.constant 0 : index
    %c0_29 = arith.constant 0 : index
    %46 = vector.load %arg10[%c0_28, %c0_29] : memref<1x256xf32, #tpu.memory_space<vmem>>, vector<1x256xf32>
    %47 = vector.broadcast %46 : vector<1x256xf32> to vector<16x256xf32>
    %48 = arith.addf %45, %47 : vector<16x256xf32>
    %cst_30 = arith.constant 2.000000e+01 : f32
    %49 = vector.broadcast %cst_30 : f32 to vector<16x256xf32>
    %50 = arith.cmpf ogt, %48, %49 : vector<16x256xf32>
    %cst_31 = arith.constant 2.000000e+01 : f32
    %51 = vector.broadcast %cst_31 : f32 to vector<16x256xf32>
    %52 = arith.minimumf %48, %51 : vector<16x256xf32>
    %53 = math.exp %52 : vector<16x256xf32>
    %54 = math.log1p %53 : vector<16x256xf32>
    %55 = arith.select %50, %48, %54 : vector<16x256xi1>, vector<16x256xf32>
    %c0_32 = arith.constant 0 : index
    %c0_33 = arith.constant 0 : index
    %56 = vector.load %arg17[%c0_32, %c0_33] : memref<16x256xf32, #tpu.memory_space<vmem>>, vector<16x256xf32>
    tpu.vector_store %arg17[%c0_32, %c0_33], %55 {strides = array<i32>} : memref<16x256xf32, #tpu.memory_space<vmem>>, vector<16x256xf32>,
    %57 = arith.mulf %55, %39 : vector<16x256xf32>
    %c0_34 = arith.constant 0 : index
    %c0_35 = arith.constant 0 : index
    %58 = vector.load %arg18[%c0_34, %c0_35] : memref<16x256xf32, #tpu.memory_space<vmem>>, vector<16x256xf32>
    tpu.vector_store %arg18[%c0_34, %c0_35], %57 {strides = array<i32>} : memref<16x256xf32, #tpu.memory_space<vmem>>, vector<16x256xf32>,
    %c0_36 = arith.constant 0 : index
    %c0_37 = arith.constant 0 : index
    %59 = vector.load %arg19[%c0_36, %c0_37] : memref<16x256xf32, #tpu.memory_space<vmem>>, vector<16x256xf32>
    tpu.vector_store %arg19[%c0_36, %c0_37], %39 {strides = array<i32>} : memref<16x256xf32, #tpu.memory_space<vmem>>, vector<16x256xf32>,
    %c0_38 = arith.constant 0 : index
    %c0_39 = arith.constant 0 : index
    %60 = vector.load %arg20[%c0_38, %c0_39] : memref<16x16xf32, #tpu.memory_space<vmem>>, vector<16x16xf32>
    tpu.vector_store %arg20[%c0_38, %c0_39], %43 {strides = array<i32>} : memref<16x16xf32, #tpu.memory_space<vmem>>, vector<16x16xf32>,
    %c0_40 = arith.constant 0 : index
    %c0_41 = arith.constant 0 : index
    %61 = vector.load %arg11[%c0_40, %c0_41] : memref<16x256xf32, #tpu.memory_space<vmem>>, vector<16x256xf32>
    %c0_42 = arith.constant 0 : index
    %c0_43 = arith.constant 0 : index
    %62 = vector.load %arg7[%c0_42, %c0_43] : memref<16x256xf32, #tpu.memory_space<vmem>>, vector<16x256xf32>
    %cst_44 = arith.constant 0.000000e+00 : f32
    %63 = vector.broadcast %cst_44 : f32 to vector<16x256xf32>
    %c0_i32 = arith.constant 0 : i32
    %c2_i32 = arith.constant 2 : i32
    %64 = arith.addi %c0_i32, %c2_i32 : i32
    %c1_i32 = arith.constant 1 : i32
    %65 = scf.for %arg22 = %c0_i32 to %64 step %c1_i32 iter_args(%arg23 = %63) -> (vector<16x256xf32>)  : i32 {
      %c8_i32 = arith.constant 8 : i32
      %89 = arith.muli %arg22, %c8_i32 : i32
      %90 = tpu.assume_multiple %89, 8 : i32
      %91 = arith.index_cast %90 : i32 to index
      %c0_63 = arith.constant 0 : index
      %92 = vector.load %arg17[%91, %c0_63] : memref<16x256xf32, #tpu.memory_space<vmem>>, vector<8x256xf32>
      %93 = arith.index_cast %90 : i32 to index
      %c0_64 = arith.constant 0 : index
      %94 = vector.load %arg18[%93, %c0_64] : memref<16x256xf32, #tpu.memory_space<vmem>>, vector<8x256xf32>
      %95 = arith.index_cast %90 : i32 to index
      %c0_65 = arith.constant 0 : index
      %96 = vector.load %arg19[%95, %c0_65] : memref<16x256xf32, #tpu.memory_space<vmem>>, vector<8x256xf32>
      %97 = arith.index_cast %90 : i32 to index
      %c0_66 = arith.constant 0 : index
      %98 = vector.load %arg20[%97, %c0_66] : memref<16x16xf32, #tpu.memory_space<vmem>>, vector<8x16xf32>
      %cst_67 = arith.constant dense<0.000000e+00> : vector<16x8xf32>
      %99 = tpu.matmul %62, %96, %cst_67 {dimension_numbers = #tpu.dot_dimension_numbers<[1], [1], [0], [0], [0, 0, 1, 0], [], []>} : vector<16x256xf32>, vector<8x256xf32>, vector<16x8xf32> -> vector<16x8xf32>
      %100 = vector.extract_strided_slice %92 {offsets = [0, 0], sizes = [1, 256], strides = [1, 1]} : vector<8x256xf32> to vector<1x256xf32>
      %101 = vector.broadcast %100 : vector<1x256xf32> to vector<16x256xf32>
      %102 = arith.mulf %101, %61 : vector<16x256xf32>
      %103 = math.exp %102 : vector<16x256xf32>
      %104 = vector.extract_strided_slice %94 {offsets = [0, 0], sizes = [1, 256], strides = [1, 1]} : vector<8x256xf32> to vector<1x256xf32>
      %105 = vector.extract_strided_slice %99 {offsets = [0, 0], sizes = [16, 1], strides = [1, 1]} : vector<16x8xf32> to vector<16x1xf32>
      %106 = vector.broadcast %104 : vector<1x256xf32> to vector<16x256xf32>
      %107 = vector.broadcast %105 : vector<16x1xf32> to vector<16x256xf32>
      %108 = arith.mulf %106, %107 : vector<16x256xf32>
      %109 = arith.mulf %103, %arg23 : vector<16x256xf32>
      %110 = arith.addf %109, %108 : vector<16x256xf32>
      %111 = vector.extract_strided_slice %98 {offsets = [0, 0], sizes = [1, 16], strides = [1, 1]} : vector<8x16xf32> to vector<1x16xf32>
      %cst_68 = arith.constant dense<0.000000e+00> : vector<1x256xf32>
      %112 = tpu.matmul %111, %110, %cst_68 {dimension_numbers = #tpu.dot_dimension_numbers<[1], [0], [0], [1], [0, 0, 1, 1], [], []>} : vector<1x16xf32>, vector<16x256xf32>, vector<1x256xf32> -> vector<1x256xf32>
      %113 = vector.extract_strided_slice %92 {offsets = [1, 0], sizes = [1, 256], strides = [1, 1]} : vector<8x256xf32> to vector<1x256xf32>
      %114 = vector.broadcast %113 : vector<1x256xf32> to vector<16x256xf32>
      %115 = arith.mulf %114, %61 : vector<16x256xf32>
      %116 = math.exp %115 : vector<16x256xf32>
      %117 = vector.extract_strided_slice %94 {offsets = [1, 0], sizes = [1, 256], strides = [1, 1]} : vector<8x256xf32> to vector<1x256xf32>
      %118 = vector.extract_strided_slice %99 {offsets = [0, 1], sizes = [16, 1], strides = [1, 1]} : vector<16x8xf32> to vector<16x1xf32>
      %119 = vector.broadcast %117 : vector<1x256xf32> to vector<16x256xf32>
      %120 = vector.broadcast %118 : vector<16x1xf32> to vector<16x256xf32>
      %121 = arith.mulf %119, %120 : vector<16x256xf32>
      %122 = arith.mulf %116, %110 : vector<16x256xf32>
      %123 = arith.addf %122, %121 : vector<16x256xf32>
      %124 = vector.extract_strided_slice %98 {offsets = [1, 0], sizes = [1, 16], strides = [1, 1]} : vector<8x16xf32> to vector<1x16xf32>
      %cst_69 = arith.constant dense<0.000000e+00> : vector<1x256xf32>
      %125 = tpu.matmul %124, %123, %cst_69 {dimension_numbers = #tpu.dot_dimension_numbers<[1], [0], [0], [1], [0, 0, 1, 1], [], []>} : vector<1x16xf32>, vector<16x256xf32>, vector<1x256xf32> -> vector<1x256xf32>
      %126 = vector.extract_strided_slice %92 {offsets = [2, 0], sizes = [1, 256], strides = [1, 1]} : vector<8x256xf32> to vector<1x256xf32>
      %127 = vector.broadcast %126 : vector<1x256xf32> to vector<16x256xf32>
      %128 = arith.mulf %127, %61 : vector<16x256xf32>
      %129 = math.exp %128 : vector<16x256xf32>
      %130 = vector.extract_strided_slice %94 {offsets = [2, 0], sizes = [1, 256], strides = [1, 1]} : vector<8x256xf32> to vector<1x256xf32>
      %131 = vector.extract_strided_slice %99 {offsets = [0, 2], sizes = [16, 1], strides = [1, 1]} : vector<16x8xf32> to vector<16x1xf32>
      %132 = vector.broadcast %130 : vector<1x256xf32> to vector<16x256xf32>
      %133 = vector.broadcast %131 : vector<16x1xf32> to vector<16x256xf32>
      %134 = arith.mulf %132, %133 : vector<16x256xf32>
      %135 = arith.mulf %129, %123 : vector<16x256xf32>
      %136 = arith.addf %135, %134 : vector<16x256xf32>
      %137 = vector.extract_strided_slice %98 {offsets = [2, 0], sizes = [1, 16], strides = [1, 1]} : vector<8x16xf32> to vector<1x16xf32>
      %cst_70 = arith.constant dense<0.000000e+00> : vector<1x256xf32>
      %138 = tpu.matmul %137, %136, %cst_70 {dimension_numbers = #tpu.dot_dimension_numbers<[1], [0], [0], [1], [0, 0, 1, 1], [], []>} : vector<1x16xf32>, vector<16x256xf32>, vector<1x256xf32> -> vector<1x256xf32>
      %139 = vector.extract_strided_slice %92 {offsets = [3, 0], sizes = [1, 256], strides = [1, 1]} : vector<8x256xf32> to vector<1x256xf32>
      %140 = vector.broadcast %139 : vector<1x256xf32> to vector<16x256xf32>
      %141 = arith.mulf %140, %61 : vector<16x256xf32>
      %142 = math.exp %141 : vector<16x256xf32>
      %143 = vector.extract_strided_slice %94 {offsets = [3, 0], sizes = [1, 256], strides = [1, 1]} : vector<8x256xf32> to vector<1x256xf32>
      %144 = vector.extract_strided_slice %99 {offsets = [0, 3], sizes = [16, 1], strides = [1, 1]} : vector<16x8xf32> to vector<16x1xf32>
      %145 = vector.broadcast %143 : vector<1x256xf32> to vector<16x256xf32>
      %146 = vector.broadcast %144 : vector<16x1xf32> to vector<16x256xf32>
      %147 = arith.mulf %145, %146 : vector<16x256xf32>
      %148 = arith.mulf %142, %136 : vector<16x256xf32>
      %149 = arith.addf %148, %147 : vector<16x256xf32>
      %150 = vector.extract_strided_slice %98 {offsets = [3, 0], sizes = [1, 16], strides = [1, 1]} : vector<8x16xf32> to vector<1x16xf32>
      %cst_71 = arith.constant dense<0.000000e+00> : vector<1x256xf32>
      %151 = tpu.matmul %150, %149, %cst_71 {dimension_numbers = #tpu.dot_dimension_numbers<[1], [0], [0], [1], [0, 0, 1, 1], [], []>} : vector<1x16xf32>, vector<16x256xf32>, vector<1x256xf32> -> vector<1x256xf32>
      %152 = vector.extract_strided_slice %92 {offsets = [4, 0], sizes = [1, 256], strides = [1, 1]} : vector<8x256xf32> to vector<1x256xf32>
      %153 = vector.broadcast %152 : vector<1x256xf32> to vector<16x256xf32>
      %154 = arith.mulf %153, %61 : vector<16x256xf32>
      %155 = math.exp %154 : vector<16x256xf32>
      %156 = vector.extract_strided_slice %94 {offsets = [4, 0], sizes = [1, 256], strides = [1, 1]} : vector<8x256xf32> to vector<1x256xf32>
      %157 = vector.extract_strided_slice %99 {offsets = [0, 4], sizes = [16, 1], strides = [1, 1]} : vector<16x8xf32> to vector<16x1xf32>
      %158 = vector.broadcast %156 : vector<1x256xf32> to vector<16x256xf32>
      %159 = vector.broadcast %157 : vector<16x1xf32> to vector<16x256xf32>
      %160 = arith.mulf %158, %159 : vector<16x256xf32>
      %161 = arith.mulf %155, %149 : vector<16x256xf32>
      %162 = arith.addf %161, %160 : vector<16x256xf32>
      %163 = vector.extract_strided_slice %98 {offsets = [4, 0], sizes = [1, 16], strides = [1, 1]} : vector<8x16xf32> to vector<1x16xf32>
      %cst_72 = arith.constant dense<0.000000e+00> : vector<1x256xf32>
      %164 = tpu.matmul %163, %162, %cst_72 {dimension_numbers = #tpu.dot_dimension_numbers<[1], [0], [0], [1], [0, 0, 1, 1], [], []>} : vector<1x16xf32>, vector<16x256xf32>, vector<1x256xf32> -> vector<1x256xf32>
      %165 = vector.extract_strided_slice %92 {offsets = [5, 0], sizes = [1, 256], strides = [1, 1]} : vector<8x256xf32> to vector<1x256xf32>
      %166 = vector.broadcast %165 : vector<1x256xf32> to vector<16x256xf32>
      %167 = arith.mulf %166, %61 : vector<16x256xf32>
      %168 = math.exp %167 : vector<16x256xf32>
      %169 = vector.extract_strided_slice %94 {offsets = [5, 0], sizes = [1, 256], strides = [1, 1]} : vector<8x256xf32> to vector<1x256xf32>
      %170 = vector.extract_strided_slice %99 {offsets = [0, 5], sizes = [16, 1], strides = [1, 1]} : vector<16x8xf32> to vector<16x1xf32>
      %171 = vector.broadcast %169 : vector<1x256xf32> to vector<16x256xf32>
      %172 = vector.broadcast %170 : vector<16x1xf32> to vector<16x256xf32>
      %173 = arith.mulf %171, %172 : vector<16x256xf32>
      %174 = arith.mulf %168, %162 : vector<16x256xf32>
      %175 = arith.addf %174, %173 : vector<16x256xf32>
      %176 = vector.extract_strided_slice %98 {offsets = [5, 0], sizes = [1, 16], strides = [1, 1]} : vector<8x16xf32> to vector<1x16xf32>
      %cst_73 = arith.constant dense<0.000000e+00> : vector<1x256xf32>
      %177 = tpu.matmul %176, %175, %cst_73 {dimension_numbers = #tpu.dot_dimension_numbers<[1], [0], [0], [1], [0, 0, 1, 1], [], []>} : vector<1x16xf32>, vector<16x256xf32>, vector<1x256xf32> -> vector<1x256xf32>
      %178 = vector.extract_strided_slice %92 {offsets = [6, 0], sizes = [1, 256], strides = [1, 1]} : vector<8x256xf32> to vector<1x256xf32>
      %179 = vector.broadcast %178 : vector<1x256xf32> to vector<16x256xf32>
      %180 = arith.mulf %179, %61 : vector<16x256xf32>
      %181 = math.exp %180 : vector<16x256xf32>
      %182 = vector.extract_strided_slice %94 {offsets = [6, 0], sizes = [1, 256], strides = [1, 1]} : vector<8x256xf32> to vector<1x256xf32>
      %183 = vector.extract_strided_slice %99 {offsets = [0, 6], sizes = [16, 1], strides = [1, 1]} : vector<16x8xf32> to vector<16x1xf32>
      %184 = vector.broadcast %182 : vector<1x256xf32> to vector<16x256xf32>
      %185 = vector.broadcast %183 : vector<16x1xf32> to vector<16x256xf32>
      %186 = arith.mulf %184, %185 : vector<16x256xf32>
      %187 = arith.mulf %181, %175 : vector<16x256xf32>
      %188 = arith.addf %187, %186 : vector<16x256xf32>
      %189 = vector.extract_strided_slice %98 {offsets = [6, 0], sizes = [1, 16], strides = [1, 1]} : vector<8x16xf32> to vector<1x16xf32>
      %cst_74 = arith.constant dense<0.000000e+00> : vector<1x256xf32>
      %190 = tpu.matmul %189, %188, %cst_74 {dimension_numbers = #tpu.dot_dimension_numbers<[1], [0], [0], [1], [0, 0, 1, 1], [], []>} : vector<1x16xf32>, vector<16x256xf32>, vector<1x256xf32> -> vector<1x256xf32>
      %191 = vector.extract_strided_slice %92 {offsets = [7, 0], sizes = [1, 256], strides = [1, 1]} : vector<8x256xf32> to vector<1x256xf32>
      %192 = vector.broadcast %191 : vector<1x256xf32> to vector<16x256xf32>
      %193 = arith.mulf %192, %61 : vector<16x256xf32>
      %194 = math.exp %193 : vector<16x256xf32>
      %195 = vector.extract_strided_slice %94 {offsets = [7, 0], sizes = [1, 256], strides = [1, 1]} : vector<8x256xf32> to vector<1x256xf32>
      %196 = vector.extract_strided_slice %99 {offsets = [0, 7], sizes = [16, 1], strides = [1, 1]} : vector<16x8xf32> to vector<16x1xf32>
      %197 = vector.broadcast %195 : vector<1x256xf32> to vector<16x256xf32>
      %198 = vector.broadcast %196 : vector<16x1xf32> to vector<16x256xf32>
      %199 = arith.mulf %197, %198 : vector<16x256xf32>
      %200 = arith.mulf %194, %188 : vector<16x256xf32>
      %201 = arith.addf %200, %199 : vector<16x256xf32>
      %202 = vector.extract_strided_slice %98 {offsets = [7, 0], sizes = [1, 16], strides = [1, 1]} : vector<8x16xf32> to vector<1x16xf32>
      %cst_75 = arith.constant dense<0.000000e+00> : vector<1x256xf32>
      %203 = tpu.matmul %202, %201, %cst_75 {dimension_numbers = #tpu.dot_dimension_numbers<[1], [0], [0], [1], [0, 0, 1, 1], [], []>} : vector<1x16xf32>, vector<16x256xf32>, vector<1x256xf32> -> vector<1x256xf32>
      %204 = tpu.concatenate %112, %125, %138, %151, %164, %177, %190, %203 in 0 : vector<1x256xf32>, vector<1x256xf32>, vector<1x256xf32>, vector<1x256xf32>, vector<1x256xf32>, vector<1x256xf32>, vector<1x256xf32>, vector<1x256xf32> -> vector<8x256xf32>
      %205 = arith.index_cast %90 : i32 to index
      %c0_76 = arith.constant 0 : index
      %206 = vector.load %arg21[%205, %c0_76] : memref<16x256xf32, #tpu.memory_space<vmem>>, vector<8x256xf32>
      tpu.vector_store %arg21[%205, %c0_76], %204 {strides = array<i32>} : memref<16x256xf32, #tpu.memory_space<vmem>>, vector<8x256xf32>,
      scf.yield %201 : vector<16x256xf32>
    }
    %c2_i32_45 = arith.constant 2 : i32
    %c0_46 = arith.constant 0 : index
    %c0_47 = arith.constant 0 : index
    %66 = vector.load %arg21[%c0_46, %c0_47] : memref<16x256xf32, #tpu.memory_space<vmem>>, vector<16x256xf32>
    %c0_48 = arith.constant 0 : index
    %c0_49 = arith.constant 0 : index
    %67 = vector.load %arg12[%c0_48, %c0_49] : memref<1x256xf32, #tpu.memory_space<vmem>>, vector<1x256xf32>
    %68 = vector.broadcast %67 : vector<1x256xf32> to vector<16x256xf32>
    %69 = arith.mulf %39, %68 : vector<16x256xf32>
    %70 = arith.addf %66, %69 : vector<16x256xf32>
    %cst_50 = arith.constant 0.000000e+00 : f32
    %71 = vector.broadcast %cst_50 : f32 to vector<16x256xf32>
    %72 = arith.subf %71, %5 : vector<16x256xf32>
    %73 = math.exp %72 : vector<16x256xf32>
    %cst_51 = arith.constant 1.000000e+00 : f32
    %74 = vector.broadcast %cst_51 : f32 to vector<16x256xf32>
    %75 = arith.addf %74, %73 : vector<16x256xf32>
    %76 = tpu.reciprocal %75 {approx = true} : vector<16x256xf32> -> vector<16x256xf32>
    %77 = arith.mulf %5, %76 : vector<16x256xf32>
    %78 = arith.mulf %70, %77 : vector<16x256xf32>
    %c0_52 = arith.constant 0 : index
    %c0_53 = arith.constant 0 : index
    %79 = vector.load %arg13[%c0_52, %c0_53] : memref<256x128xf32, #tpu.memory_space<vmem>>, vector<256x128xf32>
    %cst_54 = arith.constant dense<0.000000e+00> : vector<16x128xf32>
    %80 = tpu.matmul %78, %79, %cst_54 {dimension_numbers = #tpu.dot_dimension_numbers<[1], [0], [0], [1], [0, 0, 1, 1], [], []>} : vector<16x256xf32>, vector<256x128xf32>, vector<16x128xf32> -> vector<16x128xf32>
    %c0_55 = arith.constant 0 : index
    %c0_56 = arith.constant 0 : index
    %81 = vector.load %arg14[%c0_55, %c0_56] : memref<128x128xf32, #tpu.memory_space<vmem>>, vector<128x128xf32>
    %cst_57 = arith.constant dense<0.000000e+00> : vector<16x128xf32>
    %82 = tpu.matmul %80, %81, %cst_57 {dimension_numbers = #tpu.dot_dimension_numbers<[1], [0], [0], [1], [0, 0, 1, 1], [], []>} : vector<16x128xf32>, vector<128x128xf32>, vector<16x128xf32> -> vector<16x128xf32>
    %c0_58 = arith.constant 0 : index
    %c0_59 = arith.constant 0 : index
    %83 = vector.load %arg15[%c0_58, %c0_59] : memref<1x128xf32, #tpu.memory_space<vmem>>, vector<1x128xf32>
    %84 = vector.broadcast %83 : vector<1x128xf32> to vector<16x128xf32>
    %85 = arith.addf %82, %84 : vector<16x128xf32>
    %c0_60 = arith.constant 0 : index
    %c0_61 = arith.constant 0 : index
    %c0_62 = arith.constant 0 : index
    %86 = vector.load %arg16[%c0_60, %c0_61, %c0_62] : memref<1x16x128xf32, #tpu.memory_space<vmem>>, vector<1x16x128xf32>
    %87 = vector.shape_cast %86 : vector<1x16x128xf32> to vector<16x128xf32>
    %88 = vector.shape_cast %85 : vector<16x128xf32> to vector<1x16x128xf32>
    tpu.vector_store %arg16[%c0_60, %c0_61, %c0_62], %88 {strides = array<i32>} : memref<1x16x128xf32, #tpu.memory_space<vmem>>, vector<1x16x128xf32>,
    return
  }
  func.func @transform_0(%arg0: i32) -> (i32, i32, i32) {
    %c0_i32 = arith.constant 0 : i32
    %c0_i32_0 = arith.constant 0 : i32
    %c0_i32_1 = arith.constant 0 : i32
    return %arg0, %c0_i32, %c0_i32_0 : i32, i32, i32
  }
  func.func @transform_1(%arg0: i32) -> (i32, i32) {
    %c0_i32 = arith.constant 0 : i32
    %c0_i32_0 = arith.constant 0 : i32
    %c0_i32_1 = arith.constant 0 : i32
    return %c0_i32, %c0_i32_0 : i32, i32
  }
  func.func @transform_2(%arg0: i32) -> (i32, i32) {
    %c0_i32 = arith.constant 0 : i32
    %c0_i32_0 = arith.constant 0 : i32
    %c0_i32_1 = arith.constant 0 : i32
    return %c0_i32, %c0_i32_0 : i32, i32
  }
  func.func @transform_3(%arg0: i32) -> (i32, i32) {
    %c0_i32 = arith.constant 0 : i32
    %c0_i32_0 = arith.constant 0 : i32
    %c0_i32_1 = arith.constant 0 : i32
    return %c0_i32, %c0_i32_0 : i32, i32
  }
  func.func @transform_4(%arg0: i32) -> (i32, i32) {
    %c0_i32 = arith.constant 0 : i32
    %c0_i32_0 = arith.constant 0 : i32
    %c0_i32_1 = arith.constant 0 : i32
    return %c0_i32, %c0_i32_0 : i32, i32
  }
  func.func @transform_5(%arg0: i32) -> (i32, i32) {
    %c0_i32 = arith.constant 0 : i32
    %c0_i32_0 = arith.constant 0 : i32
    %c0_i32_1 = arith.constant 0 : i32
    return %c0_i32, %c0_i32_0 : i32, i32
  }
  func.func @transform_6(%arg0: i32) -> (i32, i32) {
    %c0_i32 = arith.constant 0 : i32
    %c0_i32_0 = arith.constant 0 : i32
    %c0_i32_1 = arith.constant 0 : i32
    return %c0_i32, %c0_i32_0 : i32, i32
  }
  func.func @transform_7(%arg0: i32) -> (i32, i32) {
    %c0_i32 = arith.constant 0 : i32
    %c0_i32_0 = arith.constant 0 : i32
    %c0_i32_1 = arith.constant 0 : i32
    return %c0_i32, %c0_i32_0 : i32, i32
  }
  func.func @transform_8(%arg0: i32) -> (i32, i32) {
    %c0_i32 = arith.constant 0 : i32
    %c0_i32_0 = arith.constant 0 : i32
    %c0_i32_1 = arith.constant 0 : i32
    return %c0_i32, %c0_i32_0 : i32, i32
  }
  func.func @transform_9(%arg0: i32) -> (i32, i32) {
    %c0_i32 = arith.constant 0 : i32
    %c0_i32_0 = arith.constant 0 : i32
    %c0_i32_1 = arith.constant 0 : i32
    return %c0_i32, %c0_i32_0 : i32, i32
  }
  func.func @transform_10(%arg0: i32) -> (i32, i32) {
    %c0_i32 = arith.constant 0 : i32
    %c0_i32_0 = arith.constant 0 : i32
    %c0_i32_1 = arith.constant 0 : i32
    return %c0_i32, %c0_i32_0 : i32, i32
  }
  func.func @transform_11(%arg0: i32) -> (i32, i32) {
    %c0_i32 = arith.constant 0 : i32
    %c0_i32_0 = arith.constant 0 : i32
    %c0_i32_1 = arith.constant 0 : i32
    return %c0_i32, %c0_i32_0 : i32, i32
  }
  func.func @transform_12(%arg0: i32) -> (i32, i32) {
    %c0_i32 = arith.constant 0 : i32
    %c0_i32_0 = arith.constant 0 : i32
    %c0_i32_1 = arith.constant 0 : i32
    return %c0_i32, %c0_i32_0 : i32, i32
  }
  func.func @transform_13(%arg0: i32) -> (i32, i32) {
    %c0_i32 = arith.constant 0 : i32
    %c0_i32_0 = arith.constant 0 : i32
    %c0_i32_1 = arith.constant 0 : i32
    return %c0_i32, %c0_i32_0 : i32, i32
  }
  func.func @transform_14(%arg0: i32) -> (i32, i32) {
    %c0_i32 = arith.constant 0 : i32
    %c0_i32_0 = arith.constant 0 : i32
    %c0_i32_1 = arith.constant 0 : i32
    return %c0_i32, %c0_i32_0 : i32, i32
  }
  func.func @transform_15(%arg0: i32) -> (i32, i32, i32) {
    %c0_i32 = arith.constant 0 : i32
    %c0_i32_0 = arith.constant 0 : i32
    %c0_i32_1 = arith.constant 0 : i32
    return %arg0, %c0_i32, %c0_i32_0 : i32, i32, i32
  }
}

</mosaic_0001>

<llo_original>
// kernel: tpu_custom_call.1
$region0: #{tpu_custom_call.1}
  #allocation0 [shape = 'u32[]', space=smem, size = 0x4, offset = 0x4, fixed_abs, tag = 'smem constant byte address 0x4 - core index']
  #allocation1 [shape = 'u32[144,128]{1,0:T(1,128)}', space=vmem, size = 0x12000, scoped, tag = 'internal scratch']
  #allocation2 [shape = 'f32[16,256]{1,0:T(8,128)}', space=vmem, size = 0x4000, scoped, tag = 'scratch operand']
  #allocation3 [shape = 'f32[16,256]{1,0:T(8,128)}', space=vmem, size = 0x4000, scoped, tag = 'scratch operand']
  #allocation4 [shape = 'f32[16,256]{1,0:T(8,128)}', space=vmem, size = 0x4000, scoped, tag = 'scratch operand']
  #allocation5 [shape = 'f32[16,16]{1,0:T(8,128)}', space=vmem, size = 0x2000, scoped, tag = 'scratch operand']
  #allocation6 [shape = 'f32[16,256]{1,0:T(8,128)}', space=vmem, size = 0x4000, scoped, tag = 'scratch operand']
  %s0 = inlined_call_operand.hbm [shape: f32[2,16,128], index: 0, kind: input, shape index: {}]
  %s1 = inlined_call_operand.vmem [shape: f32[128,256], index: 1, kind: input, shape index: {}]
  %s2 = inlined_call_operand.vmem [shape: f32[128,256], index: 2, kind: input, shape index: {}]
  %s3 = inlined_call_operand.hbm [shape: f32[4,256], index: 3, kind: input, shape index: {}]
  %s4 = inlined_call_operand.vmem [shape: f32[1,256], index: 4, kind: input, shape index: {}]
  %s5 = inlined_call_operand.vmem [shape: f32[256,8], index: 5, kind: input, shape index: {}]
  %s6 = inlined_call_operand.vmem [shape: f32[16,256], index: 6, kind: input, shape index: {}]
  %s7 = inlined_call_operand.vmem [shape: f32[256,16], index: 7, kind: input, shape index: {}]
  %s8 = inlined_call_operand.hbm [shape: f32[8,256], index: 8, kind: input, shape index: {}]
  %s9 = inlined_call_operand.vmem [shape: f32[1,256], index: 9, kind: input, shape index: {}]
  %s10 = inlined_call_operand.hbm [shape: f32[16,256], index: 10, kind: input, shape index: {}]
  %s11 = inlined_call_operand.vmem [shape: f32[1,256], index: 11, kind: input, shape index: {}]
  %s12 = inlined_call_operand.hbm [shape: f32[256,128], index: 12, kind: input, shape index: {}]
  %s13 = inlined_call_operand.hbm [shape: f32[128,128], index: 13, kind: input, shape index: {}]
  %s14 = inlined_call_operand.vmem [shape: f32[1,128], index: 14, kind: input, shape index: {}]
  %s15 = inlined_call_operand.hbm [shape: f32[2,16,128], index: 15, kind: output, shape index: {}]
  %s16 = sld [smem:[#allocation0]]
  $region124: #{tpu_custom_call.1} parent=0
    _
  %s18 = ssub.s32 1, %s16
  %s19 = scalar_select 0, %s18, %s16
  $region1: #{tpu_custom_call.1} parent=0
    #allocation7 [shape = 'u8[16384]{0}', space=vmem, size = 0x4000, scoped, tag = 'input window, operand 0']
    #allocation8 [shape = 's32[2]{0}', space=sflag, size = 0x8, scoped, tag = 'scoped memory for tpu_custom_call.1']
    #allocation9 [shape = 's32[2]{0}', space=sflag, size = 0x8, scoped, tag = 'scoped memory for tpu_custom_call.1']
    #allocation10 [shape = 'u8[4096]{0}', space=vmem, size = 0x1000, scoped, tag = 'input window, operand 3, single buffered']
    #allocation11 [shape = 's32[1]{0}', space=sflag, size = 0x4, scoped, tag = 'scoped memory for tpu_custom_call.1']
    #allocation12 [shape = 'u8[8192]{0}', space=vmem, size = 0x2000, scoped, tag = 'input window, operand 8, single buffered']
    #allocation13 [shape = 'u8[16384]{0}', space=vmem, size = 0x4000, scoped, tag = 'input window, operand 10, single buffered']
    #allocation14 [shape = 's32[1]{0}', space=sflag, size = 0x4, scoped, tag = 'scoped memory for tpu_custom_call.1']
    #allocation15 [shape = 'u8[131072]{0}', space=vmem, size = 0x20000, scoped, tag = 'input window, operand 12, single buffered']
    #allocation16 [shape = 'u8[65536]{0}', space=vmem, size = 0x10000, scoped, tag = 'input window, operand 13, single buffered']
    #allocation17 [shape = 's32[1]{0}', space=sflag, size = 0x4, scoped, tag = 'scoped memory for tpu_custom_call.1']
    #allocation18 [shape = 'u8[16384]{0}', space=vmem, size = 0x4000, scoped, tag = 'output window, operand 0']
    %20 = vsyncpa [#allocation8], 0
    %s21 = scalar_lea.sflag [#allocation8], 1
    %22 = vsyncpa %s21, 0
    %23 = vsyncpa [#allocation11], 0
    %24 = vsyncpa [#allocation14], 0
    %25 = vsyncpa [#allocation17], 0
    %26 = vsyncpa [#allocation9], 0
    %s27 = scalar_lea.sflag [#allocation9], 1
    %28 = vsyncpa %s27, 0
    loop: start=0, step=1, limit=4
    $region2: #{tpu_custom_call.1} parent=1 // loop_pre_header
      _
    $region3: #{tpu_custom_call.1} parent=1 // loop_header
      %s30 = sphi 0, %s34
      %p31 = scmp.ge.s32.totalorder %s30, 4
      %s40 = sphi 0, %s42
      %s43 = sphi 0, %s40
      %s44 = sphi 0, %s43
      %s60 = sphi 0, %s44
      %s64 = sphi 0, %s64
      %s66 = sphi 0, %s64
      %s67 = sphi 0, %s66
      %s81 = sphi 0, %s67
      %s85 = sphi 0, %s85
      %s87 = sphi 0, %s85
      %s88 = sphi 0, %s87
      %s102 = sphi 0, %s88
      %s106 = sphi 0, %s106
      %s108 = sphi 0, %s106
      %s109 = sphi 0, %s108
      %s123 = sphi 0, %s109
      %s127 = sphi 0, %s127
      %s129 = sphi 0, %s127
      %s130 = sphi 0, %s129
      %s144 = sphi 0, %s130
      %s148 = sphi 0, %s148
      %s150 = sphi 0, %s148
      %s151 = sphi 0, %s150
      %s165 = sphi 0, %s151
      %s169 = sphi 0, %s169
      %s171 = sphi 0, %s169
      %s172 = sphi 0, %s171
      %s186 = sphi 0, %s172
      %s190 = sphi 0, %s190
      %s192 = sphi 0, %s190
      %s193 = sphi 0, %s192
      %s207 = sphi 0, %s193
      %s211 = sphi 0, %s211
      %s213 = sphi 0, %s211
      %s214 = sphi 0, %s213
      %s228 = sphi 0, %s214
      %s232 = sphi 0, %s232
      %s234 = sphi 0, %s232
      %s235 = sphi 0, %s234
      %s249 = sphi 0, %s235
      %s253 = sphi 0, %s253
      %s255 = sphi 0, %s253
      %s256 = sphi 0, %s255
      %s270 = sphi 0, %s256
      %s274 = sphi 0, %s274
      %s276 = sphi 0, %s274
      %s277 = sphi 0, %s276
      %s291 = sphi 0, %s277
      %s295 = sphi 0, %s295
      %s297 = sphi 0, %s295
      %s298 = sphi 0, %s297
      %s312 = sphi 0, %s298
      %s316 = sphi 0, %s316
      %s318 = sphi 0, %s316
      %s319 = sphi 0, %s318
      %s333 = sphi 0, %s319
      %s337 = sphi 0, %s337
      %s339 = sphi 0, %s337
      %s340 = sphi 0, %s339
      %s354 = sphi 0, %s340
      %s360 = sphi 0, %s362
      %s363 = sphi 0, %s360
      %s364 = sphi 0, %s363
      %s380 = sphi 0, %s364
    $region4: #{tpu_custom_call.1} parent=1 // loop_header_branch
      %33 = sbr.rel (%p31) target = $region8
    $region5: #{tpu_custom_call.1} parent=1 // loop_body
      %s35 = ssub.s32 %s30, 1
      %s36 = ssub.s32 %s30, 2
      %s37 = sadd.s32 %s30, 1
      %s38 = ssub.s32 %s30, %s37
      %p39 = scmp.eq.s32.totalorder %s38, 0
      %s41 = sadd.s32 %s40, 1
      %s42 = scalar_select %p39, %s40, %s41
      %p45 = pneg %p39
      %p46 = scmp.eq.s32.totalorder %s30, 1
      %p47 = por %p45, %p46
      %p48 = scmp.ne.s32.totalorder %s40, %s43
      %p49 = scmp.eq.s32.totalorder %s30, 0
      %p50 = por %p48, %p49
      %p51 = scmp.ne.s32.totalorder %s40, %s43
      %p52 = scmp.eq.s32.totalorder %s35, 1
      %p53 = por %p51, %p52
      %p54 = scmp.ne.s32.totalorder %s43, %s44
      %p55 = scmp.eq.s32.totalorder %s35, 0
      %p56 = por %p54, %p55
      %p57 = scmp.ne.s32.totalorder %s43, %s44
      %p58 = scmp.eq.s32.totalorder %s36, 1
      %p59 = por %p57, %p58
      %p61 = scmp.ne.s32.totalorder %s44, %s60
      %p62 = scmp.eq.s32.totalorder %s36, 0
      %p63 = por %p61, %p62
      %s65 = sadd.s32 %s64, 1
      %p68 = scmp.eq.s32.totalorder %s30, 1
      %p69 = scmp.ne.s32.totalorder %s64, %s66
      %p70 = scmp.eq.s32.totalorder %s30, 0
      %p71 = por %p69, %p70
      %p72 = scmp.ne.s32.totalorder %s64, %s66
      %p73 = scmp.eq.s32.totalorder %s35, 1
      %p74 = por %p72, %p73
      %p75 = scmp.ne.s32.totalorder %s66, %s67
      %p76 = scmp.eq.s32.totalorder %s35, 0
      %p77 = por %p75, %p76
      %p78 = scmp.ne.s32.totalorder %s66, %s67
      %p79 = scmp.eq.s32.totalorder %s36, 1
      %p80 = por %p78, %p79
      %p82 = scmp.ne.s32.totalorder %s67, %s81
      %p83 = scmp.eq.s32.totalorder %s36, 0
      %p84 = por %p82, %p83
      %s86 = sadd.s32 %s85, 1
      %p89 = scmp.eq.s32.totalorder %s30, 1
      %p90 = scmp.ne.s32.totalorder %s85, %s87
      %p91 = scmp.eq.s32.totalorder %s30, 0
      %p92 = por %p90, %p91
      %p93 = scmp.ne.s32.totalorder %s85, %s87
      %p94 = scmp.eq.s32.totalorder %s35, 1
      %p95 = por %p93, %p94
      %p96 = scmp.ne.s32.totalorder %s87, %s88
      %p97 = scmp.eq.s32.totalorder %s35, 0
      %p98 = por %p96, %p97
      %p99 = scmp.ne.s32.totalorder %s87, %s88
      %p100 = scmp.eq.s32.totalorder %s36, 1
      %p101 = por %p99, %p100
      %p103 = scmp.ne.s32.totalorder %s88, %s102
      %p104 = scmp.eq.s32.totalorder %s36, 0
      %p105 = por %p103, %p104
      %s107 = sadd.s32 %s106, 1
      %p110 = scmp.eq.s32.totalorder %s30, 1
      %p111 = scmp.ne.s32.totalorder %s106, %s108
      %p112 = scmp.eq.s32.totalorder %s30, 0
      %p113 = por %p111, %p112
      %p114 = scmp.ne.s32.totalorder %s106, %s108
      %p115 = scmp.eq.s32.totalorder %s35, 1
      %p116 = por %p114, %p115
      %p117 = scmp.ne.s32.totalorder %s108, %s109
      %p118 = scmp.eq.s32.totalorder %s35, 0
      %p119 = por %p117, %p118
      %p120 = scmp.ne.s32.totalorder %s108, %s109
      %p121 = scmp.eq.s32.totalorder %s36, 1
      %p122 = por %p120, %p121
      %p124 = scmp.ne.s32.totalorder %s109, %s123
      %p125 = scmp.eq.s32.totalorder %s36, 0
      %p126 = por %p124, %p125
      %s128 = sadd.s32 %s127, 1
      %p131 = scmp.eq.s32.totalorder %s30, 1
      %p132 = scmp.ne.s32.totalorder %s127, %s129
      %p133 = scmp.eq.s32.totalorder %s30, 0
      %p134 = por %p132, %p133
      %p135 = scmp.ne.s32.totalorder %s127, %s129
      %p136 = scmp.eq.s32.totalorder %s35, 1
      %p137 = por %p135, %p136
      %p138 = scmp.ne.s32.totalorder %s129, %s130
      %p139 = scmp.eq.s32.totalorder %s35, 0
      %p140 = por %p138, %p139
      %p141 = scmp.ne.s32.totalorder %s129, %s130
      %p142 = scmp.eq.s32.totalorder %s36, 1
      %p143 = por %p141, %p142
      %p145 = scmp.ne.s32.totalorder %s130, %s144
      %p146 = scmp.eq.s32.totalorder %s36, 0
      %p147 = por %p145, %p146
      %s149 = sadd.s32 %s148, 1
      %p152 = scmp.eq.s32.totalorder %s30, 1
      %p153 = scmp.ne.s32.totalorder %s148, %s150
      %p154 = scmp.eq.s32.totalorder %s30, 0
      %p155 = por %p153, %p154
      %p156 = scmp.ne.s32.totalorder %s148, %s150
      %p157 = scmp.eq.s32.totalorder %s35, 1
      %p158 = por %p156, %p157
      %p159 = scmp.ne.s32.totalorder %s150, %s151
      %p160 = scmp.eq.s32.totalorder %s35, 0
      %p161 = por %p159, %p160
      %p162 = scmp.ne.s32.totalorder %s150, %s151
      %p163 = scmp.eq.s32.totalorder %s36, 1
      %p164 = por %p162, %p163
      %p166 = scmp.ne.s32.totalorder %s151, %s165
      %p167 = scmp.eq.s32.totalorder %s36, 0
      %p168 = por %p166, %p167
      %s170 = sadd.s32 %s169, 1
      %p173 = scmp.eq.s32.totalorder %s30, 1
      %p174 = scmp.ne.s32.totalorder %s169, %s171
      %p175 = scmp.eq.s32.totalorder %s30, 0
      %p176 = por %p174, %p175
      %p177 = scmp.ne.s32.totalorder %s169, %s171
      %p178 = scmp.eq.s32.totalorder %s35, 1
      %p179 = por %p177, %p178
      %p180 = scmp.ne.s32.totalorder %s171, %s172
      %p181 = scmp.eq.s32.totalorder %s35, 0
      %p182 = por %p180, %p181
      %p183 = scmp.ne.s32.totalorder %s171, %s172
      %p184 = scmp.eq.s32.totalorder %s36, 1
      %p185 = por %p183, %p184
      %p187 = scmp.ne.s32.totalorder %s172, %s186
      %p188 = scmp.eq.s32.totalorder %s36, 0
      %p189 = por %p187, %p188
      %s191 = sadd.s32 %s190, 1
      %p194 = scmp.eq.s32.totalorder %s30, 1
      %p195 = scmp.ne.s32.totalorder %s190, %s192
      %p196 = scmp.eq.s32.totalorder %s30, 0
      %p197 = por %p195, %p196
      %p198 = scmp.ne.s32.totalorder %s190, %s192
      %p199 = scmp.eq.s32.totalorder %s35, 1
      %p200 = por %p198, %p199
      %p201 = scmp.ne.s32.totalorder %s192, %s193
      %p202 = scmp.eq.s32.totalorder %s35, 0
      %p203 = por %p201, %p202
      %p204 = scmp.ne.s32.totalorder %s192, %s193
      %p205 = scmp.eq.s32.totalorder %s36, 1
      %p206 = por %p204, %p205
      %p208 = scmp.ne.s32.totalorder %s193, %s207
      %p209 = scmp.eq.s32.totalorder %s36, 0
      %p210 = por %p208, %p209
      %s212 = sadd.s32 %s211, 1
      %p215 = scmp.eq.s32.totalorder %s30, 1
      %p216 = scmp.ne.s32.totalorder %s211, %s213
      %p217 = scmp.eq.s32.totalorder %s30, 0
      %p218 = por %p216, %p217
      %p219 = scmp.ne.s32.totalorder %s211, %s213
      %p220 = scmp.eq.s32.totalorder %s35, 1
      %p221 = por %p219, %p220
      %p222 = scmp.ne.s32.totalorder %s213, %s214
      %p223 = scmp.eq.s32.totalorder %s35, 0
      %p224 = por %p222, %p223
      %p225 = scmp.ne.s32.totalorder %s213, %s214
      %p226 = scmp.eq.s32.totalorder %s36, 1
      %p227 = por %p225, %p226
      %p229 = scmp.ne.s32.totalorder %s214, %s228
      %p230 = scmp.eq.s32.totalorder %s36, 0
      %p231 = por %p229, %p230
      %s233 = sadd.s32 %s232, 1
      %p236 = scmp.eq.s32.totalorder %s30, 1
      %p237 = scmp.ne.s32.totalorder %s232, %s234
      %p238 = scmp.eq.s32.totalorder %s30, 0
      %p239 = por %p237, %p238
      %p240 = scmp.ne.s32.totalorder %s232, %s234
      %p241 = scmp.eq.s32.totalorder %s35, 1
      %p242 = por %p240, %p241
      %p243 = scmp.ne.s32.totalorder %s234, %s235
      %p244 = scmp.eq.s32.totalorder %s35, 0
      %p245 = por %p243, %p244
      %p246 = scmp.ne.s32.totalorder %s234, %s235
      %p247 = scmp.eq.s32.totalorder %s36, 1
      %p248 = por %p246, %p247
      %p250 = scmp.ne.s32.totalorder %s235, %s249
      %p251 = scmp.eq.s32.totalorder %s36, 0
      %p252 = por %p250, %p251
      %s254 = sadd.s32 %s253, 1
      %p257 = scmp.eq.s32.totalorder %s30, 1
      %p258 = scmp.ne.s32.totalorder %s253, %s255
      %p259 = scmp.eq.s32.totalorder %s30, 0
      %p260 = por %p258, %p259
      %p261 = scmp.ne.s32.totalorder %s253, %s255
      %p262 = scmp.eq.s32.totalorder %s35, 1
      %p263 = por %p261, %p262
      %p264 = scmp.ne.s32.totalorder %s255, %s256
      %p265 = scmp.eq.s32.totalorder %s35, 0
      %p266 = por %p264, %p265
      %p267 = scmp.ne.s32.totalorder %s255, %s256
      %p268 = scmp.eq.s32.totalorder %s36, 1
      %p269 = por %p267, %p268
      %p271 = scmp.ne.s32.totalorder %s256, %s270
      %p272 = scmp.eq.s32.totalorder %s36, 0
      %p273 = por %p271, %p272
      %s275 = sadd.s32 %s274, 1
      %p278 = scmp.eq.s32.totalorder %s30, 1
      %p279 = scmp.ne.s32.totalorder %s274, %s276
      %p280 = scmp.eq.s32.totalorder %s30, 0
      %p281 = por %p279, %p280
      %p282 = scmp.ne.s32.totalorder %s274, %s276
      %p283 = scmp.eq.s32.totalorder %s35, 1
      %p284 = por %p282, %p283
      %p285 = scmp.ne.s32.totalorder %s276, %s277
      %p286 = scmp.eq.s32.totalorder %s35, 0
      %p287 = por %p285, %p286
      %p288 = scmp.ne.s32.totalorder %s276, %s277
      %p289 = scmp.eq.s32.totalorder %s36, 1
      %p290 = por %p288, %p289
      %p292 = scmp.ne.s32.totalorder %s277, %s291
      %p293 = scmp.eq.s32.totalorder %s36, 0
      %p294 = por %p292, %p293
      %s296 = sadd.s32 %s295, 1
      %p299 = scmp.eq.s32.totalorder %s30, 1
      %p300 = scmp.ne.s32.totalorder %s295, %s297
      %p301 = scmp.eq.s32.totalorder %s30, 0
      %p302 = por %p300, %p301
      %p303 = scmp.ne.s32.totalorder %s295, %s297
      %p304 = scmp.eq.s32.totalorder %s35, 1
      %p305 = por %p303, %p304
      %p306 = scmp.ne.s32.totalorder %s297, %s298
      %p307 = scmp.eq.s32.totalorder %s35, 0
      %p308 = por %p306, %p307
      %p309 = scmp.ne.s32.totalorder %s297, %s298
      %p310 = scmp.eq.s32.totalorder %s36, 1
      %p311 = por %p309, %p310
      %p313 = scmp.ne.s32.totalorder %s298, %s312
      %p314 = scmp.eq.s32.totalorder %s36, 0
      %p315 = por %p313, %p314
      %s317 = sadd.s32 %s316, 1
      %p320 = scmp.eq.s32.totalorder %s30, 1
      %p321 = scmp.ne.s32.totalorder %s316, %s318
      %p322 = scmp.eq.s32.totalorder %s30, 0
      %p323 = por %p321, %p322
      %p324 = scmp.ne.s32.totalorder %s316, %s318
      %p325 = scmp.eq.s32.totalorder %s35, 1
      %p326 = por %p324, %p325
      %p327 = scmp.ne.s32.totalorder %s318, %s319
      %p328 = scmp.eq.s32.totalorder %s35, 0
      %p329 = por %p327, %p328
      %p330 = scmp.ne.s32.totalorder %s318, %s319
      %p331 = scmp.eq.s32.totalorder %s36, 1
      %p332 = por %p330, %p331
      %p334 = scmp.ne.s32.totalorder %s319, %s333
      %p335 = scmp.eq.s32.totalorder %s36, 0
      %p336 = por %p334, %p335
      %s338 = sadd.s32 %s337, 1
      %p341 = scmp.eq.s32.totalorder %s30, 1
      %p342 = scmp.ne.s32.totalorder %s337, %s339
      %p343 = scmp.eq.s32.totalorder %s30, 0
      %p344 = por %p342, %p343
      %p345 = scmp.ne.s32.totalorder %s337, %s339
      %p346 = scmp.eq.s32.totalorder %s35, 1
      %p347 = por %p345, %p346
      %p348 = scmp.ne.s32.totalorder %s339, %s340
      %p349 = scmp.eq.s32.totalorder %s35, 0
      %p350 = por %p348, %p349
      %p351 = scmp.ne.s32.totalorder %s339, %s340
      %p352 = scmp.eq.s32.totalorder %s36, 1
      %p353 = por %p351, %p352
      %p355 = scmp.ne.s32.totalorder %s340, %s354
      %p356 = scmp.eq.s32.totalorder %s36, 0
      %p357 = por %p355, %p356
      %s358 = ssub.s32 %s30, %s37
      %p359 = scmp.eq.s32.totalorder %s358, 0
      %s361 = sadd.s32 %s360, 1
      %s362 = scalar_select %p359, %s360, %s361
      %p365 = pneg %p359
      %p366 = scmp.eq.s32.totalorder %s30, 1
      %p367 = por %p365, %p366
      %p368 = scmp.ne.s32.totalorder %s360, %s363
      %p369 = scmp.eq.s32.totalorder %s30, 0
      %p370 = por %p368, %p369
      %p371 = scmp.ne.s32.totalorder %s360, %s363
      %p372 = scmp.eq.s32.totalorder %s35, 1
      %p373 = por %p371, %p372
      %p374 = scmp.ne.s32.totalorder %s363, %s364
      %p375 = scmp.eq.s32.totalorder %s35, 0
      %p376 = por %p374, %p375
      %p377 = scmp.ne.s32.totalorder %s363, %s364
      %p378 = scmp.eq.s32.totalorder %s36, 1
      %p379 = por %p377, %p378
      %p381 = scmp.ne.s32.totalorder %s364, %s380
      %p382 = scmp.eq.s32.totalorder %s36, 0
      %p383 = por %p381, %p382
      %p384 = scmp.le.s32.totalorder 1, %s30
      %p385 = scmp.lt.s32.totalorder %s30, 3
      %p386 = pnand %p384, %p385
      %p387 = pneg %p386
      // Predicated region
      $region9: #{tpu_custom_call.1} parent=5 // pred_check
        _
      $region10: #{tpu_custom_call.1} parent=5 // pred_check_branch
        %389 = sbr.rel (%p386) target = $region12
      $region11: #{tpu_custom_call.1} parent=5 // pred_region
        %s390 = ssub.s32 %s30, 1
        // Predicated region
        $region13: #{tpu_custom_call.1} parent=11 // pred_check
          %p391 = pneg %p77
        $region14: #{tpu_custom_call.1} parent=11 // pred_check_branch
          %393 = sbr.rel (%p391) target = $region16
        $region15: #{tpu_custom_call.1} parent=11 // pred_region
          _
        $region16: #{tpu_custom_call.1} parent=11 // pred_fallthru
          _
        // Predicated region
        $region17: #{tpu_custom_call.1} parent=11 // pred_check
          %p394 = pneg %p98
        $region18: #{tpu_custom_call.1} parent=11 // pred_check_branch
          %396 = sbr.rel (%p394) target = $region20
        $region19: #{tpu_custom_call.1} parent=11 // pred_region
          _
        $region20: #{tpu_custom_call.1} parent=11 // pred_fallthru
          _
        // Predicated region
        $region21: #{tpu_custom_call.1} parent=11 // pred_check
          %p397 = pneg %p119
        $region22: #{tpu_custom_call.1} parent=11 // pred_check_branch
          %399 = sbr.rel (%p397) target = $region24
        $region23: #{tpu_custom_call.1} parent=11 // pred_region
          %s401 = ssub.s32 128, 128
          %402 = vsyncadd [#allocation11], %s401
          %s404 = sshll.u32 [#allocation10], 4
          %s405 = int_to_ptr.vmem [resolvable:$true] %s404
          %407 = dma.hbm_to_vmem [thread:$0]  %s3, 128, %s405, [#allocation11]
        $region24: #{tpu_custom_call.1} parent=11 // pred_fallthru
          _
        // Predicated region
        $region25: #{tpu_custom_call.1} parent=11 // pred_check
          %p408 = pneg %p140
        $region26: #{tpu_custom_call.1} parent=11 // pred_check_branch
          %410 = sbr.rel (%p408) target = $region28
        $region27: #{tpu_custom_call.1} parent=11 // pred_region
          _
        $region28: #{tpu_custom_call.1} parent=11 // pred_fallthru
          _
        // Predicated region
        $region29: #{tpu_custom_call.1} parent=11 // pred_check
          %p411 = pneg %p161
        $region30: #{tpu_custom_call.1} parent=11 // pred_check_branch
          %413 = sbr.rel (%p411) target = $region32
        $region31: #{tpu_custom_call.1} parent=11 // pred_region
          _
        $region32: #{tpu_custom_call.1} parent=11 // pred_fallthru
          _
        // Predicated region
        $region33: #{tpu_custom_call.1} parent=11 // pred_check
          %p414 = pneg %p182
        $region34: #{tpu_custom_call.1} parent=11 // pred_check_branch
          %416 = sbr.rel (%p414) target = $region36
        $region35: #{tpu_custom_call.1} parent=11 // pred_region
          _
        $region36: #{tpu_custom_call.1} parent=11 // pred_fallthru
          _
        // Predicated region
        $region37: #{tpu_custom_call.1} parent=11 // pred_check
          %p417 = pneg %p203
        $region38: #{tpu_custom_call.1} parent=11 // pred_check_branch
          %419 = sbr.rel (%p417) target = $region40
        $region39: #{tpu_custom_call.1} parent=11 // pred_region
          _
        $region40: #{tpu_custom_call.1} parent=11 // pred_fallthru
          _
        // Predicated region
        $region41: #{tpu_custom_call.1} parent=11 // pred_check
          %p420 = pneg %p224
        $region42: #{tpu_custom_call.1} parent=11 // pred_check_branch
          %422 = sbr.rel (%p420) target = $region44
        $region43: #{tpu_custom_call.1} parent=11 // pred_region
          %s424 = ssub.s32 256, 256
          %425 = vsyncadd [#allocation11], %s424
          %s427 = sshll.u32 [#allocation12], 4
          %s428 = int_to_ptr.vmem [resolvable:$true] %s427
          %430 = dma.hbm_to_vmem [thread:$0]  %s8, 256, %s428, [#allocation11]
        $region44: #{tpu_custom_call.1} parent=11 // pred_fallthru
          _
        // Predicated region
        $region45: #{tpu_custom_call.1} parent=11 // pred_check
          %p431 = pneg %p245
        $region46: #{tpu_custom_call.1} parent=11 // pred_check_branch
          %433 = sbr.rel (%p431) target = $region48
        $region47: #{tpu_custom_call.1} parent=11 // pred_region
          _
        $region48: #{tpu_custom_call.1} parent=11 // pred_fallthru
          _
        // Predicated region
        $region49: #{tpu_custom_call.1} parent=11 // pred_check
          %p434 = pneg %p266
        $region50: #{tpu_custom_call.1} parent=11 // pred_check_branch
          %436 = sbr.rel (%p434) target = $region52
        $region51: #{tpu_custom_call.1} parent=11 // pred_region
          %s438 = ssub.s32 512, 512
          %439 = vsyncadd [#allocation14], %s438
          %s440 = sshll.u32 [#allocation13], 4
          %s441 = int_to_ptr.vmem [resolvable:$true] %s440
          %446 = dma.hbm_to_vmem [thread:$0]  %s10, 512, %s441, [#allocation14], 256, 256, 16
        $region52: #{tpu_custom_call.1} parent=11 // pred_fallthru
          _
        // Predicated region
        $region53: #{tpu_custom_call.1} parent=11 // pred_check
          %p447 = pneg %p287
        $region54: #{tpu_custom_call.1} parent=11 // pred_check_branch
          %449 = sbr.rel (%p447) target = $region56
        $region55: #{tpu_custom_call.1} parent=11 // pred_region
          _
        $region56: #{tpu_custom_call.1} parent=11 // pred_fallthru
          _
        // Predicated region
        $region57: #{tpu_custom_call.1} parent=11 // pred_check
          %p450 = pneg %p308
        $region58: #{tpu_custom_call.1} parent=11 // pred_check_branch
          %452 = sbr.rel (%p450) target = $region60
        $region59: #{tpu_custom_call.1} parent=11 // pred_region
          %s454 = ssub.s32 4096, 4096
          %455 = vsyncadd [#allocation14], %s454
          %s456 = sshll.u32 [#allocation15], 4
          %s457 = int_to_ptr.vmem [resolvable:$true] %s456
          %462 = dma.hbm_to_vmem [thread:$0]  %s12, 4096, %s457, [#allocation14], 128, 128, 8
        $region60: #{tpu_custom_call.1} parent=11 // pred_fallthru
          _
        // Predicated region
        $region61: #{tpu_custom_call.1} parent=11 // pred_check
          %p463 = pneg %p329
        $region62: #{tpu_custom_call.1} parent=11 // pred_check_branch
          %465 = sbr.rel (%p463) target = $region64
        $region63: #{tpu_custom_call.1} parent=11 // pred_region
          %s467 = ssub.s32 2048, 2048
          %468 = vsyncadd [#allocation17], %s467
          %s469 = sshll.u32 [#allocation16], 4
          %s470 = int_to_ptr.vmem [resolvable:$true] %s469
          %475 = dma.hbm_to_vmem [thread:$0]  %s13, 2048, %s470, [#allocation17], 128, 128, 8
        $region64: #{tpu_custom_call.1} parent=11 // pred_fallthru
          _
        // Predicated region
        $region65: #{tpu_custom_call.1} parent=11 // pred_check
          %p476 = pneg %p350
        $region66: #{tpu_custom_call.1} parent=11 // pred_check_branch
          %478 = sbr.rel (%p476) target = $region68
        $region67: #{tpu_custom_call.1} parent=11 // pred_region
          _
        $region68: #{tpu_custom_call.1} parent=11 // pred_fallthru
          _
      $region12: #{tpu_custom_call.1} parent=5 // pred_fallthru
        _
      %p479 = scmp.lt.s32.totalorder %s30, 2
      // Predicated region
      $region69: #{tpu_custom_call.1} parent=5 // pred_check
        %p480 = pneg %p479
      $region70: #{tpu_custom_call.1} parent=5 // pred_check_branch
        %482 = sbr.rel (%p480) target = $region72
      $region71: #{tpu_custom_call.1} parent=5 // pred_region
        // Predicated region
        $region73: #{tpu_custom_call.1} parent=71 // pred_check
          %p483 = pneg %p50
        $region74: #{tpu_custom_call.1} parent=71 // pred_check_branch
          %485 = sbr.rel (%p483) target = $region76
        $region75: #{tpu_custom_call.1} parent=71 // pred_region
          %s486 = sand.u32 %s40, 1
          %s487 = scalar_lea.sflag [#allocation8], %s486
          %s488 = sand.u32 %s40, 1
          %s489 = smul.addr %s488, 16
          %s490 = scalar_lea.vmem [#allocation7], %s489
          %s492 = ssub.s32 256, 256
          %493 = vsyncadd %s487, %s492
          %s494 = smul.addr %s30, 2
          %s495 = smul.addr %s494, 128
          %s496 = scalar_lea.hbm %s0, %s495
          %s497 = sshll.u32 %s490, 4
          %s498 = int_to_ptr.vmem [resolvable:$true] %s497
          %503 = dma.hbm_to_vmem [thread:$0]  %s496, 256, %s498, %s487, 128, 128, 8
        $region76: #{tpu_custom_call.1} parent=71 // pred_fallthru
          _
      $region72: #{tpu_custom_call.1} parent=5 // pred_fallthru
        _
      %p504 = scmp.le.s32.totalorder 1, %s30
      %p505 = scmp.lt.s32.totalorder %s30, 3
      %p506 = pnand %p504, %p505
      %p507 = pneg %p506
      // Predicated region
      $region77: #{tpu_custom_call.1} parent=5 // pred_check
        _
      $region78: #{tpu_custom_call.1} parent=5 // pred_check_branch
        %509 = sbr.rel (%p506) target = $region80
      $region79: #{tpu_custom_call.1} parent=5 // pred_region
        %s510 = ssub.s32 %s30, 1
        %s511 = sand.u32 %s43, 1
        %s512 = scalar_lea.sflag [#allocation8], %s511
        %s513 = sand.u32 %s43, 1
        %s514 = smul.addr %s513, 16
        %s515 = scalar_lea.vmem [#allocation7], %s514
        // Predicated region
        $region81: #{tpu_custom_call.1} parent=79 // pred_check
          %p516 = pneg %p56
        $region82: #{tpu_custom_call.1} parent=79 // pred_check_branch
          %518 = sbr.rel (%p516) target = $region84
        $region83: #{tpu_custom_call.1} parent=79 // pred_region
          %519 = dma.done %s512, 256
        $region84: #{tpu_custom_call.1} parent=79 // pred_fallthru
          _
        // Predicated region
        $region85: #{tpu_custom_call.1} parent=79 // pred_check
          %p520 = pneg %p119
        $region86: #{tpu_custom_call.1} parent=79 // pred_check_branch
          %522 = sbr.rel (%p520) target = $region88
        $region87: #{tpu_custom_call.1} parent=79 // pred_region
          %523 = dma.done [#allocation11], 128
        $region88: #{tpu_custom_call.1} parent=79 // pred_fallthru
          _
        // Predicated region
        $region89: #{tpu_custom_call.1} parent=79 // pred_check
          %p524 = pneg %p224
        $region90: #{tpu_custom_call.1} parent=79 // pred_check_branch
          %526 = sbr.rel (%p524) target = $region92
        $region91: #{tpu_custom_call.1} parent=79 // pred_region
          %527 = dma.done [#allocation11], 256
        $region92: #{tpu_custom_call.1} parent=79 // pred_fallthru
          _
        // Predicated region
        $region93: #{tpu_custom_call.1} parent=79 // pred_check
          %p528 = pneg %p266
        $region94: #{tpu_custom_call.1} parent=79 // pred_check_branch
          %530 = sbr.rel (%p528) target = $region96
        $region95: #{tpu_custom_call.1} parent=79 // pred_region
          %531 = dma.done [#allocation14], 512
        $region96: #{tpu_custom_call.1} parent=79 // pred_fallthru
          _
        // Predicated region
        $region97: #{tpu_custom_call.1} parent=79 // pred_check
          %p532 = pneg %p308
        $region98: #{tpu_custom_call.1} parent=79 // pred_check_branch
          %534 = sbr.rel (%p532) target = $region100
        $region99: #{tpu_custom_call.1} parent=79 // pred_region
          %535 = dma.done [#allocation14], 4096
        $region100: #{tpu_custom_call.1} parent=79 // pred_fallthru
          _
        // Predicated region
        $region101: #{tpu_custom_call.1} parent=79 // pred_check
          %p536 = pneg %p329
        $region102: #{tpu_custom_call.1} parent=79 // pred_check_branch
          %538 = sbr.rel (%p536) target = $region104
        $region103: #{tpu_custom_call.1} parent=79 // pred_region
          %539 = dma.done [#allocation17], 2048
        $region104: #{tpu_custom_call.1} parent=79 // pred_fallthru
          _
        %s540 = sand.u32 %s43, 1
        %s541 = scalar_lea.sflag [#allocation8], %s540
        %s542 = sand.u32 %s43, 1
        %s543 = smul.addr %s542, 16
        %s544 = scalar_lea.vmem [#allocation7], %s543
        %p545 = pneg %p56
        %p546 = pneg %p53
        %p547 = pneg %p77
        %p548 = pneg %p74
        %p549 = pneg %p98
        %p550 = pneg %p95
        %p551 = pneg %p119
        %p552 = pneg %p116
        %p553 = pneg %p140
        %p554 = pneg %p137
        %p555 = pneg %p161
        %p556 = pneg %p158
        %p557 = pneg %p182
        %p558 = pneg %p179
        %p559 = pneg %p203
        %p560 = pneg %p200
        %p561 = pneg %p224
        %p562 = pneg %p221
        %p563 = pneg %p245
        %p564 = pneg %p242
        %p565 = pneg %p266
        %p566 = pneg %p263
        %p567 = pneg %p287
        %p568 = pneg %p284
        %p569 = pneg %p308
        %p570 = pneg %p305
        %p571 = pneg %p329
        %p572 = pneg %p326
        %p573 = pneg %p350
        %p574 = pneg %p347
        %p575 = pneg %p376
        %p576 = pneg %p373
        %s577 = sand.u32 %s363, 1
        %s578 = scalar_lea.sflag [#allocation9], %s577
        %s579 = sand.u32 %s363, 1
        %s580 = smul.addr %s579, 16
        %s581 = scalar_lea.vmem [#allocation18], %s580
        %v582 = vld [vmem:[%s515] sm:$0xff]
        %v583 = vld [vmem:[%s515 + $0x8] sm:$0xff]
        %v584 = vld [vmem:[%s1] sm:$0xff]
        %v585 = vld [vmem:[%s1 + $0x8] sm:$0xff]
        %v586 = vld [vmem:[%s1 + $0x10] sm:$0xff]
        %v587 = vld [vmem:[%s1 + $0x18] sm:$0xff]
        %v588 = vld [vmem:[%s1 + $0x20] sm:$0xff]
        %v589 = vld [vmem:[%s1 + $0x28] sm:$0xff]
        %v590 = vld [vmem:[%s1 + $0x30] sm:$0xff]
        %v591 = vld [vmem:[%s1 + $0x38] sm:$0xff]
        %v592 = vld [vmem:[%s1 + $0x40] sm:$0xff]
        %v593 = vld [vmem:[%s1 + $0x48] sm:$0xff]
        %v594 = vld [vmem:[%s1 + $0x50] sm:$0xff]
        %v595 = vld [vmem:[%s1 + $0x58] sm:$0xff]
        %v596 = vld [vmem:[%s1 + $0x60] sm:$0xff]
        %v597 = vld [vmem:[%s1 + $0x68] sm:$0xff]
        %v598 = vld [vmem:[%s1 + $0x70] sm:$0xff]
        %v599 = vld [vmem:[%s1 + $0x78] sm:$0xff]
        %v600 = vld [vmem:[%s1 + $0x80] sm:$0xff]
        %v601 = vld [vmem:[%s1 + $0x88] sm:$0xff]
        %v602 = vld [vmem:[%s1 + $0x90] sm:$0xff]
        %v603 = vld [vmem:[%s1 + $0x98] sm:$0xff]
        %v604 = vld [vmem:[%s1 + $0xa0] sm:$0xff]
        %v605 = vld [vmem:[%s1 + $0xa8] sm:$0xff]
        %v606 = vld [vmem:[%s1 + $0xb0] sm:$0xff]
        %v607 = vld [vmem:[%s1 + $0xb8] sm:$0xff]
        %v608 = vld [vmem:[%s1 + $0xc0] sm:$0xff]
        %v609 = vld [vmem:[%s1 + $0xc8] sm:$0xff]
        %v610 = vld [vmem:[%s1 + $0xd0] sm:$0xff]
        %v611 = vld [vmem:[%s1 + $0xd8] sm:$0xff]
        %v612 = vld [vmem:[%s1 + $0xe0] sm:$0xff]
        %v613 = vld [vmem:[%s1 + $0xe8] sm:$0xff]
        %v614 = vld [vmem:[%s1 + $0xf0] sm:$0xff]
        %v615 = vld [vmem:[%s1 + $0xf8] sm:$0xff]
        %616 = vmatprep.subr.mxu0 %v585
        %617 = vmatpush1.msra.mxu0 %v584
        %618 = vmatprep.subr.mxu0 %v587
        %619 = vmatpush1.msra.mxu0 %v586
        %620 = vmatprep.subr.mxu0 %v589
        %621 = vmatpush1.msra.mxu0 %v588
        %622 = vmatprep.subr.mxu0 %v591
        %623 = vmatpush1.msra.mxu0 %v590
        %624 = vmatprep.subr.mxu0 %v593
        %625 = vmatpush1.msra.mxu0 %v592
        %626 = vmatprep.subr.mxu0 %v595
        %627 = vmatpush1.msra.mxu0 %v594
        %628 = vmatprep.subr.mxu0 %v597
        %629 = vmatpush1.msra.mxu0 %v596
        %630 = vmatprep.subr.mxu0 %v599
        %631 = vmatpush1.msra.mxu0 %v598
        %632 = vmatprep.subr.mxu0 %v601
        %633 = vmatpush1.msra.mxu0 %v600
        %634 = vmatprep.subr.mxu0 %v603
        %635 = vmatpush1.msra.mxu0 %v602
        %636 = vmatprep.subr.mxu0 %v605
        %637 = vmatpush1.msra.mxu0 %v604
        %638 = vmatprep.subr.mxu0 %v607
        %639 = vmatpush1.msra.mxu0 %v606
        %640 = vmatprep.subr.mxu0 %v609
        %641 = vmatpush1.msra.mxu0 %v608
        %642 = vmatprep.subr.mxu0 %v611
        %643 = vmatpush1.msra.mxu0 %v610
        %644 = vmatprep.subr.mxu0 %v613
        %645 = vmatpush1.msra.mxu0 %v612
        %646 = vmatprep.subr.mxu0 %v615
        %647 = vmatpush1.msra.mxu0 %v614
        %648 = vmatprep.subr.mxu0 0.0
        %649 = vmatpush1.msra.mxu0 0.0
        %650 = vmatprep.subr.mxu0 0.0
        %651 = vmatpush1.msra.mxu0 0.0
        %652 = vmatprep.subr.mxu0 0.0
        %653 = vmatpush1.msra.mxu0 0.0
        %654 = vmatprep.subr.mxu0 0.0
        %655 = vmatpush1.msra.mxu0 0.0
        %656 = vmatprep.subr.mxu0 0.0
        %657 = vmatpush1.msra.mxu0 0.0
        %658 = vmatprep.subr.mxu0 0.0
        %659 = vmatpush1.msra.mxu0 0.0
        %660 = vmatprep.subr.mxu0 0.0
        %661 = vmatpush1.msra.mxu0 0.0
        %662 = vmatprep.subr.mxu0 0.0
        %663 = vmatpush1.msra.mxu0 0.0
        %664 = vmatprep.subr.mxu0 0.0
        %665 = vmatpush1.msra.mxu0 0.0
        %666 = vmatprep.subr.mxu0 0.0
        %667 = vmatpush1.msra.mxu0 0.0
        %668 = vmatprep.subr.mxu0 0.0
        %669 = vmatpush1.msra.mxu0 0.0
        %670 = vmatprep.subr.mxu0 0.0
        %671 = vmatpush1.msra.mxu0 0.0
        %672 = vmatprep.subr.mxu0 0.0
        %673 = vmatpush1.msra.mxu0 0.0
        %674 = vmatprep.subr.mxu0 0.0
        %675 = vmatpush1.msra.mxu0 0.0
        %676 = vmatprep.subr.mxu0 0.0
        %677 = vmatpush1.msra.mxu0 0.0
        %678 = vmatprep.subr.mxu0 0.0
        %679 = vmatpush1.msra.mxu0 0.0
        %680 = vmatprep.mubr.f32.mxu0 0.0
        %681 = vmatmul.mubr.f32.gmra.mrb[0].mxu0 %v582
        %v682 = vpop.f32.mrb[0].mxu0
        %v683 = vadd.f32 0.0, %v682
        %v684 = vpop.f32.mrb[0].mxu0
        %v685 = vadd.f32 0.0, %v684
        %686 = vmatprep.mubr.f32.mxu0 0.0
        %687 = vmatmul.mubr.f32.gmra.mrb[0].mxu0 %v583
        %v688 = vpop.f32.mrb[0].mxu0
        %v689 = vadd.f32 0.0, %v688
        %v690 = vpop.f32.mrb[0].mxu0
        %v691 = vadd.f32 0.0, %v690
        %692 = vdwg.mxu0
        %v693 = vld [vmem:[%s2] sm:$0xff]
        %v694 = vld [vmem:[%s2 + $0x8] sm:$0xff]
        %v695 = vld [vmem:[%s2 + $0x10] sm:$0xff]
        %v696 = vld [vmem:[%s2 + $0x18] sm:$0xff]
        %v697 = vld [vmem:[%s2 + $0x20] sm:$0xff]
        %v698 = vld [vmem:[%s2 + $0x28] sm:$0xff]
        %v699 = vld [vmem:[%s2 + $0x30] sm:$0xff]
        %v700 = vld [vmem:[%s2 + $0x38] sm:$0xff]
        %v701 = vld [vmem:[%s2 + $0x40] sm:$0xff]
        %v702 = vld [vmem:[%s2 + $0x48] sm:$0xff]
        %v703 = vld [vmem:[%s2 + $0x50] sm:$0xff]
        %v704 = vld [vmem:[%s2 + $0x58] sm:$0xff]
        %v705 = vld [vmem:[%s2 + $0x60] sm:$0xff]
        %v706 = vld [vmem:[%s2 + $0x68] sm:$0xff]
        %v707 = vld [vmem:[%s2 + $0x70] sm:$0xff]
        %v708 = vld [vmem:[%s2 + $0x78] sm:$0xff]
        %v709 = vld [vmem:[%s2 + $0x80] sm:$0xff]
        %v710 = vld [vmem:[%s2 + $0x88] sm:$0xff]
        %v711 = vld [vmem:[%s2 + $0x90] sm:$0xff]
        %v712 = vld [vmem:[%s2 + $0x98] sm:$0xff]
        %v713 = vld [vmem:[%s2 + $0xa0] sm:$0xff]
        %v714 = vld [vmem:[%s2 + $0xa8] sm:$0xff]
        %v715 = vld [vmem:[%s2 + $0xb0] sm:$0xff]
        %v716 = vld [vmem:[%s2 + $0xb8] sm:$0xff]
        %v717 = vld [vmem:[%s2 + $0xc0] sm:$0xff]
        %v718 = vld [vmem:[%s2 + $0xc8] sm:$0xff]
        %v719 = vld [vmem:[%s2 + $0xd0] sm:$0xff]
        %v720 = vld [vmem:[%s2 + $0xd8] sm:$0xff]
        %v721 = vld [vmem:[%s2 + $0xe0] sm:$0xff]
        %v722 = vld [vmem:[%s2 + $0xe8] sm:$0xff]
        %v723 = vld [vmem:[%s2 + $0xf0] sm:$0xff]
        %v724 = vld [vmem:[%s2 + $0xf8] sm:$0xff]
        %725 = vmatprep.subr.mxu0 %v694
        %726 = vmatpush1.msra.mxu0 %v693
        %727 = vmatprep.subr.mxu0 %v696
        %728 = vmatpush1.msra.mxu0 %v695
        %729 = vmatprep.subr.mxu0 %v698
        %730 = vmatpush1.msra.mxu0 %v697
        %731 = vmatprep.subr.mxu0 %v700
        %732 = vmatpush1.msra.mxu0 %v699
        %733 = vmatprep.subr.mxu0 %v702
        %734 = vmatpush1.msra.mxu0 %v701
        %735 = vmatprep.subr.mxu0 %v704
        %736 = vmatpush1.msra.mxu0 %v703
        %737 = vmatprep.subr.mxu0 %v706
        %738 = vmatpush1.msra.mxu0 %v705
        %739 = vmatprep.subr.mxu0 %v708
        %740 = vmatpush1.msra.mxu0 %v707
        %741 = vmatprep.subr.mxu0 %v710
        %742 = vmatpush1.msra.mxu0 %v709
        %743 = vmatprep.subr.mxu0 %v712
        %744 = vmatpush1.msra.mxu0 %v711
        %745 = vmatprep.subr.mxu0 %v714
        %746 = vmatpush1.msra.mxu0 %v713
        %747 = vmatprep.subr.mxu0 %v716
        %748 = vmatpush1.msra.mxu0 %v715
        %749 = vmatprep.subr.mxu0 %v718
        %750 = vmatpush1.msra.mxu0 %v717
        %751 = vmatprep.subr.mxu0 %v720
        %752 = vmatpush1.msra.mxu0 %v719
        %753 = vmatprep.subr.mxu0 %v722
        %754 = vmatpush1.msra.mxu0 %v721
        %755 = vmatprep.subr.mxu0 %v724
        %756 = vmatpush1.msra.mxu0 %v723
        %757 = vmatprep.subr.mxu0 0.0
        %758 = vmatpush1.msra.mxu0 0.0
        %759 = vmatprep.subr.mxu0 0.0
        %760 = vmatpush1.msra.mxu0 0.0
        %761 = vmatprep.subr.mxu0 0.0
        %762 = vmatpush1.msra.mxu0 0.0
        %763 = vmatprep.subr.mxu0 0.0
        %764 = vmatpush1.msra.mxu0 0.0
        %765 = vmatprep.subr.mxu0 0.0
        %766 = vmatpush1.msra.mxu0 0.0
        %767 = vmatprep.subr.mxu0 0.0
        %768 = vmatpush1.msra.mxu0 0.0
        %769 = vmatprep.subr.mxu0 0.0
        %770 = vmatpush1.msra.mxu0 0.0
        %771 = vmatprep.subr.mxu0 0.0
        %772 = vmatpush1.msra.mxu0 0.0
        %773 = vmatprep.subr.mxu0 0.0
        %774 = vmatpush1.msra.mxu0 0.0
        %775 = vmatprep.subr.mxu0 0.0
        %776 = vmatpush1.msra.mxu0 0.0
        %777 = vmatprep.subr.mxu0 0.0
        %778 = vmatpush1.msra.mxu0 0.0
        %779 = vmatprep.subr.mxu0 0.0
        %780 = vmatpush1.msra.mxu0 0.0
        %781 = vmatprep.subr.mxu0 0.0
        %782 = vmatpush1.msra.mxu0 0.0
        %783 = vmatprep.subr.mxu0 0.0
        %784 = vmatpush1.msra.mxu0 0.0
        %785 = vmatprep.subr.mxu0 0.0
        %786 = vmatpush1.msra.mxu0 0.0
        %787 = vmatprep.subr.mxu0 0.0
        %788 = vmatpush1.msra.mxu0 0.0
        %789 = vmatprep.mubr.f32.mxu0 0.0
        %790 = vmatmul.mubr.f32.gmra.mrb[0].mxu0 %v582
        %v791 = vpop.f32.mrb[0].mxu0
        %v792 = vadd.f32 0.0, %v791
        %v793 = vpop.f32.mrb[0].mxu0
        %v794 = vadd.f32 0.0, %v793
        %795 = vmatprep.mubr.f32.mxu0 0.0
        %796 = vmatmul.mubr.f32.gmra.mrb[0].mxu0 %v583
        %v797 = vpop.f32.mrb[0].mxu0
        %v798 = vadd.f32 0.0, %v797
        %v799 = vpop.f32.mrb[0].mxu0
        %v800 = vadd.f32 0.0, %v799
        %801 = vdwg.mxu0
        %v802 = vld [vmem:[%s4] sm:$0x3]
        %s803 = scalar_lea.vmem [#allocation10], 3
        %v804 = vld [vmem:[%s803] ss:$4 sm:$0x3]
        %v806 = vlaneseq
        %v807 = vshrl.u32 %v806, 7
        %v808 = vsub.s32 0, %v807
        %v809 = vrot.slane %v804, %v808
        %v810 = vlaneseq
        %v811 = vshrl.u32 %v810, 7
        %v812 = vsub.s32 1, %v811
        %v813 = vrot.slane %v804, %v812
        %v816 = vmul.f32 %v809, %v683
        %v817 = vmul.f32 %v813, %v685
        %v818 = vmul.f32 %v809, %v689
        %v819 = vmul.f32 %v813, %v691
        %v821 = vlaneseq
        %v822 = vshrl.u32 %v821, 7
        %v823 = vsub.s32 0, %v822
        %v824 = vrot.slane %v802, %v823
        %v825 = vlaneseq
        %v826 = vshrl.u32 %v825, 7
        %v827 = vsub.s32 1, %v826
        %v828 = vrot.slane %v802, %v827
        %v831 = vadd.f32 %v824, %v816
        %v832 = vadd.f32 %v828, %v817
        %v833 = vadd.f32 %v824, %v818
        %v834 = vadd.f32 %v828, %v819
        %vm839 = vcmask 1040384
        %v840 = vrot.slane %v683, 7
        %v841 = vrot.slane %v685, 7
        %v842 = vrot.slane %v689, 7
        %v843 = vsel %vm839, %v840, %v842
        %v844 = vrot.slane %v691, 7
        %v845 = vsel %vm839, %v841, %v844
        %v850 = vsel %vm839, 0.0, %v840
        %v851 = vsel %vm839, 0.0, %v841
        %s852 = scalar_lea.vmem [#allocation10], 2
        %v853 = vld [vmem:[%s852] ss:$4 sm:$0x3]
        %v855 = vlaneseq
        %v856 = vshrl.u32 %v855, 7
        %v857 = vsub.s32 0, %v856
        %v858 = vrot.slane %v853, %v857
        %v859 = vlaneseq
        %v860 = vshrl.u32 %v859, 7
        %v861 = vsub.s32 1, %v860
        %v862 = vrot.slane %v853, %v861
        %v865 = vmul.f32 %v858, %v850
        %v866 = vmul.f32 %v862, %v851
        %v867 = vmul.f32 %v858, %v843
        %v868 = vmul.f32 %v862, %v845
        %v869 = vadd.f32 %v831, %v865
        %v870 = vadd.f32 %v832, %v866
        %v871 = vadd.f32 %v833, %v867
        %v872 = vadd.f32 %v834, %v868
        %vm873 = vcmask 1041408
        %v874 = vrot.slane %v683, 6
        %v875 = vrot.slane %v685, 6
        %v876 = vrot.slane %v689, 6
        %v877 = vsel %vm873, %v874, %v876
        %v878 = vrot.slane %v691, 6
        %v879 = vsel %vm873, %v875, %v878
        %v884 = vsel %vm873, 0.0, %v874
        %v885 = vsel %vm873, 0.0, %v875
        %s886 = scalar_lea.vmem [#allocation10], 1
        %v887 = vld [vmem:[%s886] ss:$4 sm:$0x3]
        %v889 = vlaneseq
        %v890 = vshrl.u32 %v889, 7
        %v891 = vsub.s32 0, %v890
        %v892 = vrot.slane %v887, %v891
        %v893 = vlaneseq
        %v894 = vshrl.u32 %v893, 7
        %v895 = vsub.s32 1, %v894
        %v896 = vrot.slane %v887, %v895
        %v899 = vmul.f32 %v892, %v884
        %v900 = vmul.f32 %v896, %v885
        %v901 = vmul.f32 %v892, %v877
        %v902 = vmul.f32 %v896, %v879
        %v903 = vadd.f32 %v869, %v899
        %v904 = vadd.f32 %v870, %v900
        %v905 = vadd.f32 %v871, %v901
        %v906 = vadd.f32 %v872, %v902
        %vm907 = vcmask 1042432
        %v908 = vrot.slane %v683, 5
        %v909 = vrot.slane %v685, 5
        %v910 = vrot.slane %v689, 5
        %v911 = vsel %vm907, %v908, %v910
        %v912 = vrot.slane %v691, 5
        %v913 = vsel %vm907, %v909, %v912
        %v918 = vsel %vm907, 0.0, %v908
        %v919 = vsel %vm907, 0.0, %v909
        %v920 = vld [vmem:[#allocation10] ss:$4 sm:$0x3]
        %v922 = vlaneseq
        %v923 = vshrl.u32 %v922, 7
        %v924 = vsub.s32 0, %v923
        %v925 = vrot.slane %v920, %v924
        %v926 = vlaneseq
        %v927 = vshrl.u32 %v926, 7
        %v928 = vsub.s32 1, %v927
        %v929 = vrot.slane %v920, %v928
        %v932 = vmul.f32 %v925, %v918
        %v933 = vmul.f32 %v929, %v919
        %v934 = vmul.f32 %v925, %v911
        %v935 = vmul.f32 %v929, %v913
        %v936 = vadd.f32 %v903, %v932
        %v937 = vadd.f32 %v904, %v933
        %v938 = vadd.f32 %v905, %v934
        %v939 = vadd.f32 %v906, %v935
        %v940 = vsub.f32 0.0, %v936
        %v941 = vsub.f32 0.0, %v937
        %v942 = vsub.f32 0.0, %v938
        %v943 = vsub.f32 0.0, %v939
        %v944 = vmul.f32 %v940, 1.442695
        %v945 = vpow.pop %v944
        %v946 = vmul.f32 %v941, 1.442695
        %v947 = vpow.pop %v946
        %v948 = vmul.f32 %v942, 1.442695
        %v949 = vpow.pop %v948
        %v950 = vmul.f32 %v943, 1.442695
        %v951 = vpow.pop %v950
        %v952 = vadd.f32 %v945, 1.0
        %v953 = vadd.f32 %v947, 1.0
        %v954 = vadd.f32 %v949, 1.0
        %v955 = vadd.f32 %v951, 1.0
        %v956 = vrcp.pop %v952
        %v957 = vrcp.pop %v953
        %v958 = vrcp.pop %v954
        %v959 = vrcp.pop %v955
        %v960 = vmul.f32 %v936, %v956
        %v961 = vmul.f32 %v937, %v957
        %v962 = vmul.f32 %v938, %v958
        %v963 = vmul.f32 %v939, %v959
        %v964 = vld [vmem:[%s5] sm:$0xff]
        %v965 = vld [vmem:[%s5 + $0x8] sm:$0xff]
        %v966 = vld [vmem:[%s5 + $0x10] sm:$0xff]
        %v967 = vld [vmem:[%s5 + $0x18] sm:$0xff]
        %v968 = vld [vmem:[%s5 + $0x20] sm:$0xff]
        %v969 = vld [vmem:[%s5 + $0x28] sm:$0xff]
        %v970 = vld [vmem:[%s5 + $0x30] sm:$0xff]
        %v971 = vld [vmem:[%s5 + $0x38] sm:$0xff]
        %v972 = vld [vmem:[%s5 + $0x40] sm:$0xff]
        %v973 = vld [vmem:[%s5 + $0x48] sm:$0xff]
        %v974 = vld [vmem:[%s5 + $0x50] sm:$0xff]
        %v975 = vld [vmem:[%s5 + $0x58] sm:$0xff]
        %v976 = vld [vmem:[%s5 + $0x60] sm:$0xff]
        %v977 = vld [vmem:[%s5 + $0x68] sm:$0xff]
        %v978 = vld [vmem:[%s5 + $0x70] sm:$0xff]
        %v979 = vld [vmem:[%s5 + $0x78] sm:$0xff]
        %v980 = vld [vmem:[%s5 + $0x80] sm:$0xff]
        %v981 = vld [vmem:[%s5 + $0x88] sm:$0xff]
        %v982 = vld [vmem:[%s5 + $0x90] sm:$0xff]
        %v983 = vld [vmem:[%s5 + $0x98] sm:$0xff]
        %v984 = vld [vmem:[%s5 + $0xa0] sm:$0xff]
        %v985 = vld [vmem:[%s5 + $0xa8] sm:$0xff]
        %v986 = vld [vmem:[%s5 + $0xb0] sm:$0xff]
        %v987 = vld [vmem:[%s5 + $0xb8] sm:$0xff]
        %v988 = vld [vmem:[%s5 + $0xc0] sm:$0xff]
        %v989 = vld [vmem:[%s5 + $0xc8] sm:$0xff]
        %v990 = vld [vmem:[%s5 + $0xd0] sm:$0xff]
        %v991 = vld [vmem:[%s5 + $0xd8] sm:$0xff]
        %v992 = vld [vmem:[%s5 + $0xe0] sm:$0xff]
        %v993 = vld [vmem:[%s5 + $0xe8] sm:$0xff]
        %v994 = vld [vmem:[%s5 + $0xf0] sm:$0xff]
        %v995 = vld [vmem:[%s5 + $0xf8] sm:$0xff]
        %996 = vmatprep.subr.mxu0 0.0
        %997 = vmatpush1.msra.mxu0 %v964
        %998 = vmatprep.subr.mxu0 0.0
        %999 = vmatpush1.msra.mxu0 %v965
        %1000 = vmatprep.subr.mxu0 0.0
        %1001 = vmatpush1.msra.mxu0 %v966
        %1002 = vmatprep.subr.mxu0 0.0
        %1003 = vmatpush1.msra.mxu0 %v967
        %1004 = vmatprep.subr.mxu0 0.0
        %1005 = vmatpush1.msra.mxu0 %v968
        %1006 = vmatprep.subr.mxu0 0.0
        %1007 = vmatpush1.msra.mxu0 %v969
        %1008 = vmatprep.subr.mxu0 0.0
        %1009 = vmatpush1.msra.mxu0 %v970
        %1010 = vmatprep.subr.mxu0 0.0
        %1011 = vmatpush1.msra.mxu0 %v971
        %1012 = vmatprep.subr.mxu0 0.0
        %1013 = vmatpush1.msra.mxu0 %v972
        %1014 = vmatprep.subr.mxu0 0.0
        %1015 = vmatpush1.msra.mxu0 %v973
        %1016 = vmatprep.subr.mxu0 0.0
        %1017 = vmatpush1.msra.mxu0 %v974
        %1018 = vmatprep.subr.mxu0 0.0
        %1019 = vmatpush1.msra.mxu0 %v975
        %1020 = vmatprep.subr.mxu0 0.0
        %1021 = vmatpush1.msra.mxu0 %v976
        %1022 = vmatprep.subr.mxu0 0.0
        %1023 = vmatpush1.msra.mxu0 %v977
        %1024 = vmatprep.subr.mxu0 0.0
        %1025 = vmatpush1.msra.mxu0 %v978
        %1026 = vmatprep.subr.mxu0 0.0
        %1027 = vmatpush1.msra.mxu0 %v979
        %1028 = vmatprep.subr.mxu0 0.0
        %1029 = vmatpush1.msra.mxu0 %v980
        %1030 = vmatprep.subr.mxu0 0.0
        %1031 = vmatpush1.msra.mxu0 %v981
        %1032 = vmatprep.subr.mxu0 0.0
        %1033 = vmatpush1.msra.mxu0 %v982
        %1034 = vmatprep.subr.mxu0 0.0
        %1035 = vmatpush1.msra.mxu0 %v983
        %1036 = vmatprep.subr.mxu0 0.0
        %1037 = vmatpush1.msra.mxu0 %v984
        %1038 = vmatprep.subr.mxu0 0.0
        %1039 = vmatpush1.msra.mxu0 %v985
        %1040 = vmatprep.subr.mxu0 0.0
        %1041 = vmatpush1.msra.mxu0 %v986
        %1042 = vmatprep.subr.mxu0 0.0
        %1043 = vmatpush1.msra.mxu0 %v987
        %1044 = vmatprep.subr.mxu0 0.0
        %1045 = vmatpush1.msra.mxu0 %v988
        %1046 = vmatprep.subr.mxu0 0.0
        %1047 = vmatpush1.msra.mxu0 %v989
        %1048 = vmatprep.subr.mxu0 0.0
        %1049 = vmatpush1.msra.mxu0 %v990
        %1050 = vmatprep.subr.mxu0 0.0
        %1051 = vmatpush1.msra.mxu0 %v991
        %1052 = vmatprep.subr.mxu0 0.0
        %1053 = vmatpush1.msra.mxu0 %v992
        %1054 = vmatprep.subr.mxu0 0.0
        %1055 = vmatpush1.msra.mxu0 %v993
        %1056 = vmatprep.subr.mxu0 0.0
        %1057 = vmatpush1.msra.mxu0 %v994
        %1058 = vmatprep.subr.mxu0 0.0
        %1059 = vmatpush1.msra.mxu0 %v995
        %1060 = vmatprep.mubr.f32.mxu0 %v961
        %1061 = vmatmul.mubr.f32.gmra.mrb[0].mxu0 %v960
        %v1062 = vpop.f32.mrb[0].mxu0
        %v1063 = vadd.f32 0.0, %v1062
        %v1064 = vpop.f32.mrb[0].mxu0
        %1065 = vmatprep.mubr.f32.mxu0 %v963
        %1066 = vmatmul.mubr.f32.gmra.mrb[0].mxu0 %v962
        %v1067 = vpop.f32.mrb[0].mxu0
        %v1068 = vadd.f32 0.0, %v1067
        %v1069 = vpop.f32.mrb[0].mxu0
        %1070 = vdwg.mxu0
        %v1071 = vld [vmem:[%s7] sm:$0xff]
        %v1072 = vld [vmem:[%s7 + $0x8] sm:$0xff]
        %v1073 = vld [vmem:[%s7 + $0x10] sm:$0xff]
        %v1074 = vld [vmem:[%s7 + $0x18] sm:$0xff]
        %v1075 = vld [vmem:[%s7 + $0x20] sm:$0xff]
        %v1076 = vld [vmem:[%s7 + $0x28] sm:$0xff]
        %v1077 = vld [vmem:[%s7 + $0x30] sm:$0xff]
        %v1078 = vld [vmem:[%s7 + $0x38] sm:$0xff]
        %v1079 = vld [vmem:[%s7 + $0x40] sm:$0xff]
        %v1080 = vld [vmem:[%s7 + $0x48] sm:$0xff]
        %v1081 = vld [vmem:[%s7 + $0x50] sm:$0xff]
        %v1082 = vld [vmem:[%s7 + $0x58] sm:$0xff]
        %v1083 = vld [vmem:[%s7 + $0x60] sm:$0xff]
        %v1084 = vld [vmem:[%s7 + $0x68] sm:$0xff]
        %v1085 = vld [vmem:[%s7 + $0x70] sm:$0xff]
        %v1086 = vld [vmem:[%s7 + $0x78] sm:$0xff]
        %v1087 = vld [vmem:[%s7 + $0x80] sm:$0xff]
        %v1088 = vld [vmem:[%s7 + $0x88] sm:$0xff]
        %v1089 = vld [vmem:[%s7 + $0x90] sm:$0xff]
        %v1090 = vld [vmem:[%s7 + $0x98] sm:$0xff]
        %v1091 = vld [vmem:[%s7 + $0xa0] sm:$0xff]
        %v1092 = vld [vmem:[%s7 + $0xa8] sm:$0xff]
        %v1093 = vld [vmem:[%s7 + $0xb0] sm:$0xff]
        %v1094 = vld [vmem:[%s7 + $0xb8] sm:$0xff]
        %v1095 = vld [vmem:[%s7 + $0xc0] sm:$0xff]
        %v1096 = vld [vmem:[%s7 + $0xc8] sm:$0xff]
        %v1097 = vld [vmem:[%s7 + $0xd0] sm:$0xff]
        %v1098 = vld [vmem:[%s7 + $0xd8] sm:$0xff]
        %v1099 = vld [vmem:[%s7 + $0xe0] sm:$0xff]
        %v1100 = vld [vmem:[%s7 + $0xe8] sm:$0xff]
        %v1101 = vld [vmem:[%s7 + $0xf0] sm:$0xff]
        %v1102 = vld [vmem:[%s7 + $0xf8] sm:$0xff]
        %1103 = vmatprep.subr.mxu0 0.0
        %1104 = vmatpush1.msra.mxu0 %v1071
        %1105 = vmatprep.subr.mxu0 0.0
        %1106 = vmatpush1.msra.mxu0 %v1072
        %1107 = vmatprep.subr.mxu0 0.0
        %1108 = vmatpush1.msra.mxu0 %v1073
        %1109 = vmatprep.subr.mxu0 0.0
        %1110 = vmatpush1.msra.mxu0 %v1074
        %1111 = vmatprep.subr.mxu0 0.0
        %1112 = vmatpush1.msra.mxu0 %v1075
        %1113 = vmatprep.subr.mxu0 0.0
        %1114 = vmatpush1.msra.mxu0 %v1076
        %1115 = vmatprep.subr.mxu0 0.0
        %1116 = vmatpush1.msra.mxu0 %v1077
        %1117 = vmatprep.subr.mxu0 0.0
        %1118 = vmatpush1.msra.mxu0 %v1078
        %1119 = vmatprep.subr.mxu0 0.0
        %1120 = vmatpush1.msra.mxu0 %v1079
        %1121 = vmatprep.subr.mxu0 0.0
        %1122 = vmatpush1.msra.mxu0 %v1080
        %1123 = vmatprep.subr.mxu0 0.0
        %1124 = vmatpush1.msra.mxu0 %v1081
        %1125 = vmatprep.subr.mxu0 0.0
        %1126 = vmatpush1.msra.mxu0 %v1082
        %1127 = vmatprep.subr.mxu0 0.0
        %1128 = vmatpush1.msra.mxu0 %v1083
        %1129 = vmatprep.subr.mxu0 0.0
        %1130 = vmatpush1.msra.mxu0 %v1084
        %1131 = vmatprep.subr.mxu0 0.0
        %1132 = vmatpush1.msra.mxu0 %v1085
        %1133 = vmatprep.subr.mxu0 0.0
        %1134 = vmatpush1.msra.mxu0 %v1086
        %1135 = vmatprep.subr.mxu0 0.0
        %1136 = vmatpush1.msra.mxu0 %v1087
        %1137 = vmatprep.subr.mxu0 0.0
        %1138 = vmatpush1.msra.mxu0 %v1088
        %1139 = vmatprep.subr.mxu0 0.0
        %1140 = vmatpush1.msra.mxu0 %v1089
        %1141 = vmatprep.subr.mxu0 0.0
        %1142 = vmatpush1.msra.mxu0 %v1090
        %1143 = vmatprep.subr.mxu0 0.0
        %1144 = vmatpush1.msra.mxu0 %v1091
        %1145 = vmatprep.subr.mxu0 0.0
        %1146 = vmatpush1.msra.mxu0 %v1092
        %1147 = vmatprep.subr.mxu0 0.0
        %1148 = vmatpush1.msra.mxu0 %v1093
        %1149 = vmatprep.subr.mxu0 0.0
        %1150 = vmatpush1.msra.mxu0 %v1094
        %1151 = vmatprep.subr.mxu0 0.0
        %1152 = vmatpush1.msra.mxu0 %v1095
        %1153 = vmatprep.subr.mxu0 0.0
        %1154 = vmatpush1.msra.mxu0 %v1096
        %1155 = vmatprep.subr.mxu0 0.0
        %1156 = vmatpush1.msra.mxu0 %v1097
        %1157 = vmatprep.subr.mxu0 0.0
        %1158 = vmatpush1.msra.mxu0 %v1098
        %1159 = vmatprep.subr.mxu0 0.0
        %1160 = vmatpush1.msra.mxu0 %v1099
        %1161 = vmatprep.subr.mxu0 0.0
        %1162 = vmatpush1.msra.mxu0 %v1100
        %1163 = vmatprep.subr.mxu0 0.0
        %1164 = vmatpush1.msra.mxu0 %v1101
        %1165 = vmatprep.subr.mxu0 0.0
        %1166 = vmatpush1.msra.mxu0 %v1102
        %1167 = vmatprep.mubr.f32.mxu0 %v961
        %1168 = vmatmul.mubr.f32.gmra.mrb[0].mxu0 %v960
        %v1169 = vpop.f32.mrb[0].mxu0
        %v1170 = vadd.f32 0.0, %v1169
        %v1171 = vpop.f32.mrb[0].mxu0
        %1172 = vmatprep.mubr.f32.mxu0 %v963
        %1173 = vmatmul.mubr.f32.gmra.mrb[0].mxu0 %v962
        %v1174 = vpop.f32.mrb[0].mxu0
        %v1175 = vadd.f32 0.0, %v1174
        %v1176 = vpop.f32.mrb[0].mxu0
        %1177 = vdwg.mxu0
        %v1178 = vld [vmem:[#allocation12] sm:$0xff]
        %v1179 = vld [vmem:[#allocation12 + $0x8] sm:$0xff]
        %v1180 = vld [vmem:[%s9] sm:$0x3]
        %v1182 = vlaneseq
        %v1183 = vshrl.u32 %v1182, 7
        %v1184 = vsub.s32 0, %v1183
        %v1185 = vrot.slane %v1180, %v1184
        %v1186 = vlaneseq
        %v1187 = vshrl.u32 %v1186, 7
        %v1188 = vsub.s32 1, %v1187
        %v1189 = vrot.slane %v1180, %v1188
        %vm1192 = vcmask 64512
        %v1194 = vsel %vm1192, %v1063, 0
        %v1197 = vsel %vm1192, %v1068, 0
        %1199 = vmatprep.subr.mxu0 %v1179
        %1200 = vmatpush1.msra.mxu0 %v1178
        %1201 = vmatprep.subr.mxu0 0.0
        %1202 = vmatpush1.msra.mxu0 0.0
        %1203 = vmatprep.subr.mxu0 0.0
        %1204 = vmatpush1.msra.mxu0 0.0
        %1205 = vmatprep.subr.mxu0 0.0
        %1206 = vmatpush1.msra.mxu0 0.0
        %1207 = vmatprep.subr.mxu0 0.0
        %1208 = vmatpush1.msra.mxu0 0.0
        %1209 = vmatprep.subr.mxu0 0.0
        %1210 = vmatpush1.msra.mxu0 0.0
        %1211 = vmatprep.subr.mxu0 0.0
        %1212 = vmatpush1.msra.mxu0 0.0
        %1213 = vmatprep.subr.mxu0 0.0
        %1214 = vmatpush1.msra.mxu0 0.0
        %1215 = vmatprep.subr.mxu0 0.0
        %1216 = vmatpush1.msra.mxu0 0.0
        %1217 = vmatprep.subr.mxu0 0.0
        %1218 = vmatpush1.msra.mxu0 0.0
        %1219 = vmatprep.subr.mxu0 0.0
        %1220 = vmatpush1.msra.mxu0 0.0
        %1221 = vmatprep.subr.mxu0 0.0
        %1222 = vmatpush1.msra.mxu0 0.0
        %1223 = vmatprep.subr.mxu0 0.0
        %1224 = vmatpush1.msra.mxu0 0.0
        %1225 = vmatprep.subr.mxu0 0.0
        %1226 = vmatpush1.msra.mxu0 0.0
        %1227 = vmatprep.subr.mxu0 0.0
        %1228 = vmatpush1.msra.mxu0 0.0
        %1229 = vmatprep.subr.mxu0 0.0
        %1230 = vmatpush1.msra.mxu0 0.0
        %1231 = vmatprep.subr.mxu0 0.0
        %1232 = vmatpush1.msra.mxu0 0.0
        %1233 = vmatprep.subr.mxu0 0.0
        %1234 = vmatpush1.msra.mxu0 0.0
        %1235 = vmatprep.subr.mxu0 0.0
        %1236 = vmatpush1.msra.mxu0 0.0
        %1237 = vmatprep.subr.mxu0 0.0
        %1238 = vmatpush1.msra.mxu0 0.0
        %1239 = vmatprep.subr.mxu0 0.0
        %1240 = vmatpush1.msra.mxu0 0.0
        %1241 = vmatprep.subr.mxu0 0.0
        %1242 = vmatpush1.msra.mxu0 0.0
        %1243 = vmatprep.subr.mxu0 0.0
        %1244 = vmatpush1.msra.mxu0 0.0
        %1245 = vmatprep.subr.mxu0 0.0
        %1246 = vmatpush1.msra.mxu0 0.0
        %1247 = vmatprep.subr.mxu0 0.0
        %1248 = vmatpush1.msra.mxu0 0.0
        %1249 = vmatprep.subr.mxu0 0.0
        %1250 = vmatpush1.msra.mxu0 0.0
        %1251 = vmatprep.subr.mxu0 0.0
        %1252 = vmatpush1.msra.mxu0 0.0
        %1253 = vmatprep.subr.mxu0 0.0
        %1254 = vmatpush1.msra.mxu0 0.0
        %1255 = vmatprep.subr.mxu0 0.0
        %1256 = vmatpush1.msra.mxu0 0.0
        %1257 = vmatprep.subr.mxu0 0.0
        %1258 = vmatpush1.msra.mxu0 0.0
        %1259 = vmatprep.subr.mxu0 0.0
        %1260 = vmatpush1.msra.mxu0 0.0
        %1261 = vmatprep.subr.mxu0 0.0
        %1262 = vmatpush1.msra.mxu0 0.0
        %1263 = vmatprep.mubr.f32.mxu0 0.0
        %1264 = vmatmul.mubr.f32.gmra.mrb[0].mxu0 %v1194
        %v1265 = vpop.f32.mrb[0].mxu0
        %v1266 = vadd.f32 %v1185, %v1265
        %v1267 = vpop.f32.mrb[0].mxu0
        %v1268 = vadd.f32 %v1189, %v1267
        %1269 = vmatprep.mubr.f32.mxu0 0.0
        %1270 = vmatmul.mubr.f32.gmra.mrb[0].mxu0 %v1197
        %v1271 = vpop.f32.mrb[0].mxu0
        %v1272 = vadd.f32 %v1185, %v1271
        %v1273 = vpop.f32.mrb[0].mxu0
        %v1274 = vadd.f32 %v1189, %v1273
        %1275 = vdwg.mxu0
        %vm1276 = vcmp.gt.f32.partialorder %v1266, 20.0
        %vm1277 = vcmp.gt.f32.partialorder %v1268, 20.0
        %vm1278 = vcmp.gt.f32.partialorder %v1272, 20.0
        %vm1279 = vcmp.gt.f32.partialorder %v1274, 20.0
        %v1280 = vmin.f32 %v1266, 20.0
        %v1281 = vmin.f32 %v1268, 20.0
        %v1282 = vmin.f32 %v1272, 20.0
        %v1283 = vmin.f32 %v1274, 20.0
        %v1284 = vmul.f32 %v1280, 1.442695
        %v1285 = vpow.pop %v1284
        %v1286 = vmul.f32 %v1281, 1.442695
        %v1287 = vpow.pop %v1286
        %v1288 = vmul.f32 %v1282, 1.442695
        %v1289 = vpow.pop %v1288
        %v1290 = vmul.f32 %v1283, 1.442695
        %v1291 = vpow.pop %v1290
        %v1292 = vadd.f32 %v1285, 1.0
        %v1293 = vlog2.pop %v1292
        %v1294 = vmul.f32 %v1293, 0.6931472
        %v1295 = vmul.f32 -0.5, %v1285
        %v1296 = vadd.f32 %v1295, 1.0
        %v1297 = vmul.f32 %v1296, %v1285
        %v1298 = vand.u32 2147483647, %v1285
        %vm1299 = vcmp.lt.f32.partialorder %v1298, 0.0004427343
        %v1300 = vsel %vm1299, %v1297, %v1294
        %v1301 = vadd.f32 %v1287, 1.0
        %v1302 = vlog2.pop %v1301
        %v1303 = vmul.f32 %v1302, 0.6931472
        %v1304 = vmul.f32 -0.5, %v1287
        %v1305 = vadd.f32 %v1304, 1.0
        %v1306 = vmul.f32 %v1305, %v1287
        %v1307 = vand.u32 2147483647, %v1287
        %vm1308 = vcmp.lt.f32.partialorder %v1307, 0.0004427343
        %v1309 = vsel %vm1308, %v1306, %v1303
        %v1310 = vadd.f32 %v1289, 1.0
        %v1311 = vlog2.pop %v1310
        %v1312 = vmul.f32 %v1311, 0.6931472
        %v1313 = vmul.f32 -0.5, %v1289
        %v1314 = vadd.f32 %v1313, 1.0
        %v1315 = vmul.f32 %v1314, %v1289
        %v1316 = vand.u32 2147483647, %v1289
        %vm1317 = vcmp.lt.f32.partialorder %v1316, 0.0004427343
        %v1318 = vsel %vm1317, %v1315, %v1312
        %v1319 = vadd.f32 %v1291, 1.0
        %v1320 = vlog2.pop %v1319
        %v1321 = vmul.f32 %v1320, 0.6931472
        %v1322 = vmul.f32 -0.5, %v1291
        %v1323 = vadd.f32 %v1322, 1.0
        %v1324 = vmul.f32 %v1323, %v1291
        %v1325 = vand.u32 2147483647, %v1291
        %vm1326 = vcmp.lt.f32.partialorder %v1325, 0.0004427343
        %v1327 = vsel %vm1326, %v1324, %v1321
        %v1328 = vsel %vm1276, %v1266, %v1300
        %v1329 = vsel %vm1277, %v1268, %v1309
        %v1330 = vsel %vm1278, %v1272, %v1318
        %v1331 = vsel %vm1279, %v1274, %v1327
        %1332 = vst [vmem:[#allocation2] sm:$0xff] %v1328
        %1333 = vst [vmem:[#allocation2 + $0x8] sm:$0xff] %v1329
        %1334 = vst [vmem:[#allocation2 + $0x10] sm:$0xff] %v1330
        %1335 = vst [vmem:[#allocation2 + $0x18] sm:$0xff] %v1331
        %v1336 = vmul.f32 %v1328, %v960
        %v1337 = vmul.f32 %v1329, %v961
        %v1338 = vmul.f32 %v1330, %v962
        %v1339 = vmul.f32 %v1331, %v963
        %1340 = vst [vmem:[#allocation3] sm:$0xff] %v1336
        %1341 = vst [vmem:[#allocation3 + $0x8] sm:$0xff] %v1337
        %1342 = vst [vmem:[#allocation3 + $0x10] sm:$0xff] %v1338
        %1343 = vst [vmem:[#allocation3 + $0x18] sm:$0xff] %v1339
        %1344 = vst [vmem:[#allocation4] sm:$0xff] %v960
        %1345 = vst [vmem:[#allocation4 + $0x8] sm:$0xff] %v961
        %1346 = vst [vmem:[#allocation4 + $0x10] sm:$0xff] %v962
        %1347 = vst [vmem:[#allocation4 + $0x18] sm:$0xff] %v963
        %vm1348 = vcmask 130048
        %1349 = vst.msk [vmem:[#allocation5] sm:$0xff] %vm1348, %v1170
        %1350 = vst.msk [vmem:[#allocation5 + $0x8] sm:$0xff] %vm1348, %v1175
        %v1351 = vld [vmem:[#allocation13] sm:$0xff]
        %v1352 = vld [vmem:[#allocation13 + $0x8] sm:$0xff]
        %v1353 = vld [vmem:[#allocation13 + $0x10] sm:$0xff]
        %v1354 = vld [vmem:[#allocation13 + $0x18] sm:$0xff]
        %v1355 = vld [vmem:[%s6] sm:$0xff]
        %v1356 = vld [vmem:[%s6 + $0x8] sm:$0xff]
        %v1357 = vld [vmem:[%s6 + $0x10] sm:$0xff]
        %v1358 = vld [vmem:[%s6 + $0x18] sm:$0xff]
        loop: start=0, step=1, limit=2
        $region105: #{tpu_custom_call.1} parent=79 // loop_pre_header
          _
        $region106: #{tpu_custom_call.1} parent=79 // loop_header
          %s1360 = sphi 0, %s1364
          %p1361 = scmp.ge.s32.totalorder %s1360, 2
          %v1365 = vphi 0.0, %v2362
          %v1366 = vphi 0.0, %v2363
          %v1367 = vphi 0.0, %v2364
          %v1368 = vphi 0.0, %v2365
        $region107: #{tpu_custom_call.1} parent=79 // loop_header_branch
          %1363 = sbr.rel (%p1361) target = $region111
        $region108: #{tpu_custom_call.1} parent=79 // loop_body
          %s1369 = smul.u32 %s1360, 8
          %s1370 = sshra.s32 %s1369, 3
          %s1371 = sand.u32 %s1369, 7
          %s1372 = smul.u32 %s1370, 2
          %s1373 = smul.addr %s1372, 8
          %s1374 = scalar_lea.vmem [#allocation2], %s1373
          %v1375 = vld [vmem:[%s1374] sm:$0xff]
          %v1376 = vld [vmem:[%s1374 + $0x8] sm:$0xff]
          %s1377 = smul.addr %s1372, 8
          %s1378 = scalar_lea.vmem [#allocation3], %s1377
          %v1379 = vld [vmem:[%s1378] sm:$0xff]
          %v1380 = vld [vmem:[%s1378 + $0x8] sm:$0xff]
          %s1381 = smul.addr %s1372, 8
          %s1382 = scalar_lea.vmem [#allocation4], %s1381
          %v1383 = vld [vmem:[%s1382] sm:$0xff]
          %v1384 = vld [vmem:[%s1382 + $0x8] sm:$0xff]
          %s1385 = scalar_lea.vmem [#allocation5], %s1369
          %v1386 = vld [vmem:[%s1385] sm:$0xff]
          %1387 = vmatprep.subr.mxu0 %v1384
          %1388 = vmatpush1.xpose.msra.mxu0 %v1383
          %1389 = vmatprep.subr.mxu0 0.0
          %1390 = vmatpush1.xpose.msra.mxu0 0.0
          %1391 = vmatprep.subr.mxu0 0.0
          %1392 = vmatpush1.xpose.msra.mxu0 0.0
          %1393 = vmatprep.subr.mxu0 0.0
          %1394 = vmatpush1.xpose.msra.mxu0 0.0
          %1395 = vmatprep.subr.mxu0 0.0
          %1396 = vmatpush1.xpose.msra.mxu0 0.0
          %1397 = vmatprep.subr.mxu0 0.0
          %1398 = vmatpush1.xpose.msra.mxu0 0.0
          %1399 = vmatprep.subr.mxu0 0.0
          %1400 = vmatpush1.xpose.msra.mxu0 0.0
          %1401 = vmatprep.subr.mxu0 0.0
          %1402 = vmatpush1.xpose.msra.mxu0 0.0
          %1403 = vmatprep.subr.mxu0 0.0
          %1404 = vmatpush1.xpose.msra.mxu0 0.0
          %1405 = vmatprep.subr.mxu0 0.0
          %1406 = vmatpush1.xpose.msra.mxu0 0.0
          %1407 = vmatprep.subr.mxu0 0.0
          %1408 = vmatpush1.xpose.msra.mxu0 0.0
          %1409 = vmatprep.subr.mxu0 0.0
          %1410 = vmatpush1.xpose.msra.mxu0 0.0
          %1411 = vmatprep.subr.mxu0 0.0
          %1412 = vmatpush1.xpose.msra.mxu0 0.0
          %1413 = vmatprep.subr.mxu0 0.0
          %1414 = vmatpush1.xpose.msra.mxu0 0.0
          %1415 = vmatprep.subr.mxu0 0.0
          %1416 = vmatpush1.xpose.msra.mxu0 0.0
          %1417 = vmatprep.subr.mxu0 0.0
          %1418 = vmatpush1.xpose.msra.mxu0 0.0
          %1419 = vmatprep.subr.mxu0 0.0
          %1420 = vmatpush1.xpose.msra.mxu0 0.0
          %1421 = vmatprep.subr.mxu0 0.0
          %1422 = vmatpush1.xpose.msra.mxu0 0.0
          %1423 = vmatprep.subr.mxu0 0.0
          %1424 = vmatpush1.xpose.msra.mxu0 0.0
          %1425 = vmatprep.subr.mxu0 0.0
          %1426 = vmatpush1.xpose.msra.mxu0 0.0
          %1427 = vmatprep.subr.mxu0 0.0
          %1428 = vmatpush1.xpose.msra.mxu0 0.0
          %1429 = vmatprep.subr.mxu0 0.0
          %1430 = vmatpush1.xpose.msra.mxu0 0.0
          %1431 = vmatprep.subr.mxu0 0.0
          %1432 = vmatpush1.xpose.msra.mxu0 0.0
          %1433 = vmatprep.subr.mxu0 0.0
          %1434 = vmatpush1.xpose.msra.mxu0 0.0
          %1435 = vmatprep.subr.mxu0 0.0
          %1436 = vmatpush1.xpose.msra.mxu0 0.0
          %1437 = vmatprep.subr.mxu0 0.0
          %1438 = vmatpush1.xpose.msra.mxu0 0.0
          %1439 = vmatprep.subr.mxu0 0.0
          %1440 = vmatpush1.xpose.msra.mxu0 0.0
          %1441 = vmatprep.subr.mxu0 0.0
          %1442 = vmatpush1.xpose.msra.mxu0 0.0
          %1443 = vmatprep.subr.mxu0 0.0
          %1444 = vmatpush1.xpose.msra.mxu0 0.0
          %1445 = vmatprep.subr.mxu0 0.0
          %1446 = vmatpush1.xpose.msra.mxu0 0.0
          %1447 = vmatprep.subr.mxu0 0.0
          %1448 = vmatpush1.xpose.msra.mxu0 0.0
          %1449 = vmatprep.subr.mxu0 0.0
          %1450 = vmatpush1.xpose.msra.mxu0 0.0
          %1451 = vmatprep.mubr.f32.mxu0 %v1356
          %1452 = vmatmul.mubr.f32.gmra.mrb[0].mxu0 %v1355
          %v1453 = vpop.f32.mrb[0].mxu0
          %v1454 = vadd.f32 0.0, %v1453
          %v1455 = vpop.f32.mrb[0].mxu0
          %1456 = vmatprep.mubr.f32.mxu0 %v1358
          %1457 = vmatmul.mubr.f32.gmra.mrb[0].mxu0 %v1357
          %v1458 = vpop.f32.mrb[0].mxu0
          %v1459 = vadd.f32 0.0, %v1458
          %v1460 = vpop.f32.mrb[0].mxu0
          %1461 = vdwg.mxu0
          %v1462 = vlaneseq
          %v1463 = vshrl.u32 %v1462, 7
          %v1464 = vsub.s32 0, %v1463
          %v1465 = vrot.slane %v1375, %v1464
          %v1466 = vlaneseq
          %v1467 = vshrl.u32 %v1466, 7
          %v1468 = vsub.s32 0, %v1467
          %v1469 = vrot.slane %v1376, %v1468
          %v1470 = vmul.f32 %v1465, %v1351
          %v1471 = vmul.f32 %v1469, %v1352
          %v1472 = vmul.f32 %v1465, %v1353
          %v1473 = vmul.f32 %v1469, %v1354
          %v1474 = vmul.f32 %v1470, 1.442695
          %v1475 = vpow.pop %v1474
          %v1476 = vmul.f32 %v1471, 1.442695
          %v1477 = vpow.pop %v1476
          %v1478 = vmul.f32 %v1472, 1.442695
          %v1479 = vpow.pop %v1478
          %v1480 = vmul.f32 %v1473, 1.442695
          %v1481 = vpow.pop %v1480
          %v1482 = vlaneseq
          %v1483 = vshrl.u32 %v1482, 7
          %v1484 = vsub.s32 0, %v1483
          %v1485 = vrot.slane %v1379, %v1484
          %v1486 = vlaneseq
          %v1487 = vshrl.u32 %v1486, 7
          %v1488 = vsub.s32 0, %v1487
          %v1489 = vrot.slane %v1380, %v1488
          %1491 = vset.pattern.permute.xlu0 0
          %1492 = vperm.xlu0 %1491, %v1454
          %v1493 = vpop.permute.xlu0 %1492
          %1496 = vset.pattern.permute.xlu0 0
          %1497 = vperm.xlu0 %1496, %v1459
          %v1498 = vpop.permute.xlu0 %1497
          %v1500 = vmul.f32 %v1485, %v1493
          %v1501 = vmul.f32 %v1489, %v1493
          %v1502 = vmul.f32 %v1485, %v1498
          %v1503 = vmul.f32 %v1489, %v1498
          %v1504 = vmul.f32 %v1475, %v1365
          %v1505 = vmul.f32 %v1477, %v1366
          %v1506 = vmul.f32 %v1479, %v1367
          %v1507 = vmul.f32 %v1481, %v1368
          %v1508 = vadd.f32 %v1504, %v1500
          %v1509 = vadd.f32 %v1505, %v1501
          %v1510 = vadd.f32 %v1506, %v1502
          %v1511 = vadd.f32 %v1507, %v1503
          %v1513 = vsel %vm1348, %v1386, 0
          %1515 = vmatprep.subr.mxu0 %v1509
          %1516 = vmatpush1.msra.mxu0 %v1508
          %1517 = vmatprep.subr.mxu0 %v1511
          %1518 = vmatpush1.msra.mxu0 %v1510
          %1519 = vmatprep.subr.mxu0 0.0
          %1520 = vmatpush1.msra.mxu0 0.0
          %1521 = vmatprep.subr.mxu0 0.0
          %1522 = vmatpush1.msra.mxu0 0.0
          %1523 = vmatprep.subr.mxu0 0.0
          %1524 = vmatpush1.msra.mxu0 0.0
          %1525 = vmatprep.subr.mxu0 0.0
          %1526 = vmatpush1.msra.mxu0 0.0
          %1527 = vmatprep.subr.mxu0 0.0
          %1528 = vmatpush1.msra.mxu0 0.0
          %1529 = vmatprep.subr.mxu0 0.0
          %1530 = vmatpush1.msra.mxu0 0.0
          %1531 = vmatprep.subr.mxu0 0.0
          %1532 = vmatpush1.msra.mxu0 0.0
          %1533 = vmatprep.subr.mxu0 0.0
          %1534 = vmatpush1.msra.mxu0 0.0
          %1535 = vmatprep.subr.mxu0 0.0
          %1536 = vmatpush1.msra.mxu0 0.0
          %1537 = vmatprep.subr.mxu0 0.0
          %1538 = vmatpush1.msra.mxu0 0.0
          %1539 = vmatprep.subr.mxu0 0.0
          %1540 = vmatpush1.msra.mxu0 0.0
          %1541 = vmatprep.subr.mxu0 0.0
          %1542 = vmatpush1.msra.mxu0 0.0
          %1543 = vmatprep.subr.mxu0 0.0
          %1544 = vmatpush1.msra.mxu0 0.0
          %1545 = vmatprep.subr.mxu0 0.0
          %1546 = vmatpush1.msra.mxu0 0.0
          %1547 = vmatprep.subr.mxu0 0.0
          %1548 = vmatpush1.msra.mxu0 0.0
          %1549 = vmatprep.subr.mxu0 0.0
          %1550 = vmatpush1.msra.mxu0 0.0
          %1551 = vmatprep.subr.mxu0 0.0
          %1552 = vmatpush1.msra.mxu0 0.0
          %1553 = vmatprep.subr.mxu0 0.0
          %1554 = vmatpush1.msra.mxu0 0.0
          %1555 = vmatprep.subr.mxu0 0.0
          %1556 = vmatpush1.msra.mxu0 0.0
          %1557 = vmatprep.subr.mxu0 0.0
          %1558 = vmatpush1.msra.mxu0 0.0
          %1559 = vmatprep.subr.mxu0 0.0
          %1560 = vmatpush1.msra.mxu0 0.0
          %1561 = vmatprep.subr.mxu0 0.0
          %1562 = vmatpush1.msra.mxu0 0.0
          %1563 = vmatprep.subr.mxu0 0.0
          %1564 = vmatpush1.msra.mxu0 0.0
          %1565 = vmatprep.subr.mxu0 0.0
          %1566 = vmatpush1.msra.mxu0 0.0
          %1567 = vmatprep.subr.mxu0 0.0
          %1568 = vmatpush1.msra.mxu0 0.0
          %1569 = vmatprep.subr.mxu0 0.0
          %1570 = vmatpush1.msra.mxu0 0.0
          %1571 = vmatprep.subr.mxu0 0.0
          %1572 = vmatpush1.msra.mxu0 0.0
          %1573 = vmatprep.subr.mxu0 0.0
          %1574 = vmatpush1.msra.mxu0 0.0
          %1575 = vmatprep.subr.mxu0 0.0
          %1576 = vmatpush1.msra.mxu0 0.0
          %1577 = vmatprep.subr.mxu0 0.0
          %1578 = vmatpush1.msra.mxu0 0.0
          %1579 = vmatprep.mubr.f32.mxu0 0.0
          %1580 = vmatmul.mubr.f32.gmra.mrb[0].mxu0 %v1513
          %v1581 = vpop.f32.mrb[0].mxu0
          %v1582 = vadd.f32 0.0, %v1581
          %v1583 = vpop.f32.mrb[0].mxu0
          %v1584 = vadd.f32 0.0, %v1583
          %1585 = vdwg.mxu0
          %v1586 = vlaneseq
          %v1587 = vshrl.u32 %v1586, 7
          %v1588 = vsub.s32 1, %v1587
          %v1589 = vrot.slane %v1375, %v1588
          %v1590 = vlaneseq
          %v1591 = vshrl.u32 %v1590, 7
          %v1592 = vsub.s32 1, %v1591
          %v1593 = vrot.slane %v1376, %v1592
          %v1594 = vmul.f32 %v1589, %v1351
          %v1595 = vmul.f32 %v1593, %v1352
          %v1596 = vmul.f32 %v1589, %v1353
          %v1597 = vmul.f32 %v1593, %v1354
          %v1598 = vmul.f32 %v1594, 1.442695
          %v1599 = vpow.pop %v1598
          %v1600 = vmul.f32 %v1595, 1.442695
          %v1601 = vpow.pop %v1600
          %v1602 = vmul.f32 %v1596, 1.442695
          %v1603 = vpow.pop %v1602
          %v1604 = vmul.f32 %v1597, 1.442695
          %v1605 = vpow.pop %v1604
          %v1606 = vlaneseq
          %v1607 = vshrl.u32 %v1606, 7
          %v1608 = vsub.s32 1, %v1607
          %v1609 = vrot.slane %v1379, %v1608
          %v1610 = vlaneseq
          %v1611 = vshrl.u32 %v1610, 7
          %v1612 = vsub.s32 1, %v1611
          %v1613 = vrot.slane %v1380, %v1612
          %1614 = vset.pattern.permute.xlu0 1
          %1615 = vperm.xlu0 %1614, %v1454
          %v1616 = vpop.permute.xlu0 %1615
          %1618 = vset.pattern.permute.xlu0 1
          %1619 = vperm.xlu0 %1618, %v1459
          %v1620 = vpop.permute.xlu0 %1619
          %v1622 = vmul.f32 %v1609, %v1616
          %v1623 = vmul.f32 %v1613, %v1616
          %v1624 = vmul.f32 %v1609, %v1620
          %v1625 = vmul.f32 %v1613, %v1620
          %v1626 = vmul.f32 %v1599, %v1508
          %v1627 = vmul.f32 %v1601, %v1509
          %v1628 = vmul.f32 %v1603, %v1510
          %v1629 = vmul.f32 %v1605, %v1511
          %v1630 = vadd.f32 %v1626, %v1622
          %v1631 = vadd.f32 %v1627, %v1623
          %v1632 = vadd.f32 %v1628, %v1624
          %v1633 = vadd.f32 %v1629, %v1625
          %v1634 = vrot.slane %v1386, 1
          %v1635 = vsel %vm1348, %v1634, 0
          %1637 = vmatprep.subr.mxu0 %v1631
          %1638 = vmatpush1.msra.mxu0 %v1630
          %1639 = vmatprep.subr.mxu0 %v1633
          %1640 = vmatpush1.msra.mxu0 %v1632
          %1641 = vmatprep.subr.mxu0 0.0
          %1642 = vmatpush1.msra.mxu0 0.0
          %1643 = vmatprep.subr.mxu0 0.0
          %1644 = vmatpush1.msra.mxu0 0.0
          %1645 = vmatprep.subr.mxu0 0.0
          %1646 = vmatpush1.msra.mxu0 0.0
          %1647 = vmatprep.subr.mxu0 0.0
          %1648 = vmatpush1.msra.mxu0 0.0
          %1649 = vmatprep.subr.mxu0 0.0
          %1650 = vmatpush1.msra.mxu0 0.0
          %1651 = vmatprep.subr.mxu0 0.0
          %1652 = vmatpush1.msra.mxu0 0.0
          %1653 = vmatprep.subr.mxu0 0.0
          %1654 = vmatpush1.msra.mxu0 0.0
          %1655 = vmatprep.subr.mxu0 0.0
          %1656 = vmatpush1.msra.mxu0 0.0
          %1657 = vmatprep.subr.mxu0 0.0
          %1658 = vmatpush1.msra.mxu0 0.0
          %1659 = vmatprep.subr.mxu0 0.0
          %1660 = vmatpush1.msra.mxu0 0.0
          %1661 = vmatprep.subr.mxu0 0.0
          %1662 = vmatpush1.msra.mxu0 0.0
          %1663 = vmatprep.subr.mxu0 0.0
          %1664 = vmatpush1.msra.mxu0 0.0
          %1665 = vmatprep.subr.mxu0 0.0
          %1666 = vmatpush1.msra.mxu0 0.0
          %1667 = vmatprep.subr.mxu0 0.0
          %1668 = vmatpush1.msra.mxu0 0.0
          %1669 = vmatprep.subr.mxu0 0.0
          %1670 = vmatpush1.msra.mxu0 0.0
          %1671 = vmatprep.subr.mxu0 0.0
          %1672 = vmatpush1.msra.mxu0 0.0
          %1673 = vmatprep.subr.mxu0 0.0
          %1674 = vmatpush1.msra.mxu0 0.0
          %1675 = vmatprep.subr.mxu0 0.0
          %1676 = vmatpush1.msra.mxu0 0.0
          %1677 = vmatprep.subr.mxu0 0.0
          %1678 = vmatpush1.msra.mxu0 0.0
          %1679 = vmatprep.subr.mxu0 0.0
          %1680 = vmatpush1.msra.mxu0 0.0
          %1681 = vmatprep.subr.mxu0 0.0
          %1682 = vmatpush1.msra.mxu0 0.0
          %1683 = vmatprep.subr.mxu0 0.0
          %1684 = vmatpush1.msra.mxu0 0.0
          %1685 = vmatprep.subr.mxu0 0.0
          %1686 = vmatpush1.msra.mxu0 0.0
          %1687 = vmatprep.subr.mxu0 0.0
          %1688 = vmatpush1.msra.mxu0 0.0
          %1689 = vmatprep.subr.mxu0 0.0
          %1690 = vmatpush1.msra.mxu0 0.0
          %1691 = vmatprep.subr.mxu0 0.0
          %1692 = vmatpush1.msra.mxu0 0.0
          %1693 = vmatprep.subr.mxu0 0.0
          %1694 = vmatpush1.msra.mxu0 0.0
          %1695 = vmatprep.subr.mxu0 0.0
          %1696 = vmatpush1.msra.mxu0 0.0
          %1697 = vmatprep.subr.mxu0 0.0
          %1698 = vmatpush1.msra.mxu0 0.0
          %1699 = vmatprep.subr.mxu0 0.0
          %1700 = vmatpush1.msra.mxu0 0.0
          %1701 = vmatprep.mubr.f32.mxu0 0.0
          %1702 = vmatmul.mubr.f32.gmra.mrb[0].mxu0 %v1635
          %v1703 = vpop.f32.mrb[0].mxu0
          %v1704 = vadd.f32 0.0, %v1703
          %v1705 = vpop.f32.mrb[0].mxu0
          %v1706 = vadd.f32 0.0, %v1705
          %1707 = vdwg.mxu0
          %v1708 = vlaneseq
          %v1709 = vshrl.u32 %v1708, 7
          %v1710 = vsub.s32 2, %v1709
          %v1711 = vrot.slane %v1375, %v1710
          %v1712 = vlaneseq
          %v1713 = vshrl.u32 %v1712, 7
          %v1714 = vsub.s32 2, %v1713
          %v1715 = vrot.slane %v1376, %v1714
          %v1716 = vmul.f32 %v1711, %v1351
          %v1717 = vmul.f32 %v1715, %v1352
          %v1718 = vmul.f32 %v1711, %v1353
          %v1719 = vmul.f32 %v1715, %v1354
          %v1720 = vmul.f32 %v1716, 1.442695
          %v1721 = vpow.pop %v1720
          %v1722 = vmul.f32 %v1717, 1.442695
          %v1723 = vpow.pop %v1722
          %v1724 = vmul.f32 %v1718, 1.442695
          %v1725 = vpow.pop %v1724
          %v1726 = vmul.f32 %v1719, 1.442695
          %v1727 = vpow.pop %v1726
          %v1728 = vlaneseq
          %v1729 = vshrl.u32 %v1728, 7
          %v1730 = vsub.s32 2, %v1729
          %v1731 = vrot.slane %v1379, %v1730
          %v1732 = vlaneseq
          %v1733 = vshrl.u32 %v1732, 7
          %v1734 = vsub.s32 2, %v1733
          %v1735 = vrot.slane %v1380, %v1734
          %1736 = vset.pattern.permute.xlu0 2
          %1737 = vperm.xlu0 %1736, %v1454
          %v1738 = vpop.permute.xlu0 %1737
          %1740 = vset.pattern.permute.xlu0 2
          %1741 = vperm.xlu0 %1740, %v1459
          %v1742 = vpop.permute.xlu0 %1741
          %v1744 = vmul.f32 %v1731, %v1738
          %v1745 = vmul.f32 %v1735, %v1738
          %v1746 = vmul.f32 %v1731, %v1742
          %v1747 = vmul.f32 %v1735, %v1742
          %v1748 = vmul.f32 %v1721, %v1630
          %v1749 = vmul.f32 %v1723, %v1631
          %v1750 = vmul.f32 %v1725, %v1632
          %v1751 = vmul.f32 %v1727, %v1633
          %v1752 = vadd.f32 %v1748, %v1744
          %v1753 = vadd.f32 %v1749, %v1745
          %v1754 = vadd.f32 %v1750, %v1746
          %v1755 = vadd.f32 %v1751, %v1747
          %v1756 = vrot.slane %v1386, 2
          %v1757 = vsel %vm1348, %v1756, 0
          %1759 = vmatprep.subr.mxu0 %v1753
          %1760 = vmatpush1.msra.mxu0 %v1752
          %1761 = vmatprep.subr.mxu0 %v1755
          %1762 = vmatpush1.msra.mxu0 %v1754
          %1763 = vmatprep.subr.mxu0 0.0
          %1764 = vmatpush1.msra.mxu0 0.0
          %1765 = vmatprep.subr.mxu0 0.0
          %1766 = vmatpush1.msra.mxu0 0.0
          %1767 = vmatprep.subr.mxu0 0.0
          %1768 = vmatpush1.msra.mxu0 0.0
          %1769 = vmatprep.subr.mxu0 0.0
          %1770 = vmatpush1.msra.mxu0 0.0
          %1771 = vmatprep.subr.mxu0 0.0
          %1772 = vmatpush1.msra.mxu0 0.0
          %1773 = vmatprep.subr.mxu0 0.0
          %1774 = vmatpush1.msra.mxu0 0.0
          %1775 = vmatprep.subr.mxu0 0.0
          %1776 = vmatpush1.msra.mxu0 0.0
          %1777 = vmatprep.subr.mxu0 0.0
          %1778 = vmatpush1.msra.mxu0 0.0
          %1779 = vmatprep.subr.mxu0 0.0
          %1780 = vmatpush1.msra.mxu0 0.0
          %1781 = vmatprep.subr.mxu0 0.0
          %1782 = vmatpush1.msra.mxu0 0.0
          %1783 = vmatprep.subr.mxu0 0.0
          %1784 = vmatpush1.msra.mxu0 0.0
          %1785 = vmatprep.subr.mxu0 0.0
          %1786 = vmatpush1.msra.mxu0 0.0
          %1787 = vmatprep.subr.mxu0 0.0
          %1788 = vmatpush1.msra.mxu0 0.0
          %1789 = vmatprep.subr.mxu0 0.0
          %1790 = vmatpush1.msra.mxu0 0.0
          %1791 = vmatprep.subr.mxu0 0.0
          %1792 = vmatpush1.msra.mxu0 0.0
          %1793 = vmatprep.subr.mxu0 0.0
          %1794 = vmatpush1.msra.mxu0 0.0
          %1795 = vmatprep.subr.mxu0 0.0
          %1796 = vmatpush1.msra.mxu0 0.0
          %1797 = vmatprep.subr.mxu0 0.0
          %1798 = vmatpush1.msra.mxu0 0.0
          %1799 = vmatprep.subr.mxu0 0.0
          %1800 = vmatpush1.msra.mxu0 0.0
          %1801 = vmatprep.subr.mxu0 0.0
          %1802 = vmatpush1.msra.mxu0 0.0
          %1803 = vmatprep.subr.mxu0 0.0
          %1804 = vmatpush1.msra.mxu0 0.0
          %1805 = vmatprep.subr.mxu0 0.0
          %1806 = vmatpush1.msra.mxu0 0.0
          %1807 = vmatprep.subr.mxu0 0.0
          %1808 = vmatpush1.msra.mxu0 0.0
          %1809 = vmatprep.subr.mxu0 0.0
          %1810 = vmatpush1.msra.mxu0 0.0
          %1811 = vmatprep.subr.mxu0 0.0
          %1812 = vmatpush1.msra.mxu0 0.0
          %1813 = vmatprep.subr.mxu0 0.0
          %1814 = vmatpush1.msra.mxu0 0.0
          %1815 = vmatprep.subr.mxu0 0.0
          %1816 = vmatpush1.msra.mxu0 0.0
          %1817 = vmatprep.subr.mxu0 0.0
          %1818 = vmatpush1.msra.mxu0 0.0
          %1819 = vmatprep.subr.mxu0 0.0
          %1820 = vmatpush1.msra.mxu0 0.0
          %1821 = vmatprep.subr.mxu0 0.0
          %1822 = vmatpush1.msra.mxu0 0.0
          %1823 = vmatprep.mubr.f32.mxu0 0.0
          %1824 = vmatmul.mubr.f32.gmra.mrb[0].mxu0 %v1757
          %v1825 = vpop.f32.mrb[0].mxu0
          %v1826 = vadd.f32 0.0, %v1825
          %v1827 = vpop.f32.mrb[0].mxu0
          %v1828 = vadd.f32 0.0, %v1827
          %1829 = vdwg.mxu0
          %v1830 = vlaneseq
          %v1831 = vshrl.u32 %v1830, 7
          %v1832 = vsub.s32 3, %v1831
          %v1833 = vrot.slane %v1375, %v1832
          %v1834 = vlaneseq
          %v1835 = vshrl.u32 %v1834, 7
          %v1836 = vsub.s32 3, %v1835
          %v1837 = vrot.slane %v1376, %v1836
          %v1838 = vmul.f32 %v1833, %v1351
          %v1839 = vmul.f32 %v1837, %v1352
          %v1840 = vmul.f32 %v1833, %v1353
          %v1841 = vmul.f32 %v1837, %v1354
          %v1842 = vmul.f32 %v1838, 1.442695
          %v1843 = vpow.pop %v1842
          %v1844 = vmul.f32 %v1839, 1.442695
          %v1845 = vpow.pop %v1844
          %v1846 = vmul.f32 %v1840, 1.442695
          %v1847 = vpow.pop %v1846
          %v1848 = vmul.f32 %v1841, 1.442695
          %v1849 = vpow.pop %v1848
          %v1850 = vlaneseq
          %v1851 = vshrl.u32 %v1850, 7
          %v1852 = vsub.s32 3, %v1851
          %v1853 = vrot.slane %v1379, %v1852
          %v1854 = vlaneseq
          %v1855 = vshrl.u32 %v1854, 7
          %v1856 = vsub.s32 3, %v1855
          %v1857 = vrot.slane %v1380, %v1856
          %1858 = vset.pattern.permute.xlu0 3
          %1859 = vperm.xlu0 %1858, %v1454
          %v1860 = vpop.permute.xlu0 %1859
          %1862 = vset.pattern.permute.xlu0 3
          %1863 = vperm.xlu0 %1862, %v1459
          %v1864 = vpop.permute.xlu0 %1863
          %v1866 = vmul.f32 %v1853, %v1860
          %v1867 = vmul.f32 %v1857, %v1860
          %v1868 = vmul.f32 %v1853, %v1864
          %v1869 = vmul.f32 %v1857, %v1864
          %v1870 = vmul.f32 %v1843, %v1752
          %v1871 = vmul.f32 %v1845, %v1753
          %v1872 = vmul.f32 %v1847, %v1754
          %v1873 = vmul.f32 %v1849, %v1755
          %v1874 = vadd.f32 %v1870, %v1866
          %v1875 = vadd.f32 %v1871, %v1867
          %v1876 = vadd.f32 %v1872, %v1868
          %v1877 = vadd.f32 %v1873, %v1869
          %v1878 = vrot.slane %v1386, 3
          %v1879 = vsel %vm1348, %v1878, 0
          %1881 = vmatprep.subr.mxu0 %v1875
          %1882 = vmatpush1.msra.mxu0 %v1874
          %1883 = vmatprep.subr.mxu0 %v1877
          %1884 = vmatpush1.msra.mxu0 %v1876
          %1885 = vmatprep.subr.mxu0 0.0
          %1886 = vmatpush1.msra.mxu0 0.0
          %1887 = vmatprep.subr.mxu0 0.0
          %1888 = vmatpush1.msra.mxu0 0.0
          %1889 = vmatprep.subr.mxu0 0.0
          %1890 = vmatpush1.msra.mxu0 0.0
          %1891 = vmatprep.subr.mxu0 0.0
          %1892 = vmatpush1.msra.mxu0 0.0
          %1893 = vmatprep.subr.mxu0 0.0
          %1894 = vmatpush1.msra.mxu0 0.0
          %1895 = vmatprep.subr.mxu0 0.0
          %1896 = vmatpush1.msra.mxu0 0.0
          %1897 = vmatprep.subr.mxu0 0.0
          %1898 = vmatpush1.msra.mxu0 0.0
          %1899 = vmatprep.subr.mxu0 0.0
          %1900 = vmatpush1.msra.mxu0 0.0
          %1901 = vmatprep.subr.mxu0 0.0
          %1902 = vmatpush1.msra.mxu0 0.0
          %1903 = vmatprep.subr.mxu0 0.0
          %1904 = vmatpush1.msra.mxu0 0.0
          %1905 = vmatprep.subr.mxu0 0.0
          %1906 = vmatpush1.msra.mxu0 0.0
          %1907 = vmatprep.subr.mxu0 0.0
          %1908 = vmatpush1.msra.mxu0 0.0
          %1909 = vmatprep.subr.mxu0 0.0
          %1910 = vmatpush1.msra.mxu0 0.0
          %1911 = vmatprep.subr.mxu0 0.0
          %1912 = vmatpush1.msra.mxu0 0.0
          %1913 = vmatprep.subr.mxu0 0.0
          %1914 = vmatpush1.msra.mxu0 0.0
          %1915 = vmatprep.subr.mxu0 0.0
          %1916 = vmatpush1.msra.mxu0 0.0
          %1917 = vmatprep.subr.mxu0 0.0
          %1918 = vmatpush1.msra.mxu0 0.0
          %1919 = vmatprep.subr.mxu0 0.0
          %1920 = vmatpush1.msra.mxu0 0.0
          %1921 = vmatprep.subr.mxu0 0.0
          %1922 = vmatpush1.msra.mxu0 0.0
          %1923 = vmatprep.subr.mxu0 0.0
          %1924 = vmatpush1.msra.mxu0 0.0
          %1925 = vmatprep.subr.mxu0 0.0
          %1926 = vmatpush1.msra.mxu0 0.0
          %1927 = vmatprep.subr.mxu0 0.0
          %1928 = vmatpush1.msra.mxu0 0.0
          %1929 = vmatprep.subr.mxu0 0.0
          %1930 = vmatpush1.msra.mxu0 0.0
          %1931 = vmatprep.subr.mxu0 0.0
          %1932 = vmatpush1.msra.mxu0 0.0
          %1933 = vmatprep.subr.mxu0 0.0
          %1934 = vmatpush1.msra.mxu0 0.0
          %1935 = vmatprep.subr.mxu0 0.0
          %1936 = vmatpush1.msra.mxu0 0.0
          %1937 = vmatprep.subr.mxu0 0.0
          %1938 = vmatpush1.msra.mxu0 0.0
          %1939 = vmatprep.subr.mxu0 0.0
          %1940 = vmatpush1.msra.mxu0 0.0
          %1941 = vmatprep.subr.mxu0 0.0
          %1942 = vmatpush1.msra.mxu0 0.0
          %1943 = vmatprep.subr.mxu0 0.0
          %1944 = vmatpush1.msra.mxu0 0.0
          %1945 = vmatprep.mubr.f32.mxu0 0.0
          %1946 = vmatmul.mubr.f32.gmra.mrb[0].mxu0 %v1879
          %v1947 = vpop.f32.mrb[0].mxu0
          %v1948 = vadd.f32 0.0, %v1947
          %v1949 = vpop.f32.mrb[0].mxu0
          %v1950 = vadd.f32 0.0, %v1949
          %1951 = vdwg.mxu0
          %v1952 = vlaneseq
          %v1953 = vshrl.u32 %v1952, 7
          %v1954 = vsub.s32 4, %v1953
          %v1955 = vrot.slane %v1375, %v1954
          %v1956 = vlaneseq
          %v1957 = vshrl.u32 %v1956, 7
          %v1958 = vsub.s32 4, %v1957
          %v1959 = vrot.slane %v1376, %v1958
          %v1960 = vmul.f32 %v1955, %v1351
          %v1961 = vmul.f32 %v1959, %v1352
          %v1962 = vmul.f32 %v1955, %v1353
          %v1963 = vmul.f32 %v1959, %v1354
          %v1964 = vmul.f32 %v1960, 1.442695
          %v1965 = vpow.pop %v1964
          %v1966 = vmul.f32 %v1961, 1.442695
          %v1967 = vpow.pop %v1966
          %v1968 = vmul.f32 %v1962, 1.442695
          %v1969 = vpow.pop %v1968
          %v1970 = vmul.f32 %v1963, 1.442695
          %v1971 = vpow.pop %v1970
          %v1972 = vlaneseq
          %v1973 = vshrl.u32 %v1972, 7
          %v1974 = vsub.s32 4, %v1973
          %v1975 = vrot.slane %v1379, %v1974
          %v1976 = vlaneseq
          %v1977 = vshrl.u32 %v1976, 7
          %v1978 = vsub.s32 4, %v1977
          %v1979 = vrot.slane %v1380, %v1978
          %1980 = vset.pattern.permute.xlu0 4
          %1981 = vperm.xlu0 %1980, %v1454
          %v1982 = vpop.permute.xlu0 %1981
          %1984 = vset.pattern.permute.xlu0 4
          %1985 = vperm.xlu0 %1984, %v1459
          %v1986 = vpop.permute.xlu0 %1985
          %v1988 = vmul.f32 %v1975, %v1982
          %v1989 = vmul.f32 %v1979, %v1982
          %v1990 = vmul.f32 %v1975, %v1986
          %v1991 = vmul.f32 %v1979, %v1986
          %v1992 = vmul.f32 %v1965, %v1874
          %v1993 = vmul.f32 %v1967, %v1875
          %v1994 = vmul.f32 %v1969, %v1876
          %v1995 = vmul.f32 %v1971, %v1877
          %v1996 = vadd.f32 %v1992, %v1988
          %v1997 = vadd.f32 %v1993, %v1989
          %v1998 = vadd.f32 %v1994, %v1990
          %v1999 = vadd.f32 %v1995, %v1991
          %v2000 = vrot.slane %v1386, 4
          %v2001 = vsel %vm1348, %v2000, 0
          %2003 = vmatprep.subr.mxu0 %v1997
          %2004 = vmatpush1.msra.mxu0 %v1996
          %2005 = vmatprep.subr.mxu0 %v1999
          %2006 = vmatpush1.msra.mxu0 %v1998
          %2007 = vmatprep.subr.mxu0 0.0
          %2008 = vmatpush1.msra.mxu0 0.0
          %2009 = vmatprep.subr.mxu0 0.0
          %2010 = vmatpush1.msra.mxu0 0.0
          %2011 = vmatprep.subr.mxu0 0.0
          %2012 = vmatpush1.msra.mxu0 0.0
          %2013 = vmatprep.subr.mxu0 0.0
          %2014 = vmatpush1.msra.mxu0 0.0
          %2015 = vmatprep.subr.mxu0 0.0
          %2016 = vmatpush1.msra.mxu0 0.0
          %2017 = vmatprep.subr.mxu0 0.0
          %2018 = vmatpush1.msra.mxu0 0.0
          %2019 = vmatprep.subr.mxu0 0.0
          %2020 = vmatpush1.msra.mxu0 0.0
          %2021 = vmatprep.subr.mxu0 0.0
          %2022 = vmatpush1.msra.mxu0 0.0
          %2023 = vmatprep.subr.mxu0 0.0
          %2024 = vmatpush1.msra.mxu0 0.0
          %2025 = vmatprep.subr.mxu0 0.0
          %2026 = vmatpush1.msra.mxu0 0.0
          %2027 = vmatprep.subr.mxu0 0.0
          %2028 = vmatpush1.msra.mxu0 0.0
          %2029 = vmatprep.subr.mxu0 0.0
          %2030 = vmatpush1.msra.mxu0 0.0
          %2031 = vmatprep.subr.mxu0 0.0
          %2032 = vmatpush1.msra.mxu0 0.0
          %2033 = vmatprep.subr.mxu0 0.0
          %2034 = vmatpush1.msra.mxu0 0.0
          %2035 = vmatprep.subr.mxu0 0.0
          %2036 = vmatpush1.msra.mxu0 0.0
          %2037 = vmatprep.subr.mxu0 0.0
          %2038 = vmatpush1.msra.mxu0 0.0
          %2039 = vmatprep.subr.mxu0 0.0
          %2040 = vmatpush1.msra.mxu0 0.0
          %2041 = vmatprep.subr.mxu0 0.0
          %2042 = vmatpush1.msra.mxu0 0.0
          %2043 = vmatprep.subr.mxu0 0.0
          %2044 = vmatpush1.msra.mxu0 0.0
          %2045 = vmatprep.subr.mxu0 0.0
          %2046 = vmatpush1.msra.mxu0 0.0
          %2047 = vmatprep.subr.mxu0 0.0
          %2048 = vmatpush1.msra.mxu0 0.0
          %2049 = vmatprep.subr.mxu0 0.0
          %2050 = vmatpush1.msra.mxu0 0.0
          %2051 = vmatprep.subr.mxu0 0.0
          %2052 = vmatpush1.msra.mxu0 0.0
          %2053 = vmatprep.subr.mxu0 0.0
          %2054 = vmatpush1.msra.mxu0 0.0
          %2055 = vmatprep.subr.mxu0 0.0
          %2056 = vmatpush1.msra.mxu0 0.0
          %2057 = vmatprep.subr.mxu0 0.0
          %2058 = vmatpush1.msra.mxu0 0.0
          %2059 = vmatprep.subr.mxu0 0.0
          %2060 = vmatpush1.msra.mxu0 0.0
          %2061 = vmatprep.subr.mxu0 0.0
          %2062 = vmatpush1.msra.mxu0 0.0
          %2063 = vmatprep.subr.mxu0 0.0
          %2064 = vmatpush1.msra.mxu0 0.0
          %2065 = vmatprep.subr.mxu0 0.0
          %2066 = vmatpush1.msra.mxu0 0.0
          %2067 = vmatprep.mubr.f32.mxu0 0.0
          %2068 = vmatmul.mubr.f32.gmra.mrb[0].mxu0 %v2001
          %v2069 = vpop.f32.mrb[0].mxu0
          %v2070 = vadd.f32 0.0, %v2069
          %v2071 = vpop.f32.mrb[0].mxu0
          %v2072 = vadd.f32 0.0, %v2071
          %2073 = vdwg.mxu0
          %v2074 = vlaneseq
          %v2075 = vshrl.u32 %v2074, 7
          %v2076 = vsub.s32 5, %v2075
          %v2077 = vrot.slane %v1375, %v2076
          %v2078 = vlaneseq
          %v2079 = vshrl.u32 %v2078, 7
          %v2080 = vsub.s32 5, %v2079
          %v2081 = vrot.slane %v1376, %v2080
          %v2082 = vmul.f32 %v2077, %v1351
          %v2083 = vmul.f32 %v2081, %v1352
          %v2084 = vmul.f32 %v2077, %v1353
          %v2085 = vmul.f32 %v2081, %v1354
          %v2086 = vmul.f32 %v2082, 1.442695
          %v2087 = vpow.pop %v2086
          %v2088 = vmul.f32 %v2083, 1.442695
          %v2089 = vpow.pop %v2088
          %v2090 = vmul.f32 %v2084, 1.442695
          %v2091 = vpow.pop %v2090
          %v2092 = vmul.f32 %v2085, 1.442695
          %v2093 = vpow.pop %v2092
          %v2094 = vlaneseq
          %v2095 = vshrl.u32 %v2094, 7
          %v2096 = vsub.s32 5, %v2095
          %v2097 = vrot.slane %v1379, %v2096
          %v2098 = vlaneseq
          %v2099 = vshrl.u32 %v2098, 7
          %v2100 = vsub.s32 5, %v2099
          %v2101 = vrot.slane %v1380, %v2100
          %2102 = vset.pattern.permute.xlu0 5
          %2103 = vperm.xlu0 %2102, %v1454
          %v2104 = vpop.permute.xlu0 %2103
          %2106 = vset.pattern.permute.xlu0 5
          %2107 = vperm.xlu0 %2106, %v1459
          %v2108 = vpop.permute.xlu0 %2107
          %v2110 = vmul.f32 %v2097, %v2104
          %v2111 = vmul.f32 %v2101, %v2104
          %v2112 = vmul.f32 %v2097, %v2108
          %v2113 = vmul.f32 %v2101, %v2108
          %v2114 = vmul.f32 %v2087, %v1996
          %v2115 = vmul.f32 %v2089, %v1997
          %v2116 = vmul.f32 %v2091, %v1998
          %v2117 = vmul.f32 %v2093, %v1999
          %v2118 = vadd.f32 %v2114, %v2110
          %v2119 = vadd.f32 %v2115, %v2111
          %v2120 = vadd.f32 %v2116, %v2112
          %v2121 = vadd.f32 %v2117, %v2113
          %v2122 = vrot.slane %v1386, 5
          %v2123 = vsel %vm1348, %v2122, 0
          %2125 = vmatprep.subr.mxu0 %v2119
          %2126 = vmatpush1.msra.mxu0 %v2118
          %2127 = vmatprep.subr.mxu0 %v2121
          %2128 = vmatpush1.msra.mxu0 %v2120
          %2129 = vmatprep.subr.mxu0 0.0
          %2130 = vmatpush1.msra.mxu0 0.0
          %2131 = vmatprep.subr.mxu0 0.0
          %2132 = vmatpush1.msra.mxu0 0.0
          %2133 = vmatprep.subr.mxu0 0.0
          %2134 = vmatpush1.msra.mxu0 0.0
          %2135 = vmatprep.subr.mxu0 0.0
          %2136 = vmatpush1.msra.mxu0 0.0
          %2137 = vmatprep.subr.mxu0 0.0
          %2138 = vmatpush1.msra.mxu0 0.0
          %2139 = vmatprep.subr.mxu0 0.0
          %2140 = vmatpush1.msra.mxu0 0.0
          %2141 = vmatprep.subr.mxu0 0.0
          %2142 = vmatpush1.msra.mxu0 0.0
          %2143 = vmatprep.subr.mxu0 0.0
          %2144 = vmatpush1.msra.mxu0 0.0
          %2145 = vmatprep.subr.mxu0 0.0
          %2146 = vmatpush1.msra.mxu0 0.0
          %2147 = vmatprep.subr.mxu0 0.0
          %2148 = vmatpush1.msra.mxu0 0.0
          %2149 = vmatprep.subr.mxu0 0.0
          %2150 = vmatpush1.msra.mxu0 0.0
          %2151 = vmatprep.subr.mxu0 0.0
          %2152 = vmatpush1.msra.mxu0 0.0
          %2153 = vmatprep.subr.mxu0 0.0
          %2154 = vmatpush1.msra.mxu0 0.0
          %2155 = vmatprep.subr.mxu0 0.0
          %2156 = vmatpush1.msra.mxu0 0.0
          %2157 = vmatprep.subr.mxu0 0.0
          %2158 = vmatpush1.msra.mxu0 0.0
          %2159 = vmatprep.subr.mxu0 0.0
          %2160 = vmatpush1.msra.mxu0 0.0
          %2161 = vmatprep.subr.mxu0 0.0
          %2162 = vmatpush1.msra.mxu0 0.0
          %2163 = vmatprep.subr.mxu0 0.0
          %2164 = vmatpush1.msra.mxu0 0.0
          %2165 = vmatprep.subr.mxu0 0.0
          %2166 = vmatpush1.msra.mxu0 0.0
          %2167 = vmatprep.subr.mxu0 0.0
          %2168 = vmatpush1.msra.mxu0 0.0
          %2169 = vmatprep.subr.mxu0 0.0
          %2170 = vmatpush1.msra.mxu0 0.0
          %2171 = vmatprep.subr.mxu0 0.0
          %2172 = vmatpush1.msra.mxu0 0.0
          %2173 = vmatprep.subr.mxu0 0.0
          %2174 = vmatpush1.msra.mxu0 0.0
          %2175 = vmatprep.subr.mxu0 0.0
          %2176 = vmatpush1.msra.mxu0 0.0
          %2177 = vmatprep.subr.mxu0 0.0
          %2178 = vmatpush1.msra.mxu0 0.0
          %2179 = vmatprep.subr.mxu0 0.0
          %2180 = vmatpush1.msra.mxu0 0.0
          %2181 = vmatprep.subr.mxu0 0.0
          %2182 = vmatpush1.msra.mxu0 0.0
          %2183 = vmatprep.subr.mxu0 0.0
          %2184 = vmatpush1.msra.mxu0 0.0
          %2185 = vmatprep.subr.mxu0 0.0
          %2186 = vmatpush1.msra.mxu0 0.0
          %2187 = vmatprep.subr.mxu0 0.0
          %2188 = vmatpush1.msra.mxu0 0.0
          %2189 = vmatprep.mubr.f32.mxu0 0.0
          %2190 = vmatmul.mubr.f32.gmra.mrb[0].mxu0 %v2123
          %v2191 = vpop.f32.mrb[0].mxu0
          %v2192 = vadd.f32 0.0, %v2191
          %v2193 = vpop.f32.mrb[0].mxu0
          %v2194 = vadd.f32 0.0, %v2193
          %2195 = vdwg.mxu0
          %v2196 = vlaneseq
          %v2197 = vshrl.u32 %v2196, 7
          %v2198 = vsub.s32 6, %v2197
          %v2199 = vrot.slane %v1375, %v2198
          %v2200 = vlaneseq
          %v2201 = vshrl.u32 %v2200, 7
          %v2202 = vsub.s32 6, %v2201
          %v2203 = vrot.slane %v1376, %v2202
          %v2204 = vmul.f32 %v2199, %v1351
          %v2205 = vmul.f32 %v2203, %v1352
          %v2206 = vmul.f32 %v2199, %v1353
          %v2207 = vmul.f32 %v2203, %v1354
          %v2208 = vmul.f32 %v2204, 1.442695
          %v2209 = vpow.pop %v2208
          %v2210 = vmul.f32 %v2205, 1.442695
          %v2211 = vpow.pop %v2210
          %v2212 = vmul.f32 %v2206, 1.442695
          %v2213 = vpow.pop %v2212
          %v2214 = vmul.f32 %v2207, 1.442695
          %v2215 = vpow.pop %v2214
          %v2216 = vlaneseq
          %v2217 = vshrl.u32 %v2216, 7
          %v2218 = vsub.s32 6, %v2217
          %v2219 = vrot.slane %v1379, %v2218
          %v2220 = vlaneseq
          %v2221 = vshrl.u32 %v2220, 7
          %v2222 = vsub.s32 6, %v2221
          %v2223 = vrot.slane %v1380, %v2222
          %2224 = vset.pattern.permute.xlu0 6
          %2225 = vperm.xlu0 %2224, %v1454
          %v2226 = vpop.permute.xlu0 %2225
          %2228 = vset.pattern.permute.xlu0 6
          %2229 = vperm.xlu0 %2228, %v1459
          %v2230 = vpop.permute.xlu0 %2229
          %v2232 = vmul.f32 %v2219, %v2226
          %v2233 = vmul.f32 %v2223, %v2226
          %v2234 = vmul.f32 %v2219, %v2230
          %v2235 = vmul.f32 %v2223, %v2230
          %v2236 = vmul.f32 %v2209, %v2118
          %v2237 = vmul.f32 %v2211, %v2119
          %v2238 = vmul.f32 %v2213, %v2120
          %v2239 = vmul.f32 %v2215, %v2121
          %v2240 = vadd.f32 %v2236, %v2232
          %v2241 = vadd.f32 %v2237, %v2233
          %v2242 = vadd.f32 %v2238, %v2234
          %v2243 = vadd.f32 %v2239, %v2235
          %v2244 = vrot.slane %v1386, 6
          %v2245 = vsel %vm1348, %v2244, 0
          %2247 = vmatprep.subr.mxu0 %v2241
          %2248 = vmatpush1.msra.mxu0 %v2240
          %2249 = vmatprep.subr.mxu0 %v2243
          %2250 = vmatpush1.msra.mxu0 %v2242
          %2251 = vmatprep.subr.mxu0 0.0
          %2252 = vmatpush1.msra.mxu0 0.0
          %2253 = vmatprep.subr.mxu0 0.0
          %2254 = vmatpush1.msra.mxu0 0.0
          %2255 = vmatprep.subr.mxu0 0.0
          %2256 = vmatpush1.msra.mxu0 0.0
          %2257 = vmatprep.subr.mxu0 0.0
          %2258 = vmatpush1.msra.mxu0 0.0
          %2259 = vmatprep.subr.mxu0 0.0
          %2260 = vmatpush1.msra.mxu0 0.0
          %2261 = vmatprep.subr.mxu0 0.0
          %2262 = vmatpush1.msra.mxu0 0.0
          %2263 = vmatprep.subr.mxu0 0.0
          %2264 = vmatpush1.msra.mxu0 0.0
          %2265 = vmatprep.subr.mxu0 0.0
          %2266 = vmatpush1.msra.mxu0 0.0
          %2267 = vmatprep.subr.mxu0 0.0
          %2268 = vmatpush1.msra.mxu0 0.0
          %2269 = vmatprep.subr.mxu0 0.0
          %2270 = vmatpush1.msra.mxu0 0.0
          %2271 = vmatprep.subr.mxu0 0.0
          %2272 = vmatpush1.msra.mxu0 0.0
          %2273 = vmatprep.subr.mxu0 0.0
          %2274 = vmatpush1.msra.mxu0 0.0
          %2275 = vmatprep.subr.mxu0 0.0
          %2276 = vmatpush1.msra.mxu0 0.0
          %2277 = vmatprep.subr.mxu0 0.0
          %2278 = vmatpush1.msra.mxu0 0.0
          %2279 = vmatprep.subr.mxu0 0.0
          %2280 = vmatpush1.msra.mxu0 0.0
          %2281 = vmatprep.subr.mxu0 0.0
          %2282 = vmatpush1.msra.mxu0 0.0
          %2283 = vmatprep.subr.mxu0 0.0
          %2284 = vmatpush1.msra.mxu0 0.0
          %2285 = vmatprep.subr.mxu0 0.0
          %2286 = vmatpush1.msra.mxu0 0.0
          %2287 = vmatprep.subr.mxu0 0.0
          %2288 = vmatpush1.msra.mxu0 0.0
          %2289 = vmatprep.subr.mxu0 0.0
          %2290 = vmatpush1.msra.mxu0 0.0
          %2291 = vmatprep.subr.mxu0 0.0
          %2292 = vmatpush1.msra.mxu0 0.0
          %2293 = vmatprep.subr.mxu0 0.0
          %2294 = vmatpush1.msra.mxu0 0.0
          %2295 = vmatprep.subr.mxu0 0.0
          %2296 = vmatpush1.msra.mxu0 0.0
          %2297 = vmatprep.subr.mxu0 0.0
          %2298 = vmatpush1.msra.mxu0 0.0
          %2299 = vmatprep.subr.mxu0 0.0
          %2300 = vmatpush1.msra.mxu0 0.0
          %2301 = vmatprep.subr.mxu0 0.0
          %2302 = vmatpush1.msra.mxu0 0.0
          %2303 = vmatprep.subr.mxu0 0.0
          %2304 = vmatpush1.msra.mxu0 0.0
          %2305 = vmatprep.subr.mxu0 0.0
          %2306 = vmatpush1.msra.mxu0 0.0
          %2307 = vmatprep.subr.mxu0 0.0
          %2308 = vmatpush1.msra.mxu0 0.0
          %2309 = vmatprep.subr.mxu0 0.0
          %2310 = vmatpush1.msra.mxu0 0.0
          %2311 = vmatprep.mubr.f32.mxu0 0.0
          %2312 = vmatmul.mubr.f32.gmra.mrb[0].mxu0 %v2245
          %v2313 = vpop.f32.mrb[0].mxu0
          %v2314 = vadd.f32 0.0, %v2313
          %v2315 = vpop.f32.mrb[0].mxu0
          %v2316 = vadd.f32 0.0, %v2315
          %2317 = vdwg.mxu0
          %v2318 = vlaneseq
          %v2319 = vshrl.u32 %v2318, 7
          %v2320 = vsub.s32 7, %v2319
          %v2321 = vrot.slane %v1375, %v2320
          %v2322 = vlaneseq
          %v2323 = vshrl.u32 %v2322, 7
          %v2324 = vsub.s32 7, %v2323
          %v2325 = vrot.slane %v1376, %v2324
          %v2326 = vmul.f32 %v2321, %v1351
          %v2327 = vmul.f32 %v2325, %v1352
          %v2328 = vmul.f32 %v2321, %v1353
          %v2329 = vmul.f32 %v2325, %v1354
          %v2330 = vmul.f32 %v2326, 1.442695
          %v2331 = vpow.pop %v2330
          %v2332 = vmul.f32 %v2327, 1.442695
          %v2333 = vpow.pop %v2332
          %v2334 = vmul.f32 %v2328, 1.442695
          %v2335 = vpow.pop %v2334
          %v2336 = vmul.f32 %v2329, 1.442695
          %v2337 = vpow.pop %v2336
          %v2338 = vlaneseq
          %v2339 = vshrl.u32 %v2338, 7
          %v2340 = vsub.s32 7, %v2339
          %v2341 = vrot.slane %v1379, %v2340
          %v2342 = vlaneseq
          %v2343 = vshrl.u32 %v2342, 7
          %v2344 = vsub.s32 7, %v2343
          %v2345 = vrot.slane %v1380, %v2344
          %2346 = vset.pattern.permute.xlu0 7
          %2347 = vperm.xlu0 %2346, %v1454
          %v2348 = vpop.permute.xlu0 %2347
          %2350 = vset.pattern.permute.xlu0 7
          %2351 = vperm.xlu0 %2350, %v1459
          %v2352 = vpop.permute.xlu0 %2351
          %v2354 = vmul.f32 %v2341, %v2348
          %v2355 = vmul.f32 %v2345, %v2348
          %v2356 = vmul.f32 %v2341, %v2352
          %v2357 = vmul.f32 %v2345, %v2352
          %v2358 = vmul.f32 %v2331, %v2240
          %v2359 = vmul.f32 %v2333, %v2241
          %v2360 = vmul.f32 %v2335, %v2242
          %v2361 = vmul.f32 %v2337, %v2243
          %v2362 = vadd.f32 %v2358, %v2354
          %v2363 = vadd.f32 %v2359, %v2355
          %v2364 = vadd.f32 %v2360, %v2356
          %v2365 = vadd.f32 %v2361, %v2357
          %v2366 = vrot.slane %v1386, 7
          %v2367 = vsel %vm1348, %v2366, 0
          %2369 = vmatprep.subr.mxu0 %v2363
          %2370 = vmatpush1.msra.mxu0 %v2362
          %2371 = vmatprep.subr.mxu0 %v2365
          %2372 = vmatpush1.msra.mxu0 %v2364
          %2373 = vmatprep.subr.mxu0 0.0
          %2374 = vmatpush1.msra.mxu0 0.0
          %2375 = vmatprep.subr.mxu0 0.0
          %2376 = vmatpush1.msra.mxu0 0.0
          %2377 = vmatprep.subr.mxu0 0.0
          %2378 = vmatpush1.msra.mxu0 0.0
          %2379 = vmatprep.subr.mxu0 0.0
          %2380 = vmatpush1.msra.mxu0 0.0
          %2381 = vmatprep.subr.mxu0 0.0
          %2382 = vmatpush1.msra.mxu0 0.0
          %2383 = vmatprep.subr.mxu0 0.0
          %2384 = vmatpush1.msra.mxu0 0.0
          %2385 = vmatprep.subr.mxu0 0.0
          %2386 = vmatpush1.msra.mxu0 0.0
          %2387 = vmatprep.subr.mxu0 0.0
          %2388 = vmatpush1.msra.mxu0 0.0
          %2389 = vmatprep.subr.mxu0 0.0
          %2390 = vmatpush1.msra.mxu0 0.0
          %2391 = vmatprep.subr.mxu0 0.0
          %2392 = vmatpush1.msra.mxu0 0.0
          %2393 = vmatprep.subr.mxu0 0.0
          %2394 = vmatpush1.msra.mxu0 0.0
          %2395 = vmatprep.subr.mxu0 0.0
          %2396 = vmatpush1.msra.mxu0 0.0
          %2397 = vmatprep.subr.mxu0 0.0
          %2398 = vmatpush1.msra.mxu0 0.0
          %2399 = vmatprep.subr.mxu0 0.0
          %2400 = vmatpush1.msra.mxu0 0.0
          %2401 = vmatprep.subr.mxu0 0.0
          %2402 = vmatpush1.msra.mxu0 0.0
          %2403 = vmatprep.subr.mxu0 0.0
          %2404 = vmatpush1.msra.mxu0 0.0
          %2405 = vmatprep.subr.mxu0 0.0
          %2406 = vmatpush1.msra.mxu0 0.0
          %2407 = vmatprep.subr.mxu0 0.0
          %2408 = vmatpush1.msra.mxu0 0.0
          %2409 = vmatprep.subr.mxu0 0.0
          %2410 = vmatpush1.msra.mxu0 0.0
          %2411 = vmatprep.subr.mxu0 0.0
          %2412 = vmatpush1.msra.mxu0 0.0
          %2413 = vmatprep.subr.mxu0 0.0
          %2414 = vmatpush1.msra.mxu0 0.0
          %2415 = vmatprep.subr.mxu0 0.0
          %2416 = vmatpush1.msra.mxu0 0.0
          %2417 = vmatprep.subr.mxu0 0.0
          %2418 = vmatpush1.msra.mxu0 0.0
          %2419 = vmatprep.subr.mxu0 0.0
          %2420 = vmatpush1.msra.mxu0 0.0
          %2421 = vmatprep.subr.mxu0 0.0
          %2422 = vmatpush1.msra.mxu0 0.0
          %2423 = vmatprep.subr.mxu0 0.0
          %2424 = vmatpush1.msra.mxu0 0.0
          %2425 = vmatprep.subr.mxu0 0.0
          %2426 = vmatpush1.msra.mxu0 0.0
          %2427 = vmatprep.subr.mxu0 0.0
          %2428 = vmatpush1.msra.mxu0 0.0
          %2429 = vmatprep.subr.mxu0 0.0
          %2430 = vmatpush1.msra.mxu0 0.0
          %2431 = vmatprep.subr.mxu0 0.0
          %2432 = vmatpush1.msra.mxu0 0.0
          %2433 = vmatprep.mubr.f32.mxu0 0.0
          %2434 = vmatmul.mubr.f32.gmra.mrb[0].mxu0 %v2367
          %v2435 = vpop.f32.mrb[0].mxu0
          %v2436 = vadd.f32 0.0, %v2435
          %v2437 = vpop.f32.mrb[0].mxu0
          %v2438 = vadd.f32 0.0, %v2437
          %2439 = vdwg.mxu0
          %v2442 = vrot.slane %v1704, 7
          %v2443 = vrot.slane %v1706, 7
          %v2448 = vrot.slane %v1826, 6
          %v2449 = vrot.slane %v1828, 6
          %v2454 = vrot.slane %v1948, 5
          %v2455 = vrot.slane %v1950, 5
          %v2460 = vrot.slane %v2070, 4
          %v2461 = vrot.slane %v2072, 4
          %v2466 = vrot.slane %v2192, 3
          %v2467 = vrot.slane %v2194, 3
          %v2472 = vrot.slane %v2314, 2
          %v2473 = vrot.slane %v2316, 2
          %v2478 = vrot.slane %v2436, 1
          %v2479 = vrot.slane %v2438, 1
          %v2482 = vsel %vm839, %v1582, %v2442
          %v2483 = vsel %vm839, %v1584, %v2443
          %v2484 = vsel %vm873, %v2482, %v2448
          %v2485 = vsel %vm873, %v2483, %v2449
          %v2486 = vsel %vm907, %v2484, %v2454
          %v2487 = vsel %vm907, %v2485, %v2455
          %vm2488 = vcmask 1043456
          %v2489 = vsel %vm2488, %v2486, %v2460
          %v2490 = vsel %vm2488, %v2487, %v2461
          %vm2491 = vcmask 1044480
          %v2492 = vsel %vm2491, %v2489, %v2466
          %v2493 = vsel %vm2491, %v2490, %v2467
          %vm2494 = vcmask 1045504
          %v2495 = vsel %vm2494, %v2492, %v2472
          %v2496 = vsel %vm2494, %v2493, %v2473
          %vm2497 = vcmask 1046528
          %v2498 = vsel %vm2497, %v2495, %v2478
          %v2499 = vsel %vm2497, %v2496, %v2479
          %s2500 = smul.addr %s1372, 8
          %s2501 = scalar_lea.vmem [#allocation6], %s2500
          %2502 = vst [vmem:[%s2501] sm:$0xff] %v2498
          %2503 = vst [vmem:[%s2501 + $0x8] sm:$0xff] %v2499
        $region109: #{tpu_custom_call.1} parent=79 // loop_footer
          %s1364 = sadd.s32 1, %s1360
        $region110: #{tpu_custom_call.1} parent=79 // loop_footer_branch
          %1359 = sbr.rel target = $region106
        $region111: #{tpu_custom_call.1} parent=79 // loop_exit
          _
        %v2504 = vld [vmem:[#allocation6] sm:$0xff]
        %v2505 = vld [vmem:[#allocation6 + $0x8] sm:$0xff]
        %v2506 = vld [vmem:[#allocation6 + $0x10] sm:$0xff]
        %v2507 = vld [vmem:[#allocation6 + $0x18] sm:$0xff]
        %v2508 = vld [vmem:[%s11] sm:$0x3]
        %v2510 = vlaneseq
        %v2511 = vshrl.u32 %v2510, 7
        %v2512 = vsub.s32 0, %v2511
        %v2513 = vrot.slane %v2508, %v2512
        %v2514 = vlaneseq
        %v2515 = vshrl.u32 %v2514, 7
        %v2516 = vsub.s32 1, %v2515
        %v2517 = vrot.slane %v2508, %v2516
        %v2520 = vmul.f32 %v960, %v2513
        %v2521 = vmul.f32 %v961, %v2517
        %v2522 = vmul.f32 %v962, %v2513
        %v2523 = vmul.f32 %v963, %v2517
        %v2524 = vadd.f32 %v2504, %v2520
        %v2525 = vadd.f32 %v2505, %v2521
        %v2526 = vadd.f32 %v2506, %v2522
        %v2527 = vadd.f32 %v2507, %v2523
        %v2528 = vsub.f32 0.0, %v792
        %v2529 = vsub.f32 0.0, %v794
        %v2530 = vsub.f32 0.0, %v798
        %v2531 = vsub.f32 0.0, %v800
        %v2532 = vmul.f32 %v2528, 1.442695
        %v2533 = vpow.pop %v2532
        %v2534 = vmul.f32 %v2529, 1.442695
        %v2535 = vpow.pop %v2534
        %v2536 = vmul.f32 %v2530, 1.442695
        %v2537 = vpow.pop %v2536
        %v2538 = vmul.f32 %v2531, 1.442695
        %v2539 = vpow.pop %v2538
        %v2540 = vadd.f32 %v2533, 1.0
        %v2541 = vadd.f32 %v2535, 1.0
        %v2542 = vadd.f32 %v2537, 1.0
        %v2543 = vadd.f32 %v2539, 1.0
        %v2544 = vrcp.pop %v2540
        %v2545 = vrcp.pop %v2541
        %v2546 = vrcp.pop %v2542
        %v2547 = vrcp.pop %v2543
        %v2548 = vmul.f32 %v792, %v2544
        %v2549 = vmul.f32 %v794, %v2545
        %v2550 = vmul.f32 %v798, %v2546
        %v2551 = vmul.f32 %v800, %v2547
        %v2552 = vmul.f32 %v2524, %v2548
        %v2553 = vmul.f32 %v2525, %v2549
        %v2554 = vmul.f32 %v2526, %v2550
        %v2555 = vmul.f32 %v2527, %v2551
        %v2556 = vld [vmem:[#allocation15] sm:$0xff]
        %v2557 = vld [vmem:[#allocation15 + $0x8] sm:$0xff]
        %v2558 = vld [vmem:[#allocation15 + $0x10] sm:$0xff]
        %v2559 = vld [vmem:[#allocation15 + $0x18] sm:$0xff]
        %v2560 = vld [vmem:[#allocation15 + $0x20] sm:$0xff]
        %v2561 = vld [vmem:[#allocation15 + $0x28] sm:$0xff]
        %v2562 = vld [vmem:[#allocation15 + $0x30] sm:$0xff]
        %v2563 = vld [vmem:[#allocation15 + $0x38] sm:$0xff]
        %v2564 = vld [vmem:[#allocation15 + $0x40] sm:$0xff]
        %v2565 = vld [vmem:[#allocation15 + $0x48] sm:$0xff]
        %v2566 = vld [vmem:[#allocation15 + $0x50] sm:$0xff]
        %v2567 = vld [vmem:[#allocation15 + $0x58] sm:$0xff]
        %v2568 = vld [vmem:[#allocation15 + $0x60] sm:$0xff]
        %v2569 = vld [vmem:[#allocation15 + $0x68] sm:$0xff]
        %v2570 = vld [vmem:[#allocation15 + $0x70] sm:$0xff]
        %v2571 = vld [vmem:[#allocation15 + $0x78] sm:$0xff]
        %v2572 = vld [vmem:[#allocation15 + $0x80] sm:$0xff]
        %v2573 = vld [vmem:[#allocation15 + $0x88] sm:$0xff]
        %v2574 = vld [vmem:[#allocation15 + $0x90] sm:$0xff]
        %v2575 = vld [vmem:[#allocation15 + $0x98] sm:$0xff]
        %v2576 = vld [vmem:[#allocation15 + $0xa0] sm:$0xff]
        %v2577 = vld [vmem:[#allocation15 + $0xa8] sm:$0xff]
        %v2578 = vld [vmem:[#allocation15 + $0xb0] sm:$0xff]
        %v2579 = vld [vmem:[#allocation15 + $0xb8] sm:$0xff]
        %v2580 = vld [vmem:[#allocation15 + $0xc0] sm:$0xff]
        %v2581 = vld [vmem:[#allocation15 + $0xc8] sm:$0xff]
        %v2582 = vld [vmem:[#allocation15 + $0xd0] sm:$0xff]
        %v2583 = vld [vmem:[#allocation15 + $0xd8] sm:$0xff]
        %v2584 = vld [vmem:[#allocation15 + $0xe0] sm:$0xff]
        %v2585 = vld [vmem:[#allocation15 + $0xe8] sm:$0xff]
        %v2586 = vld [vmem:[#allocation15 + $0xf0] sm:$0xff]
        %v2587 = vld [vmem:[#allocation15 + $0xf8] sm:$0xff]
        %2588 = vmatprep.subr.mxu0 0.0
        %2589 = vmatpush1.msra.mxu0 %v2556
        %2590 = vmatprep.subr.mxu0 0.0
        %2591 = vmatpush1.msra.mxu0 %v2557
        %2592 = vmatprep.subr.mxu0 0.0
        %2593 = vmatpush1.msra.mxu0 %v2558
        %2594 = vmatprep.subr.mxu0 0.0
        %2595 = vmatpush1.msra.mxu0 %v2559
        %2596 = vmatprep.subr.mxu0 0.0
        %2597 = vmatpush1.msra.mxu0 %v2560
        %2598 = vmatprep.subr.mxu0 0.0
        %2599 = vmatpush1.msra.mxu0 %v2561
        %2600 = vmatprep.subr.mxu0 0.0
        %2601 = vmatpush1.msra.mxu0 %v2562
        %2602 = vmatprep.subr.mxu0 0.0
        %2603 = vmatpush1.msra.mxu0 %v2563
        %2604 = vmatprep.subr.mxu0 0.0
        %2605 = vmatpush1.msra.mxu0 %v2564
        %2606 = vmatprep.subr.mxu0 0.0
        %2607 = vmatpush1.msra.mxu0 %v2565
        %2608 = vmatprep.subr.mxu0 0.0
        %2609 = vmatpush1.msra.mxu0 %v2566
        %2610 = vmatprep.subr.mxu0 0.0
        %2611 = vmatpush1.msra.mxu0 %v2567
        %2612 = vmatprep.subr.mxu0 0.0
        %2613 = vmatpush1.msra.mxu0 %v2568
        %2614 = vmatprep.subr.mxu0 0.0
        %2615 = vmatpush1.msra.mxu0 %v2569
        %2616 = vmatprep.subr.mxu0 0.0
        %2617 = vmatpush1.msra.mxu0 %v2570
        %2618 = vmatprep.subr.mxu0 0.0
        %2619 = vmatpush1.msra.mxu0 %v2571
        %2620 = vmatprep.subr.mxu0 0.0
        %2621 = vmatpush1.msra.mxu0 %v2572
        %2622 = vmatprep.subr.mxu0 0.0
        %2623 = vmatpush1.msra.mxu0 %v2573
        %2624 = vmatprep.subr.mxu0 0.0
        %2625 = vmatpush1.msra.mxu0 %v2574
        %2626 = vmatprep.subr.mxu0 0.0
        %2627 = vmatpush1.msra.mxu0 %v2575
        %2628 = vmatprep.subr.mxu0 0.0
        %2629 = vmatpush1.msra.mxu0 %v2576
        %2630 = vmatprep.subr.mxu0 0.0
        %2631 = vmatpush1.msra.mxu0 %v2577
        %2632 = vmatprep.subr.mxu0 0.0
        %2633 = vmatpush1.msra.mxu0 %v2578
        %2634 = vmatprep.subr.mxu0 0.0
        %2635 = vmatpush1.msra.mxu0 %v2579
        %2636 = vmatprep.subr.mxu0 0.0
        %2637 = vmatpush1.msra.mxu0 %v2580
        %2638 = vmatprep.subr.mxu0 0.0
        %2639 = vmatpush1.msra.mxu0 %v2581
        %2640 = vmatprep.subr.mxu0 0.0
        %2641 = vmatpush1.msra.mxu0 %v2582
        %2642 = vmatprep.subr.mxu0 0.0
        %2643 = vmatpush1.msra.mxu0 %v2583
        %2644 = vmatprep.subr.mxu0 0.0
        %2645 = vmatpush1.msra.mxu0 %v2584
        %2646 = vmatprep.subr.mxu0 0.0
        %2647 = vmatpush1.msra.mxu0 %v2585
        %2648 = vmatprep.subr.mxu0 0.0
        %2649 = vmatpush1.msra.mxu0 %v2586
        %2650 = vmatprep.subr.mxu0 0.0
        %2651 = vmatpush1.msra.mxu0 %v2587
        %2652 = vmatprep.mubr.f32.mxu0 %v2553
        %2653 = vmatmul.mubr.f32.gmra.mrb[0].mxu0 %v2552
        %v2654 = vpop.f32.mrb[0].mxu0
        %v2655 = vadd.f32 0.0, %v2654
        %v2656 = vpop.f32.mrb[0].mxu0
        %2657 = vmatprep.mubr.f32.mxu0 %v2555
        %2658 = vmatmul.mubr.f32.gmra.mrb[0].mxu0 %v2554
        %v2659 = vpop.f32.mrb[0].mxu0
        %v2660 = vadd.f32 0.0, %v2659
        %v2661 = vpop.f32.mrb[0].mxu0
        %2662 = vdwg.mxu0
        %v2663 = vld [vmem:[#allocation16] sm:$0xff]
        %v2664 = vld [vmem:[#allocation16 + $0x8] sm:$0xff]
        %v2665 = vld [vmem:[#allocation16 + $0x10] sm:$0xff]
        %v2666 = vld [vmem:[#allocation16 + $0x18] sm:$0xff]
        %v2667 = vld [vmem:[#allocation16 + $0x20] sm:$0xff]
        %v2668 = vld [vmem:[#allocation16 + $0x28] sm:$0xff]
        %v2669 = vld [vmem:[#allocation16 + $0x30] sm:$0xff]
        %v2670 = vld [vmem:[#allocation16 + $0x38] sm:$0xff]
        %v2671 = vld [vmem:[#allocation16 + $0x40] sm:$0xff]
        %v2672 = vld [vmem:[#allocation16 + $0x48] sm:$0xff]
        %v2673 = vld [vmem:[#allocation16 + $0x50] sm:$0xff]
        %v2674 = vld [vmem:[#allocation16 + $0x58] sm:$0xff]
        %v2675 = vld [vmem:[#allocation16 + $0x60] sm:$0xff]
        %v2676 = vld [vmem:[#allocation16 + $0x68] sm:$0xff]
        %v2677 = vld [vmem:[#allocation16 + $0x70] sm:$0xff]
        %v2678 = vld [vmem:[#allocation16 + $0x78] sm:$0xff]
        %v2679 = vld [vmem:[%s14] sm:$0x1]
        %v2681 = vlaneseq
        %v2682 = vshrl.u32 %v2681, 7
        %v2683 = vsub.s32 0, %v2682
        %v2684 = vrot.slane %v2679, %v2683
        %2686 = vmatprep.subr.mxu0 0.0
        %2687 = vmatpush1.msra.mxu0 %v2663
        %2688 = vmatprep.subr.mxu0 0.0
        %2689 = vmatpush1.msra.mxu0 %v2664
        %2690 = vmatprep.subr.mxu0 0.0
        %2691 = vmatpush1.msra.mxu0 %v2665
        %2692 = vmatprep.subr.mxu0 0.0
        %2693 = vmatpush1.msra.mxu0 %v2666
        %2694 = vmatprep.subr.mxu0 0.0
        %2695 = vmatpush1.msra.mxu0 %v2667
        %2696 = vmatprep.subr.mxu0 0.0
        %2697 = vmatpush1.msra.mxu0 %v2668
        %2698 = vmatprep.subr.mxu0 0.0
        %2699 = vmatpush1.msra.mxu0 %v2669
        %2700 = vmatprep.subr.mxu0 0.0
        %2701 = vmatpush1.msra.mxu0 %v2670
        %2702 = vmatprep.subr.mxu0 0.0
        %2703 = vmatpush1.msra.mxu0 %v2671
        %2704 = vmatprep.subr.mxu0 0.0
        %2705 = vmatpush1.msra.mxu0 %v2672
        %2706 = vmatprep.subr.mxu0 0.0
        %2707 = vmatpush1.msra.mxu0 %v2673
        %2708 = vmatprep.subr.mxu0 0.0
        %2709 = vmatpush1.msra.mxu0 %v2674
        %2710 = vmatprep.subr.mxu0 0.0
        %2711 = vmatpush1.msra.mxu0 %v2675
        %2712 = vmatprep.subr.mxu0 0.0
        %2713 = vmatpush1.msra.mxu0 %v2676
        %2714 = vmatprep.subr.mxu0 0.0
        %2715 = vmatpush1.msra.mxu0 %v2677
        %2716 = vmatprep.subr.mxu0 0.0
        %2717 = vmatpush1.msra.mxu0 %v2678
        %2718 = vmatprep.subr.mxu0 0.0
        %2719 = vmatpush1.msra.mxu0 0.0
        %2720 = vmatprep.subr.mxu0 0.0
        %2721 = vmatpush1.msra.mxu0 0.0
        %2722 = vmatprep.subr.mxu0 0.0
        %2723 = vmatpush1.msra.mxu0 0.0
        %2724 = vmatprep.subr.mxu0 0.0
        %2725 = vmatpush1.msra.mxu0 0.0
        %2726 = vmatprep.subr.mxu0 0.0
        %2727 = vmatpush1.msra.mxu0 0.0
        %2728 = vmatprep.subr.mxu0 0.0
        %2729 = vmatpush1.msra.mxu0 0.0
        %2730 = vmatprep.subr.mxu0 0.0
        %2731 = vmatpush1.msra.mxu0 0.0
        %2732 = vmatprep.subr.mxu0 0.0
        %2733 = vmatpush1.msra.mxu0 0.0
        %2734 = vmatprep.subr.mxu0 0.0
        %2735 = vmatpush1.msra.mxu0 0.0
        %2736 = vmatprep.subr.mxu0 0.0
        %2737 = vmatpush1.msra.mxu0 0.0
        %2738 = vmatprep.subr.mxu0 0.0
        %2739 = vmatpush1.msra.mxu0 0.0
        %2740 = vmatprep.subr.mxu0 0.0
        %2741 = vmatpush1.msra.mxu0 0.0
        %2742 = vmatprep.subr.mxu0 0.0
        %2743 = vmatpush1.msra.mxu0 0.0
        %2744 = vmatprep.subr.mxu0 0.0
        %2745 = vmatpush1.msra.mxu0 0.0
        %2746 = vmatprep.subr.mxu0 0.0
        %2747 = vmatpush1.msra.mxu0 0.0
        %2748 = vmatprep.subr.mxu0 0.0
        %2749 = vmatpush1.msra.mxu0 0.0
        %2750 = vmatprep.mubr.f32.mxu0 0.0
        %2751 = vmatmul.mubr.f32.gmra.mrb[0].mxu0 %v2655
        %v2752 = vpop.f32.mrb[0].mxu0
        %v2753 = vadd.f32 %v2684, %v2752
        %v2754 = vpop.f32.mrb[0].mxu0
        %2755 = vmatprep.mubr.f32.mxu0 0.0
        %2756 = vmatmul.mubr.f32.gmra.mrb[0].mxu0 %v2660
        %v2757 = vpop.f32.mrb[0].mxu0
        %v2758 = vadd.f32 %v2684, %v2757
        %v2759 = vpop.f32.mrb[0].mxu0
        %2760 = vdwg.mxu0
        %2761 = vst [vmem:[%s581] sm:$0xff] %v2753
        %2762 = vst [vmem:[%s581 + $0x8] sm:$0xff] %v2758
        %s2763 = sand.u32 %s363, 1
        %s2764 = scalar_lea.sflag [#allocation9], %s2763
        %s2765 = sand.u32 %s363, 1
        %s2766 = smul.addr %s2765, 16
        %s2767 = scalar_lea.vmem [#allocation18], %s2766
        // Predicated region
        $region112: #{tpu_custom_call.1} parent=79 // pred_check
          %p2768 = pneg %p373
        $region113: #{tpu_custom_call.1} parent=79 // pred_check_branch
          %2770 = sbr.rel (%p2768) target = $region115
        $region114: #{tpu_custom_call.1} parent=79 // pred_region
          %s2772 = ssub.s32 256, 256
          %2773 = vsyncadd %s2764, %s2772
          %s2774 = smul.addr %s35, 2
          %s2775 = smul.addr %s2774, 128
          %s2776 = scalar_lea.hbm %s15, %s2775
          %s2777 = sshll.u32 %s2767, 4
          %s2778 = int_to_ptr.vmem [resolvable:$true] %s2777
          %2783 = dma.vmem_to_hbm [thread:$0]  %s2778, 256, %s2776, %s2764, 128, 128, 8
        $region115: #{tpu_custom_call.1} parent=79 // pred_fallthru
          _
      $region80: #{tpu_custom_call.1} parent=5 // pred_fallthru
        _
      %p2784 = scmp.le.s32.totalorder 2, %s30
      // Predicated region
      $region116: #{tpu_custom_call.1} parent=5 // pred_check
        %p2785 = pneg %p2784
      $region117: #{tpu_custom_call.1} parent=5 // pred_check_branch
        %2787 = sbr.rel (%p2785) target = $region119
      $region118: #{tpu_custom_call.1} parent=5 // pred_region
        %s2788 = ssub.s32 %s30, 2
        // Predicated region
        $region120: #{tpu_custom_call.1} parent=118 // pred_check
          %p2789 = pneg %p379
        $region121: #{tpu_custom_call.1} parent=118 // pred_check_branch
          %2791 = sbr.rel (%p2789) target = $region123
        $region122: #{tpu_custom_call.1} parent=118 // pred_region
          %s2792 = sand.u32 %s364, 1
          %s2793 = scalar_lea.sflag [#allocation9], %s2792
          %s2794 = sand.u32 %s364, 1
          %s2795 = smul.addr %s2794, 16
          %s2796 = scalar_lea.vmem [#allocation18], %s2795
          %2797 = dma.done %s2793, 256
        $region123: #{tpu_custom_call.1} parent=118 // pred_fallthru
          _
      $region119: #{tpu_custom_call.1} parent=5 // pred_fallthru
        _
    $region6: #{tpu_custom_call.1} parent=1 // loop_footer
      %s34 = sadd.s32 1, %s30
    $region7: #{tpu_custom_call.1} parent=1 // loop_footer_branch
      %29 = sbr.rel target = $region3
    $region8: #{tpu_custom_call.1} parent=1 // loop_exit
      _
    %2798 = vsyncpa [#allocation8], 1
    %s2799 = scalar_lea.sflag [#allocation8], 1
    %2800 = vsyncpa %s2799, 1
    %2801 = vsyncpa [#allocation11], 1
    %2802 = vsyncpa [#allocation14], 1
    %2803 = vsyncpa [#allocation17], 1
    %2804 = vsyncpa [#allocation9], 1
    %s2805 = scalar_lea.sflag [#allocation9], 1
    %2806 = vsyncpa %s2805, 1

</llo_original>
